<compile_context>
chip_gen: v7x
topology: tpu7x:2x2x1
jax: 0.10.0
libtpu: 0.0.40
codegen_flags: <defaults>
</compile_context>

<pallas_src>
import jax
import jax.numpy as jnp
from jax import lax
from jax.experimental import pallas as pl
from jax.experimental.pallas import tpu as pltpu


_PAD_L = 8   # sublane-aligned left offset of the interior inside the scratch
_PAD_T = 3   # top / bottom halo rows


def _ppeg_kernel(x_ref, w_ref, bias_ref, out_ref, xpad_ref):
    # x_ref:    (Bt, H, W, Cb)   unpadded NHWC feature frames (Bt batch elements)
    # w_ref:    (49, W, Cb)      fused 7x7 depthwise taps, row = ky*7 + kx,
    #                            pre-broadcast along W (identity+7x7+5x5+3x3 folded)
    # bias_ref: (1, Cb)          b7 + b5 + b3
    # out_ref:  (Bt, H, W, Cb)
    # xpad_ref: (H+6, W+16, Cb)  VMEM scratch holding one zero-padded frame
    Bt, H, W, Cb = out_ref.shape
    Wp = xpad_ref.shape[1]
    dt = xpad_ref.dtype

    # Zero ONLY the halo strips; the interior is fully overwritten below.
    # Re-done every grid step so the halo stays valid under megacore sharding.
    xpad_ref[0:_PAD_T, :, :] = jnp.zeros((_PAD_T, Wp, Cb), dt)
    xpad_ref[_PAD_T + H:, :, :] = jnp.zeros((_PAD_T, Wp, Cb), dt)
    xpad_ref[_PAD_T:_PAD_T + H, 0:_PAD_L, :] = jnp.zeros((H, _PAD_L, Cb), dt)
    xpad_ref[_PAD_T:_PAD_T + H, _PAD_L + W:, :] = (
        jnp.zeros((H, Wp - _PAD_L - W, Cb), dt))

    # f32 bias, broadcast once (hoisted out of all loops).
    bias_hwc = jnp.broadcast_to(bias_ref[0].astype(jnp.float32), (H, W, Cb))

    # Small static unroll over the Bt batch elements handled by this grid step.
    for b in range(Bt):
        xpad_ref[_PAD_T:_PAD_T + H, _PAD_L:_PAD_L + W, :] = x_ref[b]

        acc = bias_hwc
        # Single fused 7x7 depthwise pass. kx outer: one shifted column slice
        # per kx (7 slice loads total), reused across all 7 ky row offsets.
        for kx in range(7):
            off = _PAD_L - 3 + kx
            col = xpad_ref[:, off:off + W, :].astype(jnp.float32)   # (H+6, W, Cb)
            for ky in range(7):
                w_tap = w_ref[ky * 7 + kx].astype(jnp.float32)      # (W, Cb)
                acc = acc + col[ky:ky + H] * w_tap
        out_ref[b] = acc.astype(out_ref.dtype)


def fuse_ppeg_weights(w7, w5, w3, W):
    """Fold identity + 7x7 + 5x5 + 3x3 depthwise weights into a (49, W, C) table."""
    C = w7.shape[-1]
    w = w7.astype(jnp.float32)
    w = w.at[1:6, 1:6, :].add(w5.astype(jnp.float32))   # 5x5 centered inside 7x7
    w = w.at[2:5, 2:5, :].add(w3.astype(jnp.float32))   # 3x3 centered inside 7x7
    w = w.at[3, 3, :].add(1.0)                          # identity (+cnn_feat) term
    w_flat = w.reshape(49, C)
    # Pre-broadcast along W so the kernel does a plain aligned row load per tap
    # instead of a per-tap sublane splat.
    return jnp.broadcast_to(w_flat[:, None, :], (49, W, C))


def _pick_batch_block(B, H, W, Cb, itemsize):
    """Amortize per-grid-step overhead; keep unroll and VMEM bounded."""
    frame_bytes = H * W * Cb * itemsize
    cap = max(1, (2 << 20) // max(frame_bytes, 1))   # <= ~2 MiB interior per step
    bt = max(1, min(B, cap, 8))
    while B % bt != 0:
        bt -= 1
    return bt


def ppeg_conv_pallas(feat_nhwc, w7, w5, w3, bias_sum):
    """feat_nhwc: (B, H, W, C). Returns identity + 3 depthwise convs as one fused 7x7."""
    B, H, W, C = feat_nhwc.shape
    itemsize = jnp.dtype(feat_nhwc.dtype).itemsize

    # Channel blocking: 128 lanes per grid step keeps acc+col in vregs at
    # production C=512 and bounds the scratch footprint (v7x VMEM).
    Cb = 128 if (C % 128 == 0) else C
    n_c = C // Cb
    Bt = _pick_batch_block(B, H, W, Cb, itemsize)
    n_b = B // Bt
    Wp = W + 16                       # 8 aligned left halo cols + W + 8 right halo cols

    w_fused = fuse_ppeg_weights(w7, w5, w3, W)              # (49, W, C) f32
    bias2d = bias_sum.reshape(1, C).astype(jnp.float32)     # (1, C)

    # Explicit scoped-VMEM budget (v5e default is ~16 MiB): size to the actual
    # double-buffered blocks + scratch, with headroom, capped at 64 MiB (v7x).
    blk_io = Bt * H * W * Cb * itemsize
    blk_w = 49 * W * Cb * 4
    scratch_bytes = (H + 6) * Wp * Cb * itemsize
    need = 2 * (2 * blk_io + blk_w + 128 * 4) + scratch_bytes
    vmem_limit = int(min(64 << 20, max(2 * need, 16 << 20)))

    return pl.pallas_call(
        _ppeg_kernel,
        out_shape=jax.ShapeDtypeStruct((B, H, W, C), feat_nhwc.dtype),
        grid_spec=pltpu.PrefetchScalarGridSpec(
            num_scalar_prefetch=0,
            grid=(n_b, n_c),
            in_specs=[
                pl.BlockSpec((Bt, H, W, Cb), lambda b, c: (b, 0, 0, c)),
                pl.BlockSpec((49, W, Cb), lambda b, c: (0, 0, c)),
                pl.BlockSpec((1, Cb), lambda b, c: (0, c)),
            ],
            out_specs=pl.BlockSpec((Bt, H, W, Cb), lambda b, c: (b, 0, 0, c)),
            scratch_shapes=[pltpu.VMEM((H + 6, Wp, Cb), feat_nhwc.dtype)],
        ),
        compiler_params=pltpu.CompilerParams(
            dimension_semantics=("parallel", "parallel"),
            vmem_limit_bytes=vmem_limit),
    )(feat_nhwc, w_fused, bias2d)


def ppeg_forward(x, H, W, params):
    """x: (B, N, C) with N = 1 + H*W. Mirrors PPEG.forward."""
    B, N, C = x.shape
    cls_token = x[:, 0:1, :]                       # (B, 1, C)
    feat = x[:, 1:, :]                             # (B, H*W, C)
    # PyTorch: feat.transpose(1,2).view(B,C,H,W) -> NCHW; kernel uses NHWC
    # (same per-(h,w) element ordering, channels on the 128-lane axis).
    feat_nhwc = feat.reshape(B, H, W, C)
    bias_sum = params["b7"] + params["b5"] + params["b3"]
    y = ppeg_conv_pallas(feat_nhwc, params["w7"], params["w5"], params["w3"], bias_sum)
    y_seq = y.reshape(B, H * W, C)                 # == flatten(2).transpose(1,2)
    return jnp.concatenate([cls_token, y_seq], axis=1)


def _reference_forward(x, H, W, params):
    """Pure-JAX reference using lax depthwise convs (NCHW, cross-correlation)."""
    B, N, C = x.shape
    cls_token = x[:, 0:1, :]
    feat = jnp.transpose(x[:, 1:, :], (0, 2, 1)).reshape(B, C, H, W)  # NCHW

    def dwconv(inp, w_khkwc, bias, k):
        w = jnp.transpose(w_khkwc, (2, 0, 1)).reshape(C, 1, k, k)     # OIHW, I=1
        out = lax.conv_general_dilated(
            inp, w, window_strides=(1, 1), padding="SAME",
            dimension_numbers=("NCHW", "OIHW", "NCHW"),
            feature_group_count=C)
        return out + bias.reshape(1, C, 1, 1)

    y = (dwconv(feat, params["w7"], params["b7"], 7) + feat
         + dwconv(feat, params["w5"], params["b5"], 5)
         + dwconv(feat, params["w3"], params["b3"], 3))
    y = y.reshape(B, C, H * W).transpose(0, 2, 1)
    return jnp.concatenate([cls_token, y], axis=1)


def init_params(key, dim):
    ks = jax.random.split(key, 6)
    # Conv2d(dim, dim, k, groups=dim) -> weight (dim,1,k,k) stored here as (k,k,dim), bias (dim,)
    w7 = jax.random.normal(ks[0], (7, 7, dim), jnp.float32) * 0.05
    w5 = jax.random.normal(ks[1], (5, 5, dim), jnp.float32) * 0.05
    w3 = jax.random.normal(ks[2], (3, 3, dim), jnp.float32) * 0.05
    b7 = jax.random.normal(ks[3], (dim,), jnp.float32) * 0.01
    b5 = jax.random.normal(ks[4], (dim,), jnp.float32) * 0.01
    b3 = jax.random.normal(ks[5], (dim,), jnp.float32) * 0.01
    return {"w7": w7, "w5": w5, "w3": w3, "b7": b7, "b5": b5, "b3": b3}


if __name__ == "__main__":
    key = jax.random.PRNGKey(0)
    # C=128 keeps the last (lane) dim dense -> unmasked stores; production C=512
    # is channel-blocked to 128 lanes per grid step.
    B, C, H, W = 2, 128, 8, 8
    N = 1 + H * W

    kx_, kp = jax.random.split(key)
    x = jax.random.normal(kx_, (B, N, C), jnp.float32)
    params = init_params(kp, C)

    out = ppeg_forward(x, H, W, params)
    out = jax.block_until_ready(out)

    ref = _reference_forward(x, H, W, params)
    assert out.shape == (B, N, C)
    assert jnp.allclose(out, ref, atol=1e-4, rtol=1e-4), "Pallas PPEG mismatch vs reference"

    print("KERNEL_OK")
</pallas_src>

<mosaic_0001>
module attributes {stable_mosaic.version = 11 : i64} {
  func.func @_ppeg_kernel(%arg0: i32, %arg1: i32, %arg2: memref<2x8x8x128xf32, #tpu.memory_space<vmem>>, %arg3: memref<49x8x128xf32, #tpu.memory_space<vmem>>, %arg4: memref<1x128xf32, #tpu.memory_space<vmem>>, %arg5: memref<2x8x8x128xf32, #tpu.memory_space<vmem>>, %arg6: memref<14x24x128xf32, #tpu.memory_space<vmem>>) attributes {dimension_semantics = [#tpu.dimension_semantics<parallel>, #tpu.dimension_semantics<parallel>], iteration_bounds = array<i64: 1, 1>, scalar_prefetch = 0 : i64, scratch_operands = 1 : i64, tpu.core_type = #tpu.core_type<tc>, window_params = [{transform_indices = @transform_0, window_bounds = array<i64: 2, 8, 8, 128>}, {transform_indices = @transform_1, window_bounds = array<i64: 49, 8, 128>}, {transform_indices = @transform_2, window_bounds = array<i64: 1, 128>}, {transform_indices = @transform_3, window_bounds = array<i64: 2, 8, 8, 128>}]} {
    %cst = arith.constant 0.000000e+00 : f32
    %0 = vector.broadcast %cst : f32 to vector<3x24x128xf32>
    %c0 = arith.constant 0 : index
    %c0_0 = arith.constant 0 : index
    %c0_1 = arith.constant 0 : index
    %1 = vector.load %arg6[%c0, %c0_0, %c0_1] : memref<14x24x128xf32, #tpu.memory_space<vmem>>, vector<3x24x128xf32>
    tpu.vector_store %arg6[%c0, %c0_0, %c0_1], %0 {strides = array<i32>} : memref<14x24x128xf32, #tpu.memory_space<vmem>>, vector<3x24x128xf32>,
    %cst_2 = arith.constant 0.000000e+00 : f32
    %2 = vector.broadcast %cst_2 : f32 to vector<3x24x128xf32>
    %c11 = arith.constant 11 : index
    %c0_3 = arith.constant 0 : index
    %c0_4 = arith.constant 0 : index
    %3 = vector.load %arg6[%c11, %c0_3, %c0_4] : memref<14x24x128xf32, #tpu.memory_space<vmem>>, vector<3x24x128xf32>
    tpu.vector_store %arg6[%c11, %c0_3, %c0_4], %2 {strides = array<i32>} : memref<14x24x128xf32, #tpu.memory_space<vmem>>, vector<3x24x128xf32>,
    %cst_5 = arith.constant 0.000000e+00 : f32
    %4 = vector.broadcast %cst_5 : f32 to vector<8x8x128xf32>
    %c3 = arith.constant 3 : index
    %c0_6 = arith.constant 0 : index
    %c0_7 = arith.constant 0 : index
    %5 = vector.load %arg6[%c3, %c0_6, %c0_7] : memref<14x24x128xf32, #tpu.memory_space<vmem>>, vector<8x8x128xf32>
    tpu.vector_store %arg6[%c3, %c0_6, %c0_7], %4 {strides = array<i32>} : memref<14x24x128xf32, #tpu.memory_space<vmem>>, vector<8x8x128xf32>,
    %cst_8 = arith.constant 0.000000e+00 : f32
    %6 = vector.broadcast %cst_8 : f32 to vector<8x8x128xf32>
    %c3_9 = arith.constant 3 : index
    %c16 = arith.constant 16 : index
    %c0_10 = arith.constant 0 : index
    %7 = vector.load %arg6[%c3_9, %c16, %c0_10] : memref<14x24x128xf32, #tpu.memory_space<vmem>>, vector<8x8x128xf32>
    tpu.vector_store %arg6[%c3_9, %c16, %c0_10], %6 {strides = array<i32>} : memref<14x24x128xf32, #tpu.memory_space<vmem>>, vector<8x8x128xf32>,
    %c0_11 = arith.constant 0 : index
    %c0_12 = arith.constant 0 : index
    %8 = vector.load %arg4[%c0_11, %c0_12] : memref<1x128xf32, #tpu.memory_space<vmem>>, vector<1x128xf32>
    %9 = vector.shape_cast %8 : vector<1x128xf32> to vector<128xf32>
    %10 = vector.shape_cast %9 : vector<128xf32> to vector<1x1x128xf32>
    %11 = vector.broadcast %10 : vector<1x1x128xf32> to vector<8x8x128xf32>
    %c0_13 = arith.constant 0 : index
    %c0_14 = arith.constant 0 : index
    %c0_15 = arith.constant 0 : index
    %c0_16 = arith.constant 0 : index
    %12 = vector.load %arg2[%c0_13, %c0_14, %c0_15, %c0_16] : memref<2x8x8x128xf32, #tpu.memory_space<vmem>>, vector<1x8x8x128xf32>
    %13 = vector.shape_cast %12 : vector<1x8x8x128xf32> to vector<8x8x128xf32>
    %c3_17 = arith.constant 3 : index
    %c8 = arith.constant 8 : index
    %c0_18 = arith.constant 0 : index
    %14 = vector.load %arg6[%c3_17, %c8, %c0_18] : memref<14x24x128xf32, #tpu.memory_space<vmem>>, vector<8x8x128xf32>
    tpu.vector_store %arg6[%c3_17, %c8, %c0_18], %13 {strides = array<i32>} : memref<14x24x128xf32, #tpu.memory_space<vmem>>, vector<8x8x128xf32>,
    %c0_19 = arith.constant 0 : index
    %c5 = arith.constant 5 : index
    %c0_20 = arith.constant 0 : index
    %15 = vector.load %arg6[%c0_19, %c5, %c0_20] : memref<14x24x128xf32, #tpu.memory_space<vmem>>, vector<14x8x128xf32>
    %c0_21 = arith.constant 0 : index
    %c0_22 = arith.constant 0 : index
    %c0_23 = arith.constant 0 : index
    %16 = vector.load %arg3[%c0_21, %c0_22, %c0_23] : memref<49x8x128xf32, #tpu.memory_space<vmem>>, vector<1x8x128xf32>
    %17 = vector.shape_cast %16 : vector<1x8x128xf32> to vector<8x128xf32>
    %18 = vector.extract_strided_slice %15 {offsets = [0, 0, 0], sizes = [8, 8, 128], strides = [1, 1, 1]} : vector<14x8x128xf32> to vector<8x8x128xf32>
    %19 = vector.shape_cast %17 : vector<8x128xf32> to vector<1x8x128xf32>
    %20 = vector.broadcast %19 : vector<1x8x128xf32> to vector<8x8x128xf32>
    %21 = arith.mulf %18, %20 : vector<8x8x128xf32>
    %22 = arith.addf %11, %21 : vector<8x8x128xf32>
    %c7 = arith.constant 7 : index
    %c0_24 = arith.constant 0 : index
    %c0_25 = arith.constant 0 : index
    %23 = vector.load %arg3[%c7, %c0_24, %c0_25] : memref<49x8x128xf32, #tpu.memory_space<vmem>>, vector<1x8x128xf32>
    %24 = vector.shape_cast %23 : vector<1x8x128xf32> to vector<8x128xf32>
    %25 = vector.extract_strided_slice %15 {offsets = [1, 0, 0], sizes = [8, 8, 128], strides = [1, 1, 1]} : vector<14x8x128xf32> to vector<8x8x128xf32>
    %26 = vector.shape_cast %24 : vector<8x128xf32> to vector<1x8x128xf32>
    %27 = vector.broadcast %26 : vector<1x8x128xf32> to vector<8x8x128xf32>
    %28 = arith.mulf %25, %27 : vector<8x8x128xf32>
    %29 = arith.addf %22, %28 : vector<8x8x128xf32>
    %c14 = arith.constant 14 : index
    %c0_26 = arith.constant 0 : index
    %c0_27 = arith.constant 0 : index
    %30 = vector.load %arg3[%c14, %c0_26, %c0_27] : memref<49x8x128xf32, #tpu.memory_space<vmem>>, vector<1x8x128xf32>
    %31 = vector.shape_cast %30 : vector<1x8x128xf32> to vector<8x128xf32>
    %32 = vector.extract_strided_slice %15 {offsets = [2, 0, 0], sizes = [8, 8, 128], strides = [1, 1, 1]} : vector<14x8x128xf32> to vector<8x8x128xf32>
    %33 = vector.shape_cast %31 : vector<8x128xf32> to vector<1x8x128xf32>
    %34 = vector.broadcast %33 : vector<1x8x128xf32> to vector<8x8x128xf32>
    %35 = arith.mulf %32, %34 : vector<8x8x128xf32>
    %36 = arith.addf %29, %35 : vector<8x8x128xf32>
    %c21 = arith.constant 21 : index
    %c0_28 = arith.constant 0 : index
    %c0_29 = arith.constant 0 : index
    %37 = vector.load %arg3[%c21, %c0_28, %c0_29] : memref<49x8x128xf32, #tpu.memory_space<vmem>>, vector<1x8x128xf32>
    %38 = vector.shape_cast %37 : vector<1x8x128xf32> to vector<8x128xf32>
    %39 = vector.extract_strided_slice %15 {offsets = [3, 0, 0], sizes = [8, 8, 128], strides = [1, 1, 1]} : vector<14x8x128xf32> to vector<8x8x128xf32>
    %40 = vector.shape_cast %38 : vector<8x128xf32> to vector<1x8x128xf32>
    %41 = vector.broadcast %40 : vector<1x8x128xf32> to vector<8x8x128xf32>
    %42 = arith.mulf %39, %41 : vector<8x8x128xf32>
    %43 = arith.addf %36, %42 : vector<8x8x128xf32>
    %c28 = arith.constant 28 : index
    %c0_30 = arith.constant 0 : index
    %c0_31 = arith.constant 0 : index
    %44 = vector.load %arg3[%c28, %c0_30, %c0_31] : memref<49x8x128xf32, #tpu.memory_space<vmem>>, vector<1x8x128xf32>
    %45 = vector.shape_cast %44 : vector<1x8x128xf32> to vector<8x128xf32>
    %46 = vector.extract_strided_slice %15 {offsets = [4, 0, 0], sizes = [8, 8, 128], strides = [1, 1, 1]} : vector<14x8x128xf32> to vector<8x8x128xf32>
    %47 = vector.shape_cast %45 : vector<8x128xf32> to vector<1x8x128xf32>
    %48 = vector.broadcast %47 : vector<1x8x128xf32> to vector<8x8x128xf32>
    %49 = arith.mulf %46, %48 : vector<8x8x128xf32>
    %50 = arith.addf %43, %49 : vector<8x8x128xf32>
    %c35 = arith.constant 35 : index
    %c0_32 = arith.constant 0 : index
    %c0_33 = arith.constant 0 : index
    %51 = vector.load %arg3[%c35, %c0_32, %c0_33] : memref<49x8x128xf32, #tpu.memory_space<vmem>>, vector<1x8x128xf32>
    %52 = vector.shape_cast %51 : vector<1x8x128xf32> to vector<8x128xf32>
    %53 = vector.extract_strided_slice %15 {offsets = [5, 0, 0], sizes = [8, 8, 128], strides = [1, 1, 1]} : vector<14x8x128xf32> to vector<8x8x128xf32>
    %54 = vector.shape_cast %52 : vector<8x128xf32> to vector<1x8x128xf32>
    %55 = vector.broadcast %54 : vector<1x8x128xf32> to vector<8x8x128xf32>
    %56 = arith.mulf %53, %55 : vector<8x8x128xf32>
    %57 = arith.addf %50, %56 : vector<8x8x128xf32>
    %c42 = arith.constant 42 : index
    %c0_34 = arith.constant 0 : index
    %c0_35 = arith.constant 0 : index
    %58 = vector.load %arg3[%c42, %c0_34, %c0_35] : memref<49x8x128xf32, #tpu.memory_space<vmem>>, vector<1x8x128xf32>
    %59 = vector.shape_cast %58 : vector<1x8x128xf32> to vector<8x128xf32>
    %60 = vector.extract_strided_slice %15 {offsets = [6, 0, 0], sizes = [8, 8, 128], strides = [1, 1, 1]} : vector<14x8x128xf32> to vector<8x8x128xf32>
    %61 = vector.shape_cast %59 : vector<8x128xf32> to vector<1x8x128xf32>
    %62 = vector.broadcast %61 : vector<1x8x128xf32> to vector<8x8x128xf32>
    %63 = arith.mulf %60, %62 : vector<8x8x128xf32>
    %64 = arith.addf %57, %63 : vector<8x8x128xf32>
    %c0_36 = arith.constant 0 : index
    %c6 = arith.constant 6 : index
    %c0_37 = arith.constant 0 : index
    %65 = vector.load %arg6[%c0_36, %c6, %c0_37] : memref<14x24x128xf32, #tpu.memory_space<vmem>>, vector<14x8x128xf32>
    %c1 = arith.constant 1 : index
    %c0_38 = arith.constant 0 : index
    %c0_39 = arith.constant 0 : index
    %66 = vector.load %arg3[%c1, %c0_38, %c0_39] : memref<49x8x128xf32, #tpu.memory_space<vmem>>, vector<1x8x128xf32>
    %67 = vector.shape_cast %66 : vector<1x8x128xf32> to vector<8x128xf32>
    %68 = vector.extract_strided_slice %65 {offsets = [0, 0, 0], sizes = [8, 8, 128], strides = [1, 1, 1]} : vector<14x8x128xf32> to vector<8x8x128xf32>
    %69 = vector.shape_cast %67 : vector<8x128xf32> to vector<1x8x128xf32>
    %70 = vector.broadcast %69 : vector<1x8x128xf32> to vector<8x8x128xf32>
    %71 = arith.mulf %68, %70 : vector<8x8x128xf32>
    %72 = arith.addf %64, %71 : vector<8x8x128xf32>
    %c8_40 = arith.constant 8 : index
    %c0_41 = arith.constant 0 : index
    %c0_42 = arith.constant 0 : index
    %73 = vector.load %arg3[%c8_40, %c0_41, %c0_42] : memref<49x8x128xf32, #tpu.memory_space<vmem>>, vector<1x8x128xf32>
    %74 = vector.shape_cast %73 : vector<1x8x128xf32> to vector<8x128xf32>
    %75 = vector.extract_strided_slice %65 {offsets = [1, 0, 0], sizes = [8, 8, 128], strides = [1, 1, 1]} : vector<14x8x128xf32> to vector<8x8x128xf32>
    %76 = vector.shape_cast %74 : vector<8x128xf32> to vector<1x8x128xf32>
    %77 = vector.broadcast %76 : vector<1x8x128xf32> to vector<8x8x128xf32>
    %78 = arith.mulf %75, %77 : vector<8x8x128xf32>
    %79 = arith.addf %72, %78 : vector<8x8x128xf32>
    %c15 = arith.constant 15 : index
    %c0_43 = arith.constant 0 : index
    %c0_44 = arith.constant 0 : index
    %80 = vector.load %arg3[%c15, %c0_43, %c0_44] : memref<49x8x128xf32, #tpu.memory_space<vmem>>, vector<1x8x128xf32>
    %81 = vector.shape_cast %80 : vector<1x8x128xf32> to vector<8x128xf32>
    %82 = vector.extract_strided_slice %65 {offsets = [2, 0, 0], sizes = [8, 8, 128], strides = [1, 1, 1]} : vector<14x8x128xf32> to vector<8x8x128xf32>
    %83 = vector.shape_cast %81 : vector<8x128xf32> to vector<1x8x128xf32>
    %84 = vector.broadcast %83 : vector<1x8x128xf32> to vector<8x8x128xf32>
    %85 = arith.mulf %82, %84 : vector<8x8x128xf32>
    %86 = arith.addf %79, %85 : vector<8x8x128xf32>
    %c22 = arith.constant 22 : index
    %c0_45 = arith.constant 0 : index
    %c0_46 = arith.constant 0 : index
    %87 = vector.load %arg3[%c22, %c0_45, %c0_46] : memref<49x8x128xf32, #tpu.memory_space<vmem>>, vector<1x8x128xf32>
    %88 = vector.shape_cast %87 : vector<1x8x128xf32> to vector<8x128xf32>
    %89 = vector.extract_strided_slice %65 {offsets = [3, 0, 0], sizes = [8, 8, 128], strides = [1, 1, 1]} : vector<14x8x128xf32> to vector<8x8x128xf32>
    %90 = vector.shape_cast %88 : vector<8x128xf32> to vector<1x8x128xf32>
    %91 = vector.broadcast %90 : vector<1x8x128xf32> to vector<8x8x128xf32>
    %92 = arith.mulf %89, %91 : vector<8x8x128xf32>
    %93 = arith.addf %86, %92 : vector<8x8x128xf32>
    %c29 = arith.constant 29 : index
    %c0_47 = arith.constant 0 : index
    %c0_48 = arith.constant 0 : index
    %94 = vector.load %arg3[%c29, %c0_47, %c0_48] : memref<49x8x128xf32, #tpu.memory_space<vmem>>, vector<1x8x128xf32>
    %95 = vector.shape_cast %94 : vector<1x8x128xf32> to vector<8x128xf32>
    %96 = vector.extract_strided_slice %65 {offsets = [4, 0, 0], sizes = [8, 8, 128], strides = [1, 1, 1]} : vector<14x8x128xf32> to vector<8x8x128xf32>
    %97 = vector.shape_cast %95 : vector<8x128xf32> to vector<1x8x128xf32>
    %98 = vector.broadcast %97 : vector<1x8x128xf32> to vector<8x8x128xf32>
    %99 = arith.mulf %96, %98 : vector<8x8x128xf32>
    %100 = arith.addf %93, %99 : vector<8x8x128xf32>
    %c36 = arith.constant 36 : index
    %c0_49 = arith.constant 0 : index
    %c0_50 = arith.constant 0 : index
    %101 = vector.load %arg3[%c36, %c0_49, %c0_50] : memref<49x8x128xf32, #tpu.memory_space<vmem>>, vector<1x8x128xf32>
    %102 = vector.shape_cast %101 : vector<1x8x128xf32> to vector<8x128xf32>
    %103 = vector.extract_strided_slice %65 {offsets = [5, 0, 0], sizes = [8, 8, 128], strides = [1, 1, 1]} : vector<14x8x128xf32> to vector<8x8x128xf32>
    %104 = vector.shape_cast %102 : vector<8x128xf32> to vector<1x8x128xf32>
    %105 = vector.broadcast %104 : vector<1x8x128xf32> to vector<8x8x128xf32>
    %106 = arith.mulf %103, %105 : vector<8x8x128xf32>
    %107 = arith.addf %100, %106 : vector<8x8x128xf32>
    %c43 = arith.constant 43 : index
    %c0_51 = arith.constant 0 : index
    %c0_52 = arith.constant 0 : index
    %108 = vector.load %arg3[%c43, %c0_51, %c0_52] : memref<49x8x128xf32, #tpu.memory_space<vmem>>, vector<1x8x128xf32>
    %109 = vector.shape_cast %108 : vector<1x8x128xf32> to vector<8x128xf32>
    %110 = vector.extract_strided_slice %65 {offsets = [6, 0, 0], sizes = [8, 8, 128], strides = [1, 1, 1]} : vector<14x8x128xf32> to vector<8x8x128xf32>
    %111 = vector.shape_cast %109 : vector<8x128xf32> to vector<1x8x128xf32>
    %112 = vector.broadcast %111 : vector<1x8x128xf32> to vector<8x8x128xf32>
    %113 = arith.mulf %110, %112 : vector<8x8x128xf32>
    %114 = arith.addf %107, %113 : vector<8x8x128xf32>
    %c0_53 = arith.constant 0 : index
    %c7_54 = arith.constant 7 : index
    %c0_55 = arith.constant 0 : index
    %115 = vector.load %arg6[%c0_53, %c7_54, %c0_55] : memref<14x24x128xf32, #tpu.memory_space<vmem>>, vector<14x8x128xf32>
    %c2 = arith.constant 2 : index
    %c0_56 = arith.constant 0 : index
    %c0_57 = arith.constant 0 : index
    %116 = vector.load %arg3[%c2, %c0_56, %c0_57] : memref<49x8x128xf32, #tpu.memory_space<vmem>>, vector<1x8x128xf32>
    %117 = vector.shape_cast %116 : vector<1x8x128xf32> to vector<8x128xf32>
    %118 = vector.extract_strided_slice %115 {offsets = [0, 0, 0], sizes = [8, 8, 128], strides = [1, 1, 1]} : vector<14x8x128xf32> to vector<8x8x128xf32>
    %119 = vector.shape_cast %117 : vector<8x128xf32> to vector<1x8x128xf32>
    %120 = vector.broadcast %119 : vector<1x8x128xf32> to vector<8x8x128xf32>
    %121 = arith.mulf %118, %120 : vector<8x8x128xf32>
    %122 = arith.addf %114, %121 : vector<8x8x128xf32>
    %c9 = arith.constant 9 : index
    %c0_58 = arith.constant 0 : index
    %c0_59 = arith.constant 0 : index
    %123 = vector.load %arg3[%c9, %c0_58, %c0_59] : memref<49x8x128xf32, #tpu.memory_space<vmem>>, vector<1x8x128xf32>
    %124 = vector.shape_cast %123 : vector<1x8x128xf32> to vector<8x128xf32>
    %125 = vector.extract_strided_slice %115 {offsets = [1, 0, 0], sizes = [8, 8, 128], strides = [1, 1, 1]} : vector<14x8x128xf32> to vector<8x8x128xf32>
    %126 = vector.shape_cast %124 : vector<8x128xf32> to vector<1x8x128xf32>
    %127 = vector.broadcast %126 : vector<1x8x128xf32> to vector<8x8x128xf32>
    %128 = arith.mulf %125, %127 : vector<8x8x128xf32>
    %129 = arith.addf %122, %128 : vector<8x8x128xf32>
    %c16_60 = arith.constant 16 : index
    %c0_61 = arith.constant 0 : index
    %c0_62 = arith.constant 0 : index
    %130 = vector.load %arg3[%c16_60, %c0_61, %c0_62] : memref<49x8x128xf32, #tpu.memory_space<vmem>>, vector<1x8x128xf32>
    %131 = vector.shape_cast %130 : vector<1x8x128xf32> to vector<8x128xf32>
    %132 = vector.extract_strided_slice %115 {offsets = [2, 0, 0], sizes = [8, 8, 128], strides = [1, 1, 1]} : vector<14x8x128xf32> to vector<8x8x128xf32>
    %133 = vector.shape_cast %131 : vector<8x128xf32> to vector<1x8x128xf32>
    %134 = vector.broadcast %133 : vector<1x8x128xf32> to vector<8x8x128xf32>
    %135 = arith.mulf %132, %134 : vector<8x8x128xf32>
    %136 = arith.addf %129, %135 : vector<8x8x128xf32>
    %c23 = arith.constant 23 : index
    %c0_63 = arith.constant 0 : index
    %c0_64 = arith.constant 0 : index
    %137 = vector.load %arg3[%c23, %c0_63, %c0_64] : memref<49x8x128xf32, #tpu.memory_space<vmem>>, vector<1x8x128xf32>
    %138 = vector.shape_cast %137 : vector<1x8x128xf32> to vector<8x128xf32>
    %139 = vector.extract_strided_slice %115 {offsets = [3, 0, 0], sizes = [8, 8, 128], strides = [1, 1, 1]} : vector<14x8x128xf32> to vector<8x8x128xf32>
    %140 = vector.shape_cast %138 : vector<8x128xf32> to vector<1x8x128xf32>
    %141 = vector.broadcast %140 : vector<1x8x128xf32> to vector<8x8x128xf32>
    %142 = arith.mulf %139, %141 : vector<8x8x128xf32>
    %143 = arith.addf %136, %142 : vector<8x8x128xf32>
    %c30 = arith.constant 30 : index
    %c0_65 = arith.constant 0 : index
    %c0_66 = arith.constant 0 : index
    %144 = vector.load %arg3[%c30, %c0_65, %c0_66] : memref<49x8x128xf32, #tpu.memory_space<vmem>>, vector<1x8x128xf32>
    %145 = vector.shape_cast %144 : vector<1x8x128xf32> to vector<8x128xf32>
    %146 = vector.extract_strided_slice %115 {offsets = [4, 0, 0], sizes = [8, 8, 128], strides = [1, 1, 1]} : vector<14x8x128xf32> to vector<8x8x128xf32>
    %147 = vector.shape_cast %145 : vector<8x128xf32> to vector<1x8x128xf32>
    %148 = vector.broadcast %147 : vector<1x8x128xf32> to vector<8x8x128xf32>
    %149 = arith.mulf %146, %148 : vector<8x8x128xf32>
    %150 = arith.addf %143, %149 : vector<8x8x128xf32>
    %c37 = arith.constant 37 : index
    %c0_67 = arith.constant 0 : index
    %c0_68 = arith.constant 0 : index
    %151 = vector.load %arg3[%c37, %c0_67, %c0_68] : memref<49x8x128xf32, #tpu.memory_space<vmem>>, vector<1x8x128xf32>
    %152 = vector.shape_cast %151 : vector<1x8x128xf32> to vector<8x128xf32>
    %153 = vector.extract_strided_slice %115 {offsets = [5, 0, 0], sizes = [8, 8, 128], strides = [1, 1, 1]} : vector<14x8x128xf32> to vector<8x8x128xf32>
    %154 = vector.shape_cast %152 : vector<8x128xf32> to vector<1x8x128xf32>
    %155 = vector.broadcast %154 : vector<1x8x128xf32> to vector<8x8x128xf32>
    %156 = arith.mulf %153, %155 : vector<8x8x128xf32>
    %157 = arith.addf %150, %156 : vector<8x8x128xf32>
    %c44 = arith.constant 44 : index
    %c0_69 = arith.constant 0 : index
    %c0_70 = arith.constant 0 : index
    %158 = vector.load %arg3[%c44, %c0_69, %c0_70] : memref<49x8x128xf32, #tpu.memory_space<vmem>>, vector<1x8x128xf32>
    %159 = vector.shape_cast %158 : vector<1x8x128xf32> to vector<8x128xf32>
    %160 = vector.extract_strided_slice %115 {offsets = [6, 0, 0], sizes = [8, 8, 128], strides = [1, 1, 1]} : vector<14x8x128xf32> to vector<8x8x128xf32>
    %161 = vector.shape_cast %159 : vector<8x128xf32> to vector<1x8x128xf32>
    %162 = vector.broadcast %161 : vector<1x8x128xf32> to vector<8x8x128xf32>
    %163 = arith.mulf %160, %162 : vector<8x8x128xf32>
    %164 = arith.addf %157, %163 : vector<8x8x128xf32>
    %c0_71 = arith.constant 0 : index
    %c8_72 = arith.constant 8 : index
    %c0_73 = arith.constant 0 : index
    %165 = vector.load %arg6[%c0_71, %c8_72, %c0_73] : memref<14x24x128xf32, #tpu.memory_space<vmem>>, vector<14x8x128xf32>
    %c3_74 = arith.constant 3 : index
    %c0_75 = arith.constant 0 : index
    %c0_76 = arith.constant 0 : index
    %166 = vector.load %arg3[%c3_74, %c0_75, %c0_76] : memref<49x8x128xf32, #tpu.memory_space<vmem>>, vector<1x8x128xf32>
    %167 = vector.shape_cast %166 : vector<1x8x128xf32> to vector<8x128xf32>
    %168 = vector.extract_strided_slice %165 {offsets = [0, 0, 0], sizes = [8, 8, 128], strides = [1, 1, 1]} : vector<14x8x128xf32> to vector<8x8x128xf32>
    %169 = vector.shape_cast %167 : vector<8x128xf32> to vector<1x8x128xf32>
    %170 = vector.broadcast %169 : vector<1x8x128xf32> to vector<8x8x128xf32>
    %171 = arith.mulf %168, %170 : vector<8x8x128xf32>
    %172 = arith.addf %164, %171 : vector<8x8x128xf32>
    %c10 = arith.constant 10 : index
    %c0_77 = arith.constant 0 : index
    %c0_78 = arith.constant 0 : index
    %173 = vector.load %arg3[%c10, %c0_77, %c0_78] : memref<49x8x128xf32, #tpu.memory_space<vmem>>, vector<1x8x128xf32>
    %174 = vector.shape_cast %173 : vector<1x8x128xf32> to vector<8x128xf32>
    %175 = vector.extract_strided_slice %165 {offsets = [1, 0, 0], sizes = [8, 8, 128], strides = [1, 1, 1]} : vector<14x8x128xf32> to vector<8x8x128xf32>
    %176 = vector.shape_cast %174 : vector<8x128xf32> to vector<1x8x128xf32>
    %177 = vector.broadcast %176 : vector<1x8x128xf32> to vector<8x8x128xf32>
    %178 = arith.mulf %175, %177 : vector<8x8x128xf32>
    %179 = arith.addf %172, %178 : vector<8x8x128xf32>
    %c17 = arith.constant 17 : index
    %c0_79 = arith.constant 0 : index
    %c0_80 = arith.constant 0 : index
    %180 = vector.load %arg3[%c17, %c0_79, %c0_80] : memref<49x8x128xf32, #tpu.memory_space<vmem>>, vector<1x8x128xf32>
    %181 = vector.shape_cast %180 : vector<1x8x128xf32> to vector<8x128xf32>
    %182 = vector.extract_strided_slice %165 {offsets = [2, 0, 0], sizes = [8, 8, 128], strides = [1, 1, 1]} : vector<14x8x128xf32> to vector<8x8x128xf32>
    %183 = vector.shape_cast %181 : vector<8x128xf32> to vector<1x8x128xf32>
    %184 = vector.broadcast %183 : vector<1x8x128xf32> to vector<8x8x128xf32>
    %185 = arith.mulf %182, %184 : vector<8x8x128xf32>
    %186 = arith.addf %179, %185 : vector<8x8x128xf32>
    %c24 = arith.constant 24 : index
    %c0_81 = arith.constant 0 : index
    %c0_82 = arith.constant 0 : index
    %187 = vector.load %arg3[%c24, %c0_81, %c0_82] : memref<49x8x128xf32, #tpu.memory_space<vmem>>, vector<1x8x128xf32>
    %188 = vector.shape_cast %187 : vector<1x8x128xf32> to vector<8x128xf32>
    %189 = vector.extract_strided_slice %165 {offsets = [3, 0, 0], sizes = [8, 8, 128], strides = [1, 1, 1]} : vector<14x8x128xf32> to vector<8x8x128xf32>
    %190 = vector.shape_cast %188 : vector<8x128xf32> to vector<1x8x128xf32>
    %191 = vector.broadcast %190 : vector<1x8x128xf32> to vector<8x8x128xf32>
    %192 = arith.mulf %189, %191 : vector<8x8x128xf32>
    %193 = arith.addf %186, %192 : vector<8x8x128xf32>
    %c31 = arith.constant 31 : index
    %c0_83 = arith.constant 0 : index
    %c0_84 = arith.constant 0 : index
    %194 = vector.load %arg3[%c31, %c0_83, %c0_84] : memref<49x8x128xf32, #tpu.memory_space<vmem>>, vector<1x8x128xf32>
    %195 = vector.shape_cast %194 : vector<1x8x128xf32> to vector<8x128xf32>
    %196 = vector.extract_strided_slice %165 {offsets = [4, 0, 0], sizes = [8, 8, 128], strides = [1, 1, 1]} : vector<14x8x128xf32> to vector<8x8x128xf32>
    %197 = vector.shape_cast %195 : vector<8x128xf32> to vector<1x8x128xf32>
    %198 = vector.broadcast %197 : vector<1x8x128xf32> to vector<8x8x128xf32>
    %199 = arith.mulf %196, %198 : vector<8x8x128xf32>
    %200 = arith.addf %193, %199 : vector<8x8x128xf32>
    %c38 = arith.constant 38 : index
    %c0_85 = arith.constant 0 : index
    %c0_86 = arith.constant 0 : index
    %201 = vector.load %arg3[%c38, %c0_85, %c0_86] : memref<49x8x128xf32, #tpu.memory_space<vmem>>, vector<1x8x128xf32>
    %202 = vector.shape_cast %201 : vector<1x8x128xf32> to vector<8x128xf32>
    %203 = vector.extract_strided_slice %165 {offsets = [5, 0, 0], sizes = [8, 8, 128], strides = [1, 1, 1]} : vector<14x8x128xf32> to vector<8x8x128xf32>
    %204 = vector.shape_cast %202 : vector<8x128xf32> to vector<1x8x128xf32>
    %205 = vector.broadcast %204 : vector<1x8x128xf32> to vector<8x8x128xf32>
    %206 = arith.mulf %203, %205 : vector<8x8x128xf32>
    %207 = arith.addf %200, %206 : vector<8x8x128xf32>
    %c45 = arith.constant 45 : index
    %c0_87 = arith.constant 0 : index
    %c0_88 = arith.constant 0 : index
    %208 = vector.load %arg3[%c45, %c0_87, %c0_88] : memref<49x8x128xf32, #tpu.memory_space<vmem>>, vector<1x8x128xf32>
    %209 = vector.shape_cast %208 : vector<1x8x128xf32> to vector<8x128xf32>
    %210 = vector.extract_strided_slice %165 {offsets = [6, 0, 0], sizes = [8, 8, 128], strides = [1, 1, 1]} : vector<14x8x128xf32> to vector<8x8x128xf32>
    %211 = vector.shape_cast %209 : vector<8x128xf32> to vector<1x8x128xf32>
    %212 = vector.broadcast %211 : vector<1x8x128xf32> to vector<8x8x128xf32>
    %213 = arith.mulf %210, %212 : vector<8x8x128xf32>
    %214 = arith.addf %207, %213 : vector<8x8x128xf32>
    %c0_89 = arith.constant 0 : index
    %c9_90 = arith.constant 9 : index
    %c0_91 = arith.constant 0 : index
    %215 = vector.load %arg6[%c0_89, %c9_90, %c0_91] : memref<14x24x128xf32, #tpu.memory_space<vmem>>, vector<14x8x128xf32>
    %c4 = arith.constant 4 : index
    %c0_92 = arith.constant 0 : index
    %c0_93 = arith.constant 0 : index
    %216 = vector.load %arg3[%c4, %c0_92, %c0_93] : memref<49x8x128xf32, #tpu.memory_space<vmem>>, vector<1x8x128xf32>
    %217 = vector.shape_cast %216 : vector<1x8x128xf32> to vector<8x128xf32>
    %218 = vector.extract_strided_slice %215 {offsets = [0, 0, 0], sizes = [8, 8, 128], strides = [1, 1, 1]} : vector<14x8x128xf32> to vector<8x8x128xf32>
    %219 = vector.shape_cast %217 : vector<8x128xf32> to vector<1x8x128xf32>
    %220 = vector.broadcast %219 : vector<1x8x128xf32> to vector<8x8x128xf32>
    %221 = arith.mulf %218, %220 : vector<8x8x128xf32>
    %222 = arith.addf %214, %221 : vector<8x8x128xf32>
    %c11_94 = arith.constant 11 : index
    %c0_95 = arith.constant 0 : index
    %c0_96 = arith.constant 0 : index
    %223 = vector.load %arg3[%c11_94, %c0_95, %c0_96] : memref<49x8x128xf32, #tpu.memory_space<vmem>>, vector<1x8x128xf32>
    %224 = vector.shape_cast %223 : vector<1x8x128xf32> to vector<8x128xf32>
    %225 = vector.extract_strided_slice %215 {offsets = [1, 0, 0], sizes = [8, 8, 128], strides = [1, 1, 1]} : vector<14x8x128xf32> to vector<8x8x128xf32>
    %226 = vector.shape_cast %224 : vector<8x128xf32> to vector<1x8x128xf32>
    %227 = vector.broadcast %226 : vector<1x8x128xf32> to vector<8x8x128xf32>
    %228 = arith.mulf %225, %227 : vector<8x8x128xf32>
    %229 = arith.addf %222, %228 : vector<8x8x128xf32>
    %c18 = arith.constant 18 : index
    %c0_97 = arith.constant 0 : index
    %c0_98 = arith.constant 0 : index
    %230 = vector.load %arg3[%c18, %c0_97, %c0_98] : memref<49x8x128xf32, #tpu.memory_space<vmem>>, vector<1x8x128xf32>
    %231 = vector.shape_cast %230 : vector<1x8x128xf32> to vector<8x128xf32>
    %232 = vector.extract_strided_slice %215 {offsets = [2, 0, 0], sizes = [8, 8, 128], strides = [1, 1, 1]} : vector<14x8x128xf32> to vector<8x8x128xf32>
    %233 = vector.shape_cast %231 : vector<8x128xf32> to vector<1x8x128xf32>
    %234 = vector.broadcast %233 : vector<1x8x128xf32> to vector<8x8x128xf32>
    %235 = arith.mulf %232, %234 : vector<8x8x128xf32>
    %236 = arith.addf %229, %235 : vector<8x8x128xf32>
    %c25 = arith.constant 25 : index
    %c0_99 = arith.constant 0 : index
    %c0_100 = arith.constant 0 : index
    %237 = vector.load %arg3[%c25, %c0_99, %c0_100] : memref<49x8x128xf32, #tpu.memory_space<vmem>>, vector<1x8x128xf32>
    %238 = vector.shape_cast %237 : vector<1x8x128xf32> to vector<8x128xf32>
    %239 = vector.extract_strided_slice %215 {offsets = [3, 0, 0], sizes = [8, 8, 128], strides = [1, 1, 1]} : vector<14x8x128xf32> to vector<8x8x128xf32>
    %240 = vector.shape_cast %238 : vector<8x128xf32> to vector<1x8x128xf32>
    %241 = vector.broadcast %240 : vector<1x8x128xf32> to vector<8x8x128xf32>
    %242 = arith.mulf %239, %241 : vector<8x8x128xf32>
    %243 = arith.addf %236, %242 : vector<8x8x128xf32>
    %c32 = arith.constant 32 : index
    %c0_101 = arith.constant 0 : index
    %c0_102 = arith.constant 0 : index
    %244 = vector.load %arg3[%c32, %c0_101, %c0_102] : memref<49x8x128xf32, #tpu.memory_space<vmem>>, vector<1x8x128xf32>
    %245 = vector.shape_cast %244 : vector<1x8x128xf32> to vector<8x128xf32>
    %246 = vector.extract_strided_slice %215 {offsets = [4, 0, 0], sizes = [8, 8, 128], strides = [1, 1, 1]} : vector<14x8x128xf32> to vector<8x8x128xf32>
    %247 = vector.shape_cast %245 : vector<8x128xf32> to vector<1x8x128xf32>
    %248 = vector.broadcast %247 : vector<1x8x128xf32> to vector<8x8x128xf32>
    %249 = arith.mulf %246, %248 : vector<8x8x128xf32>
    %250 = arith.addf %243, %249 : vector<8x8x128xf32>
    %c39 = arith.constant 39 : index
    %c0_103 = arith.constant 0 : index
    %c0_104 = arith.constant 0 : index
    %251 = vector.load %arg3[%c39, %c0_103, %c0_104] : memref<49x8x128xf32, #tpu.memory_space<vmem>>, vector<1x8x128xf32>
    %252 = vector.shape_cast %251 : vector<1x8x128xf32> to vector<8x128xf32>
    %253 = vector.extract_strided_slice %215 {offsets = [5, 0, 0], sizes = [8, 8, 128], strides = [1, 1, 1]} : vector<14x8x128xf32> to vector<8x8x128xf32>
    %254 = vector.shape_cast %252 : vector<8x128xf32> to vector<1x8x128xf32>
    %255 = vector.broadcast %254 : vector<1x8x128xf32> to vector<8x8x128xf32>
    %256 = arith.mulf %253, %255 : vector<8x8x128xf32>
    %257 = arith.addf %250, %256 : vector<8x8x128xf32>
    %c46 = arith.constant 46 : index
    %c0_105 = arith.constant 0 : index
    %c0_106 = arith.constant 0 : index
    %258 = vector.load %arg3[%c46, %c0_105, %c0_106] : memref<49x8x128xf32, #tpu.memory_space<vmem>>, vector<1x8x128xf32>
    %259 = vector.shape_cast %258 : vector<1x8x128xf32> to vector<8x128xf32>
    %260 = vector.extract_strided_slice %215 {offsets = [6, 0, 0], sizes = [8, 8, 128], strides = [1, 1, 1]} : vector<14x8x128xf32> to vector<8x8x128xf32>
    %261 = vector.shape_cast %259 : vector<8x128xf32> to vector<1x8x128xf32>
    %262 = vector.broadcast %261 : vector<1x8x128xf32> to vector<8x8x128xf32>
    %263 = arith.mulf %260, %262 : vector<8x8x128xf32>
    %264 = arith.addf %257, %263 : vector<8x8x128xf32>
    %c0_107 = arith.constant 0 : index
    %c10_108 = arith.constant 10 : index
    %c0_109 = arith.constant 0 : index
    %265 = vector.load %arg6[%c0_107, %c10_108, %c0_109] : memref<14x24x128xf32, #tpu.memory_space<vmem>>, vector<14x8x128xf32>
    %c5_110 = arith.constant 5 : index
    %c0_111 = arith.constant 0 : index
    %c0_112 = arith.constant 0 : index
    %266 = vector.load %arg3[%c5_110, %c0_111, %c0_112] : memref<49x8x128xf32, #tpu.memory_space<vmem>>, vector<1x8x128xf32>
    %267 = vector.shape_cast %266 : vector<1x8x128xf32> to vector<8x128xf32>
    %268 = vector.extract_strided_slice %265 {offsets = [0, 0, 0], sizes = [8, 8, 128], strides = [1, 1, 1]} : vector<14x8x128xf32> to vector<8x8x128xf32>
    %269 = vector.shape_cast %267 : vector<8x128xf32> to vector<1x8x128xf32>
    %270 = vector.broadcast %269 : vector<1x8x128xf32> to vector<8x8x128xf32>
    %271 = arith.mulf %268, %270 : vector<8x8x128xf32>
    %272 = arith.addf %264, %271 : vector<8x8x128xf32>
    %c12 = arith.constant 12 : index
    %c0_113 = arith.constant 0 : index
    %c0_114 = arith.constant 0 : index
    %273 = vector.load %arg3[%c12, %c0_113, %c0_114] : memref<49x8x128xf32, #tpu.memory_space<vmem>>, vector<1x8x128xf32>
    %274 = vector.shape_cast %273 : vector<1x8x128xf32> to vector<8x128xf32>
    %275 = vector.extract_strided_slice %265 {offsets = [1, 0, 0], sizes = [8, 8, 128], strides = [1, 1, 1]} : vector<14x8x128xf32> to vector<8x8x128xf32>
    %276 = vector.shape_cast %274 : vector<8x128xf32> to vector<1x8x128xf32>
    %277 = vector.broadcast %276 : vector<1x8x128xf32> to vector<8x8x128xf32>
    %278 = arith.mulf %275, %277 : vector<8x8x128xf32>
    %279 = arith.addf %272, %278 : vector<8x8x128xf32>
    %c19 = arith.constant 19 : index
    %c0_115 = arith.constant 0 : index
    %c0_116 = arith.constant 0 : index
    %280 = vector.load %arg3[%c19, %c0_115, %c0_116] : memref<49x8x128xf32, #tpu.memory_space<vmem>>, vector<1x8x128xf32>
    %281 = vector.shape_cast %280 : vector<1x8x128xf32> to vector<8x128xf32>
    %282 = vector.extract_strided_slice %265 {offsets = [2, 0, 0], sizes = [8, 8, 128], strides = [1, 1, 1]} : vector<14x8x128xf32> to vector<8x8x128xf32>
    %283 = vector.shape_cast %281 : vector<8x128xf32> to vector<1x8x128xf32>
    %284 = vector.broadcast %283 : vector<1x8x128xf32> to vector<8x8x128xf32>
    %285 = arith.mulf %282, %284 : vector<8x8x128xf32>
    %286 = arith.addf %279, %285 : vector<8x8x128xf32>
    %c26 = arith.constant 26 : index
    %c0_117 = arith.constant 0 : index
    %c0_118 = arith.constant 0 : index
    %287 = vector.load %arg3[%c26, %c0_117, %c0_118] : memref<49x8x128xf32, #tpu.memory_space<vmem>>, vector<1x8x128xf32>
    %288 = vector.shape_cast %287 : vector<1x8x128xf32> to vector<8x128xf32>
    %289 = vector.extract_strided_slice %265 {offsets = [3, 0, 0], sizes = [8, 8, 128], strides = [1, 1, 1]} : vector<14x8x128xf32> to vector<8x8x128xf32>
    %290 = vector.shape_cast %288 : vector<8x128xf32> to vector<1x8x128xf32>
    %291 = vector.broadcast %290 : vector<1x8x128xf32> to vector<8x8x128xf32>
    %292 = arith.mulf %289, %291 : vector<8x8x128xf32>
    %293 = arith.addf %286, %292 : vector<8x8x128xf32>
    %c33 = arith.constant 33 : index
    %c0_119 = arith.constant 0 : index
    %c0_120 = arith.constant 0 : index
    %294 = vector.load %arg3[%c33, %c0_119, %c0_120] : memref<49x8x128xf32, #tpu.memory_space<vmem>>, vector<1x8x128xf32>
    %295 = vector.shape_cast %294 : vector<1x8x128xf32> to vector<8x128xf32>
    %296 = vector.extract_strided_slice %265 {offsets = [4, 0, 0], sizes = [8, 8, 128], strides = [1, 1, 1]} : vector<14x8x128xf32> to vector<8x8x128xf32>
    %297 = vector.shape_cast %295 : vector<8x128xf32> to vector<1x8x128xf32>
    %298 = vector.broadcast %297 : vector<1x8x128xf32> to vector<8x8x128xf32>
    %299 = arith.mulf %296, %298 : vector<8x8x128xf32>
    %300 = arith.addf %293, %299 : vector<8x8x128xf32>
    %c40 = arith.constant 40 : index
    %c0_121 = arith.constant 0 : index
    %c0_122 = arith.constant 0 : index
    %301 = vector.load %arg3[%c40, %c0_121, %c0_122] : memref<49x8x128xf32, #tpu.memory_space<vmem>>, vector<1x8x128xf32>
    %302 = vector.shape_cast %301 : vector<1x8x128xf32> to vector<8x128xf32>
    %303 = vector.extract_strided_slice %265 {offsets = [5, 0, 0], sizes = [8, 8, 128], strides = [1, 1, 1]} : vector<14x8x128xf32> to vector<8x8x128xf32>
    %304 = vector.shape_cast %302 : vector<8x128xf32> to vector<1x8x128xf32>
    %305 = vector.broadcast %304 : vector<1x8x128xf32> to vector<8x8x128xf32>
    %306 = arith.mulf %303, %305 : vector<8x8x128xf32>
    %307 = arith.addf %300, %306 : vector<8x8x128xf32>
    %c47 = arith.constant 47 : index
    %c0_123 = arith.constant 0 : index
    %c0_124 = arith.constant 0 : index
    %308 = vector.load %arg3[%c47, %c0_123, %c0_124] : memref<49x8x128xf32, #tpu.memory_space<vmem>>, vector<1x8x128xf32>
    %309 = vector.shape_cast %308 : vector<1x8x128xf32> to vector<8x128xf32>
    %310 = vector.extract_strided_slice %265 {offsets = [6, 0, 0], sizes = [8, 8, 128], strides = [1, 1, 1]} : vector<14x8x128xf32> to vector<8x8x128xf32>
    %311 = vector.shape_cast %309 : vector<8x128xf32> to vector<1x8x128xf32>
    %312 = vector.broadcast %311 : vector<1x8x128xf32> to vector<8x8x128xf32>
    %313 = arith.mulf %310, %312 : vector<8x8x128xf32>
    %314 = arith.addf %307, %313 : vector<8x8x128xf32>
    %c0_125 = arith.constant 0 : index
    %c11_126 = arith.constant 11 : index
    %c0_127 = arith.constant 0 : index
    %315 = vector.load %arg6[%c0_125, %c11_126, %c0_127] : memref<14x24x128xf32, #tpu.memory_space<vmem>>, vector<14x8x128xf32>
    %c6_128 = arith.constant 6 : index
    %c0_129 = arith.constant 0 : index
    %c0_130 = arith.constant 0 : index
    %316 = vector.load %arg3[%c6_128, %c0_129, %c0_130] : memref<49x8x128xf32, #tpu.memory_space<vmem>>, vector<1x8x128xf32>
    %317 = vector.shape_cast %316 : vector<1x8x128xf32> to vector<8x128xf32>
    %318 = vector.extract_strided_slice %315 {offsets = [0, 0, 0], sizes = [8, 8, 128], strides = [1, 1, 1]} : vector<14x8x128xf32> to vector<8x8x128xf32>
    %319 = vector.shape_cast %317 : vector<8x128xf32> to vector<1x8x128xf32>
    %320 = vector.broadcast %319 : vector<1x8x128xf32> to vector<8x8x128xf32>
    %321 = arith.mulf %318, %320 : vector<8x8x128xf32>
    %322 = arith.addf %314, %321 : vector<8x8x128xf32>
    %c13 = arith.constant 13 : index
    %c0_131 = arith.constant 0 : index
    %c0_132 = arith.constant 0 : index
    %323 = vector.load %arg3[%c13, %c0_131, %c0_132] : memref<49x8x128xf32, #tpu.memory_space<vmem>>, vector<1x8x128xf32>
    %324 = vector.shape_cast %323 : vector<1x8x128xf32> to vector<8x128xf32>
    %325 = vector.extract_strided_slice %315 {offsets = [1, 0, 0], sizes = [8, 8, 128], strides = [1, 1, 1]} : vector<14x8x128xf32> to vector<8x8x128xf32>
    %326 = vector.shape_cast %324 : vector<8x128xf32> to vector<1x8x128xf32>
    %327 = vector.broadcast %326 : vector<1x8x128xf32> to vector<8x8x128xf32>
    %328 = arith.mulf %325, %327 : vector<8x8x128xf32>
    %329 = arith.addf %322, %328 : vector<8x8x128xf32>
    %c20 = arith.constant 20 : index
    %c0_133 = arith.constant 0 : index
    %c0_134 = arith.constant 0 : index
    %330 = vector.load %arg3[%c20, %c0_133, %c0_134] : memref<49x8x128xf32, #tpu.memory_space<vmem>>, vector<1x8x128xf32>
    %331 = vector.shape_cast %330 : vector<1x8x128xf32> to vector<8x128xf32>
    %332 = vector.extract_strided_slice %315 {offsets = [2, 0, 0], sizes = [8, 8, 128], strides = [1, 1, 1]} : vector<14x8x128xf32> to vector<8x8x128xf32>
    %333 = vector.shape_cast %331 : vector<8x128xf32> to vector<1x8x128xf32>
    %334 = vector.broadcast %333 : vector<1x8x128xf32> to vector<8x8x128xf32>
    %335 = arith.mulf %332, %334 : vector<8x8x128xf32>
    %336 = arith.addf %329, %335 : vector<8x8x128xf32>
    %c27 = arith.constant 27 : index
    %c0_135 = arith.constant 0 : index
    %c0_136 = arith.constant 0 : index
    %337 = vector.load %arg3[%c27, %c0_135, %c0_136] : memref<49x8x128xf32, #tpu.memory_space<vmem>>, vector<1x8x128xf32>
    %338 = vector.shape_cast %337 : vector<1x8x128xf32> to vector<8x128xf32>
    %339 = vector.extract_strided_slice %315 {offsets = [3, 0, 0], sizes = [8, 8, 128], strides = [1, 1, 1]} : vector<14x8x128xf32> to vector<8x8x128xf32>
    %340 = vector.shape_cast %338 : vector<8x128xf32> to vector<1x8x128xf32>
    %341 = vector.broadcast %340 : vector<1x8x128xf32> to vector<8x8x128xf32>
    %342 = arith.mulf %339, %341 : vector<8x8x128xf32>
    %343 = arith.addf %336, %342 : vector<8x8x128xf32>
    %c34 = arith.constant 34 : index
    %c0_137 = arith.constant 0 : index
    %c0_138 = arith.constant 0 : index
    %344 = vector.load %arg3[%c34, %c0_137, %c0_138] : memref<49x8x128xf32, #tpu.memory_space<vmem>>, vector<1x8x128xf32>
    %345 = vector.shape_cast %344 : vector<1x8x128xf32> to vector<8x128xf32>
    %346 = vector.extract_strided_slice %315 {offsets = [4, 0, 0], sizes = [8, 8, 128], strides = [1, 1, 1]} : vector<14x8x128xf32> to vector<8x8x128xf32>
    %347 = vector.shape_cast %345 : vector<8x128xf32> to vector<1x8x128xf32>
    %348 = vector.broadcast %347 : vector<1x8x128xf32> to vector<8x8x128xf32>
    %349 = arith.mulf %346, %348 : vector<8x8x128xf32>
    %350 = arith.addf %343, %349 : vector<8x8x128xf32>
    %c41 = arith.constant 41 : index
    %c0_139 = arith.constant 0 : index
    %c0_140 = arith.constant 0 : index
    %351 = vector.load %arg3[%c41, %c0_139, %c0_140] : memref<49x8x128xf32, #tpu.memory_space<vmem>>, vector<1x8x128xf32>
    %352 = vector.shape_cast %351 : vector<1x8x128xf32> to vector<8x128xf32>
    %353 = vector.extract_strided_slice %315 {offsets = [5, 0, 0], sizes = [8, 8, 128], strides = [1, 1, 1]} : vector<14x8x128xf32> to vector<8x8x128xf32>
    %354 = vector.shape_cast %352 : vector<8x128xf32> to vector<1x8x128xf32>
    %355 = vector.broadcast %354 : vector<1x8x128xf32> to vector<8x8x128xf32>
    %356 = arith.mulf %353, %355 : vector<8x8x128xf32>
    %357 = arith.addf %350, %356 : vector<8x8x128xf32>
    %c48 = arith.constant 48 : index
    %c0_141 = arith.constant 0 : index
    %c0_142 = arith.constant 0 : index
    %358 = vector.load %arg3[%c48, %c0_141, %c0_142] : memref<49x8x128xf32, #tpu.memory_space<vmem>>, vector<1x8x128xf32>
    %359 = vector.shape_cast %358 : vector<1x8x128xf32> to vector<8x128xf32>
    %360 = vector.extract_strided_slice %315 {offsets = [6, 0, 0], sizes = [8, 8, 128], strides = [1, 1, 1]} : vector<14x8x128xf32> to vector<8x8x128xf32>
    %361 = vector.shape_cast %359 : vector<8x128xf32> to vector<1x8x128xf32>
    %362 = vector.broadcast %361 : vector<1x8x128xf32> to vector<8x8x128xf32>
    %363 = arith.mulf %360, %362 : vector<8x8x128xf32>
    %364 = arith.addf %357, %363 : vector<8x8x128xf32>
    %c0_143 = arith.constant 0 : index
    %c0_144 = arith.constant 0 : index
    %c0_145 = arith.constant 0 : index
    %c0_146 = arith.constant 0 : index
    %365 = vector.load %arg5[%c0_143, %c0_144, %c0_145, %c0_146] : memref<2x8x8x128xf32, #tpu.memory_space<vmem>>, vector<1x8x8x128xf32>
    %366 = vector.shape_cast %365 : vector<1x8x8x128xf32> to vector<8x8x128xf32>
    %367 = vector.shape_cast %364 : vector<8x8x128xf32> to vector<1x8x8x128xf32>
    tpu.vector_store %arg5[%c0_143, %c0_144, %c0_145, %c0_146], %367 {strides = array<i32>} : memref<2x8x8x128xf32, #tpu.memory_space<vmem>>, vector<1x8x8x128xf32>,
    %c1_147 = arith.constant 1 : index
    %c0_148 = arith.constant 0 : index
    %c0_149 = arith.constant 0 : index
    %c0_150 = arith.constant 0 : index
    %368 = vector.load %arg2[%c1_147, %c0_148, %c0_149, %c0_150] : memref<2x8x8x128xf32, #tpu.memory_space<vmem>>, vector<1x8x8x128xf32>
    %369 = vector.shape_cast %368 : vector<1x8x8x128xf32> to vector<8x8x128xf32>
    %c3_151 = arith.constant 3 : index
    %c8_152 = arith.constant 8 : index
    %c0_153 = arith.constant 0 : index
    %370 = vector.load %arg6[%c3_151, %c8_152, %c0_153] : memref<14x24x128xf32, #tpu.memory_space<vmem>>, vector<8x8x128xf32>
    tpu.vector_store %arg6[%c3_151, %c8_152, %c0_153], %369 {strides = array<i32>} : memref<14x24x128xf32, #tpu.memory_space<vmem>>, vector<8x8x128xf32>,
    %c0_154 = arith.constant 0 : index
    %c5_155 = arith.constant 5 : index
    %c0_156 = arith.constant 0 : index
    %371 = vector.load %arg6[%c0_154, %c5_155, %c0_156] : memref<14x24x128xf32, #tpu.memory_space<vmem>>, vector<14x8x128xf32>
    %c0_157 = arith.constant 0 : index
    %c0_158 = arith.constant 0 : index
    %c0_159 = arith.constant 0 : index
    %372 = vector.load %arg3[%c0_157, %c0_158, %c0_159] : memref<49x8x128xf32, #tpu.memory_space<vmem>>, vector<1x8x128xf32>
    %373 = vector.shape_cast %372 : vector<1x8x128xf32> to vector<8x128xf32>
    %374 = vector.extract_strided_slice %371 {offsets = [0, 0, 0], sizes = [8, 8, 128], strides = [1, 1, 1]} : vector<14x8x128xf32> to vector<8x8x128xf32>
    %375 = vector.shape_cast %373 : vector<8x128xf32> to vector<1x8x128xf32>
    %376 = vector.broadcast %375 : vector<1x8x128xf32> to vector<8x8x128xf32>
    %377 = arith.mulf %374, %376 : vector<8x8x128xf32>
    %378 = arith.addf %11, %377 : vector<8x8x128xf32>
    %c7_160 = arith.constant 7 : index
    %c0_161 = arith.constant 0 : index
    %c0_162 = arith.constant 0 : index
    %379 = vector.load %arg3[%c7_160, %c0_161, %c0_162] : memref<49x8x128xf32, #tpu.memory_space<vmem>>, vector<1x8x128xf32>
    %380 = vector.shape_cast %379 : vector<1x8x128xf32> to vector<8x128xf32>
    %381 = vector.extract_strided_slice %371 {offsets = [1, 0, 0], sizes = [8, 8, 128], strides = [1, 1, 1]} : vector<14x8x128xf32> to vector<8x8x128xf32>
    %382 = vector.shape_cast %380 : vector<8x128xf32> to vector<1x8x128xf32>
    %383 = vector.broadcast %382 : vector<1x8x128xf32> to vector<8x8x128xf32>
    %384 = arith.mulf %381, %383 : vector<8x8x128xf32>
    %385 = arith.addf %378, %384 : vector<8x8x128xf32>
    %c14_163 = arith.constant 14 : index
    %c0_164 = arith.constant 0 : index
    %c0_165 = arith.constant 0 : index
    %386 = vector.load %arg3[%c14_163, %c0_164, %c0_165] : memref<49x8x128xf32, #tpu.memory_space<vmem>>, vector<1x8x128xf32>
    %387 = vector.shape_cast %386 : vector<1x8x128xf32> to vector<8x128xf32>
    %388 = vector.extract_strided_slice %371 {offsets = [2, 0, 0], sizes = [8, 8, 128], strides = [1, 1, 1]} : vector<14x8x128xf32> to vector<8x8x128xf32>
    %389 = vector.shape_cast %387 : vector<8x128xf32> to vector<1x8x128xf32>
    %390 = vector.broadcast %389 : vector<1x8x128xf32> to vector<8x8x128xf32>
    %391 = arith.mulf %388, %390 : vector<8x8x128xf32>
    %392 = arith.addf %385, %391 : vector<8x8x128xf32>
    %c21_166 = arith.constant 21 : index
    %c0_167 = arith.constant 0 : index
    %c0_168 = arith.constant 0 : index
    %393 = vector.load %arg3[%c21_166, %c0_167, %c0_168] : memref<49x8x128xf32, #tpu.memory_space<vmem>>, vector<1x8x128xf32>
    %394 = vector.shape_cast %393 : vector<1x8x128xf32> to vector<8x128xf32>
    %395 = vector.extract_strided_slice %371 {offsets = [3, 0, 0], sizes = [8, 8, 128], strides = [1, 1, 1]} : vector<14x8x128xf32> to vector<8x8x128xf32>
    %396 = vector.shape_cast %394 : vector<8x128xf32> to vector<1x8x128xf32>
    %397 = vector.broadcast %396 : vector<1x8x128xf32> to vector<8x8x128xf32>
    %398 = arith.mulf %395, %397 : vector<8x8x128xf32>
    %399 = arith.addf %392, %398 : vector<8x8x128xf32>
    %c28_169 = arith.constant 28 : index
    %c0_170 = arith.constant 0 : index
    %c0_171 = arith.constant 0 : index
    %400 = vector.load %arg3[%c28_169, %c0_170, %c0_171] : memref<49x8x128xf32, #tpu.memory_space<vmem>>, vector<1x8x128xf32>
    %401 = vector.shape_cast %400 : vector<1x8x128xf32> to vector<8x128xf32>
    %402 = vector.extract_strided_slice %371 {offsets = [4, 0, 0], sizes = [8, 8, 128], strides = [1, 1, 1]} : vector<14x8x128xf32> to vector<8x8x128xf32>
    %403 = vector.shape_cast %401 : vector<8x128xf32> to vector<1x8x128xf32>
    %404 = vector.broadcast %403 : vector<1x8x128xf32> to vector<8x8x128xf32>
    %405 = arith.mulf %402, %404 : vector<8x8x128xf32>
    %406 = arith.addf %399, %405 : vector<8x8x128xf32>
    %c35_172 = arith.constant 35 : index
    %c0_173 = arith.constant 0 : index
    %c0_174 = arith.constant 0 : index
    %407 = vector.load %arg3[%c35_172, %c0_173, %c0_174] : memref<49x8x128xf32, #tpu.memory_space<vmem>>, vector<1x8x128xf32>
    %408 = vector.shape_cast %407 : vector<1x8x128xf32> to vector<8x128xf32>
    %409 = vector.extract_strided_slice %371 {offsets = [5, 0, 0], sizes = [8, 8, 128], strides = [1, 1, 1]} : vector<14x8x128xf32> to vector<8x8x128xf32>
    %410 = vector.shape_cast %408 : vector<8x128xf32> to vector<1x8x128xf32>
    %411 = vector.broadcast %410 : vector<1x8x128xf32> to vector<8x8x128xf32>
    %412 = arith.mulf %409, %411 : vector<8x8x128xf32>
    %413 = arith.addf %406, %412 : vector<8x8x128xf32>
    %c42_175 = arith.constant 42 : index
    %c0_176 = arith.constant 0 : index
    %c0_177 = arith.constant 0 : index
    %414 = vector.load %arg3[%c42_175, %c0_176, %c0_177] : memref<49x8x128xf32, #tpu.memory_space<vmem>>, vector<1x8x128xf32>
    %415 = vector.shape_cast %414 : vector<1x8x128xf32> to vector<8x128xf32>
    %416 = vector.extract_strided_slice %371 {offsets = [6, 0, 0], sizes = [8, 8, 128], strides = [1, 1, 1]} : vector<14x8x128xf32> to vector<8x8x128xf32>
    %417 = vector.shape_cast %415 : vector<8x128xf32> to vector<1x8x128xf32>
    %418 = vector.broadcast %417 : vector<1x8x128xf32> to vector<8x8x128xf32>
    %419 = arith.mulf %416, %418 : vector<8x8x128xf32>
    %420 = arith.addf %413, %419 : vector<8x8x128xf32>
    %c0_178 = arith.constant 0 : index
    %c6_179 = arith.constant 6 : index
    %c0_180 = arith.constant 0 : index
    %421 = vector.load %arg6[%c0_178, %c6_179, %c0_180] : memref<14x24x128xf32, #tpu.memory_space<vmem>>, vector<14x8x128xf32>
    %c1_181 = arith.constant 1 : index
    %c0_182 = arith.constant 0 : index
    %c0_183 = arith.constant 0 : index
    %422 = vector.load %arg3[%c1_181, %c0_182, %c0_183] : memref<49x8x128xf32, #tpu.memory_space<vmem>>, vector<1x8x128xf32>
    %423 = vector.shape_cast %422 : vector<1x8x128xf32> to vector<8x128xf32>
    %424 = vector.extract_strided_slice %421 {offsets = [0, 0, 0], sizes = [8, 8, 128], strides = [1, 1, 1]} : vector<14x8x128xf32> to vector<8x8x128xf32>
    %425 = vector.shape_cast %423 : vector<8x128xf32> to vector<1x8x128xf32>
    %426 = vector.broadcast %425 : vector<1x8x128xf32> to vector<8x8x128xf32>
    %427 = arith.mulf %424, %426 : vector<8x8x128xf32>
    %428 = arith.addf %420, %427 : vector<8x8x128xf32>
    %c8_184 = arith.constant 8 : index
    %c0_185 = arith.constant 0 : index
    %c0_186 = arith.constant 0 : index
    %429 = vector.load %arg3[%c8_184, %c0_185, %c0_186] : memref<49x8x128xf32, #tpu.memory_space<vmem>>, vector<1x8x128xf32>
    %430 = vector.shape_cast %429 : vector<1x8x128xf32> to vector<8x128xf32>
    %431 = vector.extract_strided_slice %421 {offsets = [1, 0, 0], sizes = [8, 8, 128], strides = [1, 1, 1]} : vector<14x8x128xf32> to vector<8x8x128xf32>
    %432 = vector.shape_cast %430 : vector<8x128xf32> to vector<1x8x128xf32>
    %433 = vector.broadcast %432 : vector<1x8x128xf32> to vector<8x8x128xf32>
    %434 = arith.mulf %431, %433 : vector<8x8x128xf32>
    %435 = arith.addf %428, %434 : vector<8x8x128xf32>
    %c15_187 = arith.constant 15 : index
    %c0_188 = arith.constant 0 : index
    %c0_189 = arith.constant 0 : index
    %436 = vector.load %arg3[%c15_187, %c0_188, %c0_189] : memref<49x8x128xf32, #tpu.memory_space<vmem>>, vector<1x8x128xf32>
    %437 = vector.shape_cast %436 : vector<1x8x128xf32> to vector<8x128xf32>
    %438 = vector.extract_strided_slice %421 {offsets = [2, 0, 0], sizes = [8, 8, 128], strides = [1, 1, 1]} : vector<14x8x128xf32> to vector<8x8x128xf32>
    %439 = vector.shape_cast %437 : vector<8x128xf32> to vector<1x8x128xf32>
    %440 = vector.broadcast %439 : vector<1x8x128xf32> to vector<8x8x128xf32>
    %441 = arith.mulf %438, %440 : vector<8x8x128xf32>
    %442 = arith.addf %435, %441 : vector<8x8x128xf32>
    %c22_190 = arith.constant 22 : index
    %c0_191 = arith.constant 0 : index
    %c0_192 = arith.constant 0 : index
    %443 = vector.load %arg3[%c22_190, %c0_191, %c0_192] : memref<49x8x128xf32, #tpu.memory_space<vmem>>, vector<1x8x128xf32>
    %444 = vector.shape_cast %443 : vector<1x8x128xf32> to vector<8x128xf32>
    %445 = vector.extract_strided_slice %421 {offsets = [3, 0, 0], sizes = [8, 8, 128], strides = [1, 1, 1]} : vector<14x8x128xf32> to vector<8x8x128xf32>
    %446 = vector.shape_cast %444 : vector<8x128xf32> to vector<1x8x128xf32>
    %447 = vector.broadcast %446 : vector<1x8x128xf32> to vector<8x8x128xf32>
    %448 = arith.mulf %445, %447 : vector<8x8x128xf32>
    %449 = arith.addf %442, %448 : vector<8x8x128xf32>
    %c29_193 = arith.constant 29 : index
    %c0_194 = arith.constant 0 : index
    %c0_195 = arith.constant 0 : index
    %450 = vector.load %arg3[%c29_193, %c0_194, %c0_195] : memref<49x8x128xf32, #tpu.memory_space<vmem>>, vector<1x8x128xf32>
    %451 = vector.shape_cast %450 : vector<1x8x128xf32> to vector<8x128xf32>
    %452 = vector.extract_strided_slice %421 {offsets = [4, 0, 0], sizes = [8, 8, 128], strides = [1, 1, 1]} : vector<14x8x128xf32> to vector<8x8x128xf32>
    %453 = vector.shape_cast %451 : vector<8x128xf32> to vector<1x8x128xf32>
    %454 = vector.broadcast %453 : vector<1x8x128xf32> to vector<8x8x128xf32>
    %455 = arith.mulf %452, %454 : vector<8x8x128xf32>
    %456 = arith.addf %449, %455 : vector<8x8x128xf32>
    %c36_196 = arith.constant 36 : index
    %c0_197 = arith.constant 0 : index
    %c0_198 = arith.constant 0 : index
    %457 = vector.load %arg3[%c36_196, %c0_197, %c0_198] : memref<49x8x128xf32, #tpu.memory_space<vmem>>, vector<1x8x128xf32>
    %458 = vector.shape_cast %457 : vector<1x8x128xf32> to vector<8x128xf32>
    %459 = vector.extract_strided_slice %421 {offsets = [5, 0, 0], sizes = [8, 8, 128], strides = [1, 1, 1]} : vector<14x8x128xf32> to vector<8x8x128xf32>
    %460 = vector.shape_cast %458 : vector<8x128xf32> to vector<1x8x128xf32>
    %461 = vector.broadcast %460 : vector<1x8x128xf32> to vector<8x8x128xf32>
    %462 = arith.mulf %459, %461 : vector<8x8x128xf32>
    %463 = arith.addf %456, %462 : vector<8x8x128xf32>
    %c43_199 = arith.constant 43 : index
    %c0_200 = arith.constant 0 : index
    %c0_201 = arith.constant 0 : index
    %464 = vector.load %arg3[%c43_199, %c0_200, %c0_201] : memref<49x8x128xf32, #tpu.memory_space<vmem>>, vector<1x8x128xf32>
    %465 = vector.shape_cast %464 : vector<1x8x128xf32> to vector<8x128xf32>
    %466 = vector.extract_strided_slice %421 {offsets = [6, 0, 0], sizes = [8, 8, 128], strides = [1, 1, 1]} : vector<14x8x128xf32> to vector<8x8x128xf32>
    %467 = vector.shape_cast %465 : vector<8x128xf32> to vector<1x8x128xf32>
    %468 = vector.broadcast %467 : vector<1x8x128xf32> to vector<8x8x128xf32>
    %469 = arith.mulf %466, %468 : vector<8x8x128xf32>
    %470 = arith.addf %463, %469 : vector<8x8x128xf32>
    %c0_202 = arith.constant 0 : index
    %c7_203 = arith.constant 7 : index
    %c0_204 = arith.constant 0 : index
    %471 = vector.load %arg6[%c0_202, %c7_203, %c0_204] : memref<14x24x128xf32, #tpu.memory_space<vmem>>, vector<14x8x128xf32>
    %c2_205 = arith.constant 2 : index
    %c0_206 = arith.constant 0 : index
    %c0_207 = arith.constant 0 : index
    %472 = vector.load %arg3[%c2_205, %c0_206, %c0_207] : memref<49x8x128xf32, #tpu.memory_space<vmem>>, vector<1x8x128xf32>
    %473 = vector.shape_cast %472 : vector<1x8x128xf32> to vector<8x128xf32>
    %474 = vector.extract_strided_slice %471 {offsets = [0, 0, 0], sizes = [8, 8, 128], strides = [1, 1, 1]} : vector<14x8x128xf32> to vector<8x8x128xf32>
    %475 = vector.shape_cast %473 : vector<8x128xf32> to vector<1x8x128xf32>
    %476 = vector.broadcast %475 : vector<1x8x128xf32> to vector<8x8x128xf32>
    %477 = arith.mulf %474, %476 : vector<8x8x128xf32>
    %478 = arith.addf %470, %477 : vector<8x8x128xf32>
    %c9_208 = arith.constant 9 : index
    %c0_209 = arith.constant 0 : index
    %c0_210 = arith.constant 0 : index
    %479 = vector.load %arg3[%c9_208, %c0_209, %c0_210] : memref<49x8x128xf32, #tpu.memory_space<vmem>>, vector<1x8x128xf32>
    %480 = vector.shape_cast %479 : vector<1x8x128xf32> to vector<8x128xf32>
    %481 = vector.extract_strided_slice %471 {offsets = [1, 0, 0], sizes = [8, 8, 128], strides = [1, 1, 1]} : vector<14x8x128xf32> to vector<8x8x128xf32>
    %482 = vector.shape_cast %480 : vector<8x128xf32> to vector<1x8x128xf32>
    %483 = vector.broadcast %482 : vector<1x8x128xf32> to vector<8x8x128xf32>
    %484 = arith.mulf %481, %483 : vector<8x8x128xf32>
    %485 = arith.addf %478, %484 : vector<8x8x128xf32>
    %c16_211 = arith.constant 16 : index
    %c0_212 = arith.constant 0 : index
    %c0_213 = arith.constant 0 : index
    %486 = vector.load %arg3[%c16_211, %c0_212, %c0_213] : memref<49x8x128xf32, #tpu.memory_space<vmem>>, vector<1x8x128xf32>
    %487 = vector.shape_cast %486 : vector<1x8x128xf32> to vector<8x128xf32>
    %488 = vector.extract_strided_slice %471 {offsets = [2, 0, 0], sizes = [8, 8, 128], strides = [1, 1, 1]} : vector<14x8x128xf32> to vector<8x8x128xf32>
    %489 = vector.shape_cast %487 : vector<8x128xf32> to vector<1x8x128xf32>
    %490 = vector.broadcast %489 : vector<1x8x128xf32> to vector<8x8x128xf32>
    %491 = arith.mulf %488, %490 : vector<8x8x128xf32>
    %492 = arith.addf %485, %491 : vector<8x8x128xf32>
    %c23_214 = arith.constant 23 : index
    %c0_215 = arith.constant 0 : index
    %c0_216 = arith.constant 0 : index
    %493 = vector.load %arg3[%c23_214, %c0_215, %c0_216] : memref<49x8x128xf32, #tpu.memory_space<vmem>>, vector<1x8x128xf32>
    %494 = vector.shape_cast %493 : vector<1x8x128xf32> to vector<8x128xf32>
    %495 = vector.extract_strided_slice %471 {offsets = [3, 0, 0], sizes = [8, 8, 128], strides = [1, 1, 1]} : vector<14x8x128xf32> to vector<8x8x128xf32>
    %496 = vector.shape_cast %494 : vector<8x128xf32> to vector<1x8x128xf32>
    %497 = vector.broadcast %496 : vector<1x8x128xf32> to vector<8x8x128xf32>
    %498 = arith.mulf %495, %497 : vector<8x8x128xf32>
    %499 = arith.addf %492, %498 : vector<8x8x128xf32>
    %c30_217 = arith.constant 30 : index
    %c0_218 = arith.constant 0 : index
    %c0_219 = arith.constant 0 : index
    %500 = vector.load %arg3[%c30_217, %c0_218, %c0_219] : memref<49x8x128xf32, #tpu.memory_space<vmem>>, vector<1x8x128xf32>
    %501 = vector.shape_cast %500 : vector<1x8x128xf32> to vector<8x128xf32>
    %502 = vector.extract_strided_slice %471 {offsets = [4, 0, 0], sizes = [8, 8, 128], strides = [1, 1, 1]} : vector<14x8x128xf32> to vector<8x8x128xf32>
    %503 = vector.shape_cast %501 : vector<8x128xf32> to vector<1x8x128xf32>
    %504 = vector.broadcast %503 : vector<1x8x128xf32> to vector<8x8x128xf32>
    %505 = arith.mulf %502, %504 : vector<8x8x128xf32>
    %506 = arith.addf %499, %505 : vector<8x8x128xf32>
    %c37_220 = arith.constant 37 : index
    %c0_221 = arith.constant 0 : index
    %c0_222 = arith.constant 0 : index
    %507 = vector.load %arg3[%c37_220, %c0_221, %c0_222] : memref<49x8x128xf32, #tpu.memory_space<vmem>>, vector<1x8x128xf32>
    %508 = vector.shape_cast %507 : vector<1x8x128xf32> to vector<8x128xf32>
    %509 = vector.extract_strided_slice %471 {offsets = [5, 0, 0], sizes = [8, 8, 128], strides = [1, 1, 1]} : vector<14x8x128xf32> to vector<8x8x128xf32>
    %510 = vector.shape_cast %508 : vector<8x128xf32> to vector<1x8x128xf32>
    %511 = vector.broadcast %510 : vector<1x8x128xf32> to vector<8x8x128xf32>
    %512 = arith.mulf %509, %511 : vector<8x8x128xf32>
    %513 = arith.addf %506, %512 : vector<8x8x128xf32>
    %c44_223 = arith.constant 44 : index
    %c0_224 = arith.constant 0 : index
    %c0_225 = arith.constant 0 : index
    %514 = vector.load %arg3[%c44_223, %c0_224, %c0_225] : memref<49x8x128xf32, #tpu.memory_space<vmem>>, vector<1x8x128xf32>
    %515 = vector.shape_cast %514 : vector<1x8x128xf32> to vector<8x128xf32>
    %516 = vector.extract_strided_slice %471 {offsets = [6, 0, 0], sizes = [8, 8, 128], strides = [1, 1, 1]} : vector<14x8x128xf32> to vector<8x8x128xf32>
    %517 = vector.shape_cast %515 : vector<8x128xf32> to vector<1x8x128xf32>
    %518 = vector.broadcast %517 : vector<1x8x128xf32> to vector<8x8x128xf32>
    %519 = arith.mulf %516, %518 : vector<8x8x128xf32>
    %520 = arith.addf %513, %519 : vector<8x8x128xf32>
    %c0_226 = arith.constant 0 : index
    %c8_227 = arith.constant 8 : index
    %c0_228 = arith.constant 0 : index
    %521 = vector.load %arg6[%c0_226, %c8_227, %c0_228] : memref<14x24x128xf32, #tpu.memory_space<vmem>>, vector<14x8x128xf32>
    %c3_229 = arith.constant 3 : index
    %c0_230 = arith.constant 0 : index
    %c0_231 = arith.constant 0 : index
    %522 = vector.load %arg3[%c3_229, %c0_230, %c0_231] : memref<49x8x128xf32, #tpu.memory_space<vmem>>, vector<1x8x128xf32>
    %523 = vector.shape_cast %522 : vector<1x8x128xf32> to vector<8x128xf32>
    %524 = vector.extract_strided_slice %521 {offsets = [0, 0, 0], sizes = [8, 8, 128], strides = [1, 1, 1]} : vector<14x8x128xf32> to vector<8x8x128xf32>
    %525 = vector.shape_cast %523 : vector<8x128xf32> to vector<1x8x128xf32>
    %526 = vector.broadcast %525 : vector<1x8x128xf32> to vector<8x8x128xf32>
    %527 = arith.mulf %524, %526 : vector<8x8x128xf32>
    %528 = arith.addf %520, %527 : vector<8x8x128xf32>
    %c10_232 = arith.constant 10 : index
    %c0_233 = arith.constant 0 : index
    %c0_234 = arith.constant 0 : index
    %529 = vector.load %arg3[%c10_232, %c0_233, %c0_234] : memref<49x8x128xf32, #tpu.memory_space<vmem>>, vector<1x8x128xf32>
    %530 = vector.shape_cast %529 : vector<1x8x128xf32> to vector<8x128xf32>
    %531 = vector.extract_strided_slice %521 {offsets = [1, 0, 0], sizes = [8, 8, 128], strides = [1, 1, 1]} : vector<14x8x128xf32> to vector<8x8x128xf32>
    %532 = vector.shape_cast %530 : vector<8x128xf32> to vector<1x8x128xf32>
    %533 = vector.broadcast %532 : vector<1x8x128xf32> to vector<8x8x128xf32>
    %534 = arith.mulf %531, %533 : vector<8x8x128xf32>
    %535 = arith.addf %528, %534 : vector<8x8x128xf32>
    %c17_235 = arith.constant 17 : index
    %c0_236 = arith.constant 0 : index
    %c0_237 = arith.constant 0 : index
    %536 = vector.load %arg3[%c17_235, %c0_236, %c0_237] : memref<49x8x128xf32, #tpu.memory_space<vmem>>, vector<1x8x128xf32>
    %537 = vector.shape_cast %536 : vector<1x8x128xf32> to vector<8x128xf32>
    %538 = vector.extract_strided_slice %521 {offsets = [2, 0, 0], sizes = [8, 8, 128], strides = [1, 1, 1]} : vector<14x8x128xf32> to vector<8x8x128xf32>
    %539 = vector.shape_cast %537 : vector<8x128xf32> to vector<1x8x128xf32>
    %540 = vector.broadcast %539 : vector<1x8x128xf32> to vector<8x8x128xf32>
    %541 = arith.mulf %538, %540 : vector<8x8x128xf32>
    %542 = arith.addf %535, %541 : vector<8x8x128xf32>
    %c24_238 = arith.constant 24 : index
    %c0_239 = arith.constant 0 : index
    %c0_240 = arith.constant 0 : index
    %543 = vector.load %arg3[%c24_238, %c0_239, %c0_240] : memref<49x8x128xf32, #tpu.memory_space<vmem>>, vector<1x8x128xf32>
    %544 = vector.shape_cast %543 : vector<1x8x128xf32> to vector<8x128xf32>
    %545 = vector.extract_strided_slice %521 {offsets = [3, 0, 0], sizes = [8, 8, 128], strides = [1, 1, 1]} : vector<14x8x128xf32> to vector<8x8x128xf32>
    %546 = vector.shape_cast %544 : vector<8x128xf32> to vector<1x8x128xf32>
    %547 = vector.broadcast %546 : vector<1x8x128xf32> to vector<8x8x128xf32>
    %548 = arith.mulf %545, %547 : vector<8x8x128xf32>
    %549 = arith.addf %542, %548 : vector<8x8x128xf32>
    %c31_241 = arith.constant 31 : index
    %c0_242 = arith.constant 0 : index
    %c0_243 = arith.constant 0 : index
    %550 = vector.load %arg3[%c31_241, %c0_242, %c0_243] : memref<49x8x128xf32, #tpu.memory_space<vmem>>, vector<1x8x128xf32>
    %551 = vector.shape_cast %550 : vector<1x8x128xf32> to vector<8x128xf32>
    %552 = vector.extract_strided_slice %521 {offsets = [4, 0, 0], sizes = [8, 8, 128], strides = [1, 1, 1]} : vector<14x8x128xf32> to vector<8x8x128xf32>
    %553 = vector.shape_cast %551 : vector<8x128xf32> to vector<1x8x128xf32>
    %554 = vector.broadcast %553 : vector<1x8x128xf32> to vector<8x8x128xf32>
    %555 = arith.mulf %552, %554 : vector<8x8x128xf32>
    %556 = arith.addf %549, %555 : vector<8x8x128xf32>
    %c38_244 = arith.constant 38 : index
    %c0_245 = arith.constant 0 : index
    %c0_246 = arith.constant 0 : index
    %557 = vector.load %arg3[%c38_244, %c0_245, %c0_246] : memref<49x8x128xf32, #tpu.memory_space<vmem>>, vector<1x8x128xf32>
    %558 = vector.shape_cast %557 : vector<1x8x128xf32> to vector<8x128xf32>
    %559 = vector.extract_strided_slice %521 {offsets = [5, 0, 0], sizes = [8, 8, 128], strides = [1, 1, 1]} : vector<14x8x128xf32> to vector<8x8x128xf32>
    %560 = vector.shape_cast %558 : vector<8x128xf32> to vector<1x8x128xf32>
    %561 = vector.broadcast %560 : vector<1x8x128xf32> to vector<8x8x128xf32>
    %562 = arith.mulf %559, %561 : vector<8x8x128xf32>
    %563 = arith.addf %556, %562 : vector<8x8x128xf32>
    %c45_247 = arith.constant 45 : index
    %c0_248 = arith.constant 0 : index
    %c0_249 = arith.constant 0 : index
    %564 = vector.load %arg3[%c45_247, %c0_248, %c0_249] : memref<49x8x128xf32, #tpu.memory_space<vmem>>, vector<1x8x128xf32>
    %565 = vector.shape_cast %564 : vector<1x8x128xf32> to vector<8x128xf32>
    %566 = vector.extract_strided_slice %521 {offsets = [6, 0, 0], sizes = [8, 8, 128], strides = [1, 1, 1]} : vector<14x8x128xf32> to vector<8x8x128xf32>
    %567 = vector.shape_cast %565 : vector<8x128xf32> to vector<1x8x128xf32>
    %568 = vector.broadcast %567 : vector<1x8x128xf32> to vector<8x8x128xf32>
    %569 = arith.mulf %566, %568 : vector<8x8x128xf32>
    %570 = arith.addf %563, %569 : vector<8x8x128xf32>
    %c0_250 = arith.constant 0 : index
    %c9_251 = arith.constant 9 : index
    %c0_252 = arith.constant 0 : index
    %571 = vector.load %arg6[%c0_250, %c9_251, %c0_252] : memref<14x24x128xf32, #tpu.memory_space<vmem>>, vector<14x8x128xf32>
    %c4_253 = arith.constant 4 : index
    %c0_254 = arith.constant 0 : index
    %c0_255 = arith.constant 0 : index
    %572 = vector.load %arg3[%c4_253, %c0_254, %c0_255] : memref<49x8x128xf32, #tpu.memory_space<vmem>>, vector<1x8x128xf32>
    %573 = vector.shape_cast %572 : vector<1x8x128xf32> to vector<8x128xf32>
    %574 = vector.extract_strided_slice %571 {offsets = [0, 0, 0], sizes = [8, 8, 128], strides = [1, 1, 1]} : vector<14x8x128xf32> to vector<8x8x128xf32>
    %575 = vector.shape_cast %573 : vector<8x128xf32> to vector<1x8x128xf32>
    %576 = vector.broadcast %575 : vector<1x8x128xf32> to vector<8x8x128xf32>
    %577 = arith.mulf %574, %576 : vector<8x8x128xf32>
    %578 = arith.addf %570, %577 : vector<8x8x128xf32>
    %c11_256 = arith.constant 11 : index
    %c0_257 = arith.constant 0 : index
    %c0_258 = arith.constant 0 : index
    %579 = vector.load %arg3[%c11_256, %c0_257, %c0_258] : memref<49x8x128xf32, #tpu.memory_space<vmem>>, vector<1x8x128xf32>
    %580 = vector.shape_cast %579 : vector<1x8x128xf32> to vector<8x128xf32>
    %581 = vector.extract_strided_slice %571 {offsets = [1, 0, 0], sizes = [8, 8, 128], strides = [1, 1, 1]} : vector<14x8x128xf32> to vector<8x8x128xf32>
    %582 = vector.shape_cast %580 : vector<8x128xf32> to vector<1x8x128xf32>
    %583 = vector.broadcast %582 : vector<1x8x128xf32> to vector<8x8x128xf32>
    %584 = arith.mulf %581, %583 : vector<8x8x128xf32>
    %585 = arith.addf %578, %584 : vector<8x8x128xf32>
    %c18_259 = arith.constant 18 : index
    %c0_260 = arith.constant 0 : index
    %c0_261 = arith.constant 0 : index
    %586 = vector.load %arg3[%c18_259, %c0_260, %c0_261] : memref<49x8x128xf32, #tpu.memory_space<vmem>>, vector<1x8x128xf32>
    %587 = vector.shape_cast %586 : vector<1x8x128xf32> to vector<8x128xf32>
    %588 = vector.extract_strided_slice %571 {offsets = [2, 0, 0], sizes = [8, 8, 128], strides = [1, 1, 1]} : vector<14x8x128xf32> to vector<8x8x128xf32>
    %589 = vector.shape_cast %587 : vector<8x128xf32> to vector<1x8x128xf32>
    %590 = vector.broadcast %589 : vector<1x8x128xf32> to vector<8x8x128xf32>
    %591 = arith.mulf %588, %590 : vector<8x8x128xf32>
    %592 = arith.addf %585, %591 : vector<8x8x128xf32>
    %c25_262 = arith.constant 25 : index
    %c0_263 = arith.constant 0 : index
    %c0_264 = arith.constant 0 : index
    %593 = vector.load %arg3[%c25_262, %c0_263, %c0_264] : memref<49x8x128xf32, #tpu.memory_space<vmem>>, vector<1x8x128xf32>
    %594 = vector.shape_cast %593 : vector<1x8x128xf32> to vector<8x128xf32>
    %595 = vector.extract_strided_slice %571 {offsets = [3, 0, 0], sizes = [8, 8, 128], strides = [1, 1, 1]} : vector<14x8x128xf32> to vector<8x8x128xf32>
    %596 = vector.shape_cast %594 : vector<8x128xf32> to vector<1x8x128xf32>
    %597 = vector.broadcast %596 : vector<1x8x128xf32> to vector<8x8x128xf32>
    %598 = arith.mulf %595, %597 : vector<8x8x128xf32>
    %599 = arith.addf %592, %598 : vector<8x8x128xf32>
    %c32_265 = arith.constant 32 : index
    %c0_266 = arith.constant 0 : index
    %c0_267 = arith.constant 0 : index
    %600 = vector.load %arg3[%c32_265, %c0_266, %c0_267] : memref<49x8x128xf32, #tpu.memory_space<vmem>>, vector<1x8x128xf32>
    %601 = vector.shape_cast %600 : vector<1x8x128xf32> to vector<8x128xf32>
    %602 = vector.extract_strided_slice %571 {offsets = [4, 0, 0], sizes = [8, 8, 128], strides = [1, 1, 1]} : vector<14x8x128xf32> to vector<8x8x128xf32>
    %603 = vector.shape_cast %601 : vector<8x128xf32> to vector<1x8x128xf32>
    %604 = vector.broadcast %603 : vector<1x8x128xf32> to vector<8x8x128xf32>
    %605 = arith.mulf %602, %604 : vector<8x8x128xf32>
    %606 = arith.addf %599, %605 : vector<8x8x128xf32>
    %c39_268 = arith.constant 39 : index
    %c0_269 = arith.constant 0 : index
    %c0_270 = arith.constant 0 : index
    %607 = vector.load %arg3[%c39_268, %c0_269, %c0_270] : memref<49x8x128xf32, #tpu.memory_space<vmem>>, vector<1x8x128xf32>
    %608 = vector.shape_cast %607 : vector<1x8x128xf32> to vector<8x128xf32>
    %609 = vector.extract_strided_slice %571 {offsets = [5, 0, 0], sizes = [8, 8, 128], strides = [1, 1, 1]} : vector<14x8x128xf32> to vector<8x8x128xf32>
    %610 = vector.shape_cast %608 : vector<8x128xf32> to vector<1x8x128xf32>
    %611 = vector.broadcast %610 : vector<1x8x128xf32> to vector<8x8x128xf32>
    %612 = arith.mulf %609, %611 : vector<8x8x128xf32>
    %613 = arith.addf %606, %612 : vector<8x8x128xf32>
    %c46_271 = arith.constant 46 : index
    %c0_272 = arith.constant 0 : index
    %c0_273 = arith.constant 0 : index
    %614 = vector.load %arg3[%c46_271, %c0_272, %c0_273] : memref<49x8x128xf32, #tpu.memory_space<vmem>>, vector<1x8x128xf32>
    %615 = vector.shape_cast %614 : vector<1x8x128xf32> to vector<8x128xf32>
    %616 = vector.extract_strided_slice %571 {offsets = [6, 0, 0], sizes = [8, 8, 128], strides = [1, 1, 1]} : vector<14x8x128xf32> to vector<8x8x128xf32>
    %617 = vector.shape_cast %615 : vector<8x128xf32> to vector<1x8x128xf32>
    %618 = vector.broadcast %617 : vector<1x8x128xf32> to vector<8x8x128xf32>
    %619 = arith.mulf %616, %618 : vector<8x8x128xf32>
    %620 = arith.addf %613, %619 : vector<8x8x128xf32>
    %c0_274 = arith.constant 0 : index
    %c10_275 = arith.constant 10 : index
    %c0_276 = arith.constant 0 : index
    %621 = vector.load %arg6[%c0_274, %c10_275, %c0_276] : memref<14x24x128xf32, #tpu.memory_space<vmem>>, vector<14x8x128xf32>
    %c5_277 = arith.constant 5 : index
    %c0_278 = arith.constant 0 : index
    %c0_279 = arith.constant 0 : index
    %622 = vector.load %arg3[%c5_277, %c0_278, %c0_279] : memref<49x8x128xf32, #tpu.memory_space<vmem>>, vector<1x8x128xf32>
    %623 = vector.shape_cast %622 : vector<1x8x128xf32> to vector<8x128xf32>
    %624 = vector.extract_strided_slice %621 {offsets = [0, 0, 0], sizes = [8, 8, 128], strides = [1, 1, 1]} : vector<14x8x128xf32> to vector<8x8x128xf32>
    %625 = vector.shape_cast %623 : vector<8x128xf32> to vector<1x8x128xf32>
    %626 = vector.broadcast %625 : vector<1x8x128xf32> to vector<8x8x128xf32>
    %627 = arith.mulf %624, %626 : vector<8x8x128xf32>
    %628 = arith.addf %620, %627 : vector<8x8x128xf32>
    %c12_280 = arith.constant 12 : index
    %c0_281 = arith.constant 0 : index
    %c0_282 = arith.constant 0 : index
    %629 = vector.load %arg3[%c12_280, %c0_281, %c0_282] : memref<49x8x128xf32, #tpu.memory_space<vmem>>, vector<1x8x128xf32>
    %630 = vector.shape_cast %629 : vector<1x8x128xf32> to vector<8x128xf32>
    %631 = vector.extract_strided_slice %621 {offsets = [1, 0, 0], sizes = [8, 8, 128], strides = [1, 1, 1]} : vector<14x8x128xf32> to vector<8x8x128xf32>
    %632 = vector.shape_cast %630 : vector<8x128xf32> to vector<1x8x128xf32>
    %633 = vector.broadcast %632 : vector<1x8x128xf32> to vector<8x8x128xf32>
    %634 = arith.mulf %631, %633 : vector<8x8x128xf32>
    %635 = arith.addf %628, %634 : vector<8x8x128xf32>
    %c19_283 = arith.constant 19 : index
    %c0_284 = arith.constant 0 : index
    %c0_285 = arith.constant 0 : index
    %636 = vector.load %arg3[%c19_283, %c0_284, %c0_285] : memref<49x8x128xf32, #tpu.memory_space<vmem>>, vector<1x8x128xf32>
    %637 = vector.shape_cast %636 : vector<1x8x128xf32> to vector<8x128xf32>
    %638 = vector.extract_strided_slice %621 {offsets = [2, 0, 0], sizes = [8, 8, 128], strides = [1, 1, 1]} : vector<14x8x128xf32> to vector<8x8x128xf32>
    %639 = vector.shape_cast %637 : vector<8x128xf32> to vector<1x8x128xf32>
    %640 = vector.broadcast %639 : vector<1x8x128xf32> to vector<8x8x128xf32>
    %641 = arith.mulf %638, %640 : vector<8x8x128xf32>
    %642 = arith.addf %635, %641 : vector<8x8x128xf32>
    %c26_286 = arith.constant 26 : index
    %c0_287 = arith.constant 0 : index
    %c0_288 = arith.constant 0 : index
    %643 = vector.load %arg3[%c26_286, %c0_287, %c0_288] : memref<49x8x128xf32, #tpu.memory_space<vmem>>, vector<1x8x128xf32>
    %644 = vector.shape_cast %643 : vector<1x8x128xf32> to vector<8x128xf32>
    %645 = vector.extract_strided_slice %621 {offsets = [3, 0, 0], sizes = [8, 8, 128], strides = [1, 1, 1]} : vector<14x8x128xf32> to vector<8x8x128xf32>
    %646 = vector.shape_cast %644 : vector<8x128xf32> to vector<1x8x128xf32>
    %647 = vector.broadcast %646 : vector<1x8x128xf32> to vector<8x8x128xf32>
    %648 = arith.mulf %645, %647 : vector<8x8x128xf32>
    %649 = arith.addf %642, %648 : vector<8x8x128xf32>
    %c33_289 = arith.constant 33 : index
    %c0_290 = arith.constant 0 : index
    %c0_291 = arith.constant 0 : index
    %650 = vector.load %arg3[%c33_289, %c0_290, %c0_291] : memref<49x8x128xf32, #tpu.memory_space<vmem>>, vector<1x8x128xf32>
    %651 = vector.shape_cast %650 : vector<1x8x128xf32> to vector<8x128xf32>
    %652 = vector.extract_strided_slice %621 {offsets = [4, 0, 0], sizes = [8, 8, 128], strides = [1, 1, 1]} : vector<14x8x128xf32> to vector<8x8x128xf32>
    %653 = vector.shape_cast %651 : vector<8x128xf32> to vector<1x8x128xf32>
    %654 = vector.broadcast %653 : vector<1x8x128xf32> to vector<8x8x128xf32>
    %655 = arith.mulf %652, %654 : vector<8x8x128xf32>
    %656 = arith.addf %649, %655 : vector<8x8x128xf32>
    %c40_292 = arith.constant 40 : index
    %c0_293 = arith.constant 0 : index
    %c0_294 = arith.constant 0 : index
    %657 = vector.load %arg3[%c40_292, %c0_293, %c0_294] : memref<49x8x128xf32, #tpu.memory_space<vmem>>, vector<1x8x128xf32>
    %658 = vector.shape_cast %657 : vector<1x8x128xf32> to vector<8x128xf32>
    %659 = vector.extract_strided_slice %621 {offsets = [5, 0, 0], sizes = [8, 8, 128], strides = [1, 1, 1]} : vector<14x8x128xf32> to vector<8x8x128xf32>
    %660 = vector.shape_cast %658 : vector<8x128xf32> to vector<1x8x128xf32>
    %661 = vector.broadcast %660 : vector<1x8x128xf32> to vector<8x8x128xf32>
    %662 = arith.mulf %659, %661 : vector<8x8x128xf32>
    %663 = arith.addf %656, %662 : vector<8x8x128xf32>
    %c47_295 = arith.constant 47 : index
    %c0_296 = arith.constant 0 : index
    %c0_297 = arith.constant 0 : index
    %664 = vector.load %arg3[%c47_295, %c0_296, %c0_297] : memref<49x8x128xf32, #tpu.memory_space<vmem>>, vector<1x8x128xf32>
    %665 = vector.shape_cast %664 : vector<1x8x128xf32> to vector<8x128xf32>
    %666 = vector.extract_strided_slice %621 {offsets = [6, 0, 0], sizes = [8, 8, 128], strides = [1, 1, 1]} : vector<14x8x128xf32> to vector<8x8x128xf32>
    %667 = vector.shape_cast %665 : vector<8x128xf32> to vector<1x8x128xf32>
    %668 = vector.broadcast %667 : vector<1x8x128xf32> to vector<8x8x128xf32>
    %669 = arith.mulf %666, %668 : vector<8x8x128xf32>
    %670 = arith.addf %663, %669 : vector<8x8x128xf32>
    %c0_298 = arith.constant 0 : index
    %c11_299 = arith.constant 11 : index
    %c0_300 = arith.constant 0 : index
    %671 = vector.load %arg6[%c0_298, %c11_299, %c0_300] : memref<14x24x128xf32, #tpu.memory_space<vmem>>, vector<14x8x128xf32>
    %c6_301 = arith.constant 6 : index
    %c0_302 = arith.constant 0 : index
    %c0_303 = arith.constant 0 : index
    %672 = vector.load %arg3[%c6_301, %c0_302, %c0_303] : memref<49x8x128xf32, #tpu.memory_space<vmem>>, vector<1x8x128xf32>
    %673 = vector.shape_cast %672 : vector<1x8x128xf32> to vector<8x128xf32>
    %674 = vector.extract_strided_slice %671 {offsets = [0, 0, 0], sizes = [8, 8, 128], strides = [1, 1, 1]} : vector<14x8x128xf32> to vector<8x8x128xf32>
    %675 = vector.shape_cast %673 : vector<8x128xf32> to vector<1x8x128xf32>
    %676 = vector.broadcast %675 : vector<1x8x128xf32> to vector<8x8x128xf32>
    %677 = arith.mulf %674, %676 : vector<8x8x128xf32>
    %678 = arith.addf %670, %677 : vector<8x8x128xf32>
    %c13_304 = arith.constant 13 : index
    %c0_305 = arith.constant 0 : index
    %c0_306 = arith.constant 0 : index
    %679 = vector.load %arg3[%c13_304, %c0_305, %c0_306] : memref<49x8x128xf32, #tpu.memory_space<vmem>>, vector<1x8x128xf32>
    %680 = vector.shape_cast %679 : vector<1x8x128xf32> to vector<8x128xf32>
    %681 = vector.extract_strided_slice %671 {offsets = [1, 0, 0], sizes = [8, 8, 128], strides = [1, 1, 1]} : vector<14x8x128xf32> to vector<8x8x128xf32>
    %682 = vector.shape_cast %680 : vector<8x128xf32> to vector<1x8x128xf32>
    %683 = vector.broadcast %682 : vector<1x8x128xf32> to vector<8x8x128xf32>
    %684 = arith.mulf %681, %683 : vector<8x8x128xf32>
    %685 = arith.addf %678, %684 : vector<8x8x128xf32>
    %c20_307 = arith.constant 20 : index
    %c0_308 = arith.constant 0 : index
    %c0_309 = arith.constant 0 : index
    %686 = vector.load %arg3[%c20_307, %c0_308, %c0_309] : memref<49x8x128xf32, #tpu.memory_space<vmem>>, vector<1x8x128xf32>
    %687 = vector.shape_cast %686 : vector<1x8x128xf32> to vector<8x128xf32>
    %688 = vector.extract_strided_slice %671 {offsets = [2, 0, 0], sizes = [8, 8, 128], strides = [1, 1, 1]} : vector<14x8x128xf32> to vector<8x8x128xf32>
    %689 = vector.shape_cast %687 : vector<8x128xf32> to vector<1x8x128xf32>
    %690 = vector.broadcast %689 : vector<1x8x128xf32> to vector<8x8x128xf32>
    %691 = arith.mulf %688, %690 : vector<8x8x128xf32>
    %692 = arith.addf %685, %691 : vector<8x8x128xf32>
    %c27_310 = arith.constant 27 : index
    %c0_311 = arith.constant 0 : index
    %c0_312 = arith.constant 0 : index
    %693 = vector.load %arg3[%c27_310, %c0_311, %c0_312] : memref<49x8x128xf32, #tpu.memory_space<vmem>>, vector<1x8x128xf32>
    %694 = vector.shape_cast %693 : vector<1x8x128xf32> to vector<8x128xf32>
    %695 = vector.extract_strided_slice %671 {offsets = [3, 0, 0], sizes = [8, 8, 128], strides = [1, 1, 1]} : vector<14x8x128xf32> to vector<8x8x128xf32>
    %696 = vector.shape_cast %694 : vector<8x128xf32> to vector<1x8x128xf32>
    %697 = vector.broadcast %696 : vector<1x8x128xf32> to vector<8x8x128xf32>
    %698 = arith.mulf %695, %697 : vector<8x8x128xf32>
    %699 = arith.addf %692, %698 : vector<8x8x128xf32>
    %c34_313 = arith.constant 34 : index
    %c0_314 = arith.constant 0 : index
    %c0_315 = arith.constant 0 : index
    %700 = vector.load %arg3[%c34_313, %c0_314, %c0_315] : memref<49x8x128xf32, #tpu.memory_space<vmem>>, vector<1x8x128xf32>
    %701 = vector.shape_cast %700 : vector<1x8x128xf32> to vector<8x128xf32>
    %702 = vector.extract_strided_slice %671 {offsets = [4, 0, 0], sizes = [8, 8, 128], strides = [1, 1, 1]} : vector<14x8x128xf32> to vector<8x8x128xf32>
    %703 = vector.shape_cast %701 : vector<8x128xf32> to vector<1x8x128xf32>
    %704 = vector.broadcast %703 : vector<1x8x128xf32> to vector<8x8x128xf32>
    %705 = arith.mulf %702, %704 : vector<8x8x128xf32>
    %706 = arith.addf %699, %705 : vector<8x8x128xf32>
    %c41_316 = arith.constant 41 : index
    %c0_317 = arith.constant 0 : index
    %c0_318 = arith.constant 0 : index
    %707 = vector.load %arg3[%c41_316, %c0_317, %c0_318] : memref<49x8x128xf32, #tpu.memory_space<vmem>>, vector<1x8x128xf32>
    %708 = vector.shape_cast %707 : vector<1x8x128xf32> to vector<8x128xf32>
    %709 = vector.extract_strided_slice %671 {offsets = [5, 0, 0], sizes = [8, 8, 128], strides = [1, 1, 1]} : vector<14x8x128xf32> to vector<8x8x128xf32>
    %710 = vector.shape_cast %708 : vector<8x128xf32> to vector<1x8x128xf32>
    %711 = vector.broadcast %710 : vector<1x8x128xf32> to vector<8x8x128xf32>
    %712 = arith.mulf %709, %711 : vector<8x8x128xf32>
    %713 = arith.addf %706, %712 : vector<8x8x128xf32>
    %c48_319 = arith.constant 48 : index
    %c0_320 = arith.constant 0 : index
    %c0_321 = arith.constant 0 : index
    %714 = vector.load %arg3[%c48_319, %c0_320, %c0_321] : memref<49x8x128xf32, #tpu.memory_space<vmem>>, vector<1x8x128xf32>
    %715 = vector.shape_cast %714 : vector<1x8x128xf32> to vector<8x128xf32>
    %716 = vector.extract_strided_slice %671 {offsets = [6, 0, 0], sizes = [8, 8, 128], strides = [1, 1, 1]} : vector<14x8x128xf32> to vector<8x8x128xf32>
    %717 = vector.shape_cast %715 : vector<8x128xf32> to vector<1x8x128xf32>
    %718 = vector.broadcast %717 : vector<1x8x128xf32> to vector<8x8x128xf32>
    %719 = arith.mulf %716, %718 : vector<8x8x128xf32>
    %720 = arith.addf %713, %719 : vector<8x8x128xf32>
    %c1_322 = arith.constant 1 : index
    %c0_323 = arith.constant 0 : index
    %c0_324 = arith.constant 0 : index
    %c0_325 = arith.constant 0 : index
    %721 = vector.load %arg5[%c1_322, %c0_323, %c0_324, %c0_325] : memref<2x8x8x128xf32, #tpu.memory_space<vmem>>, vector<1x8x8x128xf32>
    %722 = vector.shape_cast %721 : vector<1x8x8x128xf32> to vector<8x8x128xf32>
    %723 = vector.shape_cast %720 : vector<8x8x128xf32> to vector<1x8x8x128xf32>
    tpu.vector_store %arg5[%c1_322, %c0_323, %c0_324, %c0_325], %723 {strides = array<i32>} : memref<2x8x8x128xf32, #tpu.memory_space<vmem>>, vector<1x8x8x128xf32>,
    return
  }
  func.func @transform_0(%arg0: i32, %arg1: i32) -> (i32, i32, i32, i32) {
    %c0_i32 = arith.constant 0 : i32
    %c0_i32_0 = arith.constant 0 : i32
    %c0_i32_1 = arith.constant 0 : i32
    return %arg0, %c0_i32, %c0_i32_0, %arg1 : i32, i32, i32, i32
  }
  func.func @transform_1(%arg0: i32, %arg1: i32) -> (i32, i32, i32) {
    %c0_i32 = arith.constant 0 : i32
    %c0_i32_0 = arith.constant 0 : i32
    %c0_i32_1 = arith.constant 0 : i32
    return %c0_i32, %c0_i32_0, %arg1 : i32, i32, i32
  }
  func.func @transform_2(%arg0: i32, %arg1: i32) -> (i32, i32) {
    %c0_i32 = arith.constant 0 : i32
    %c0_i32_0 = arith.constant 0 : i32
    return %c0_i32, %arg1 : i32, i32
  }
  func.func @transform_3(%arg0: i32, %arg1: i32) -> (i32, i32, i32, i32) {
    %c0_i32 = arith.constant 0 : i32
    %c0_i32_0 = arith.constant 0 : i32
    %c0_i32_1 = arith.constant 0 : i32
    return %arg0, %c0_i32, %c0_i32_0, %arg1 : i32, i32, i32, i32
  }
}

</mosaic_0001>

<llo_original>
// kernel: tpu_custom_call.1
$region0: #{tpu_custom_call.1}
  #allocation0 [shape = 'u32[]', space=smem, size = 0x4, offset = 0x4, fixed_abs, tag = 'smem constant byte address 0x4 - core index']
  #allocation1 [shape = 'u32[144,128]{1,0:T(1,128)}', space=vmem, size = 0x12000, scoped, tag = 'internal scratch']
  #allocation2 [shape = 'f32[14,24,128]{2,1,0:T(8,128)}', space=vmem, size = 0x2a000, scoped, tag = 'scratch operand']
  %s0 = inlined_call_operand.hbm [shape: f32[2,8,8,128], index: 0, kind: input, shape index: {}]
  %s1 = inlined_call_operand.hbm [shape: f32[49,8,128], index: 1, kind: input, shape index: {}]
  %s2 = inlined_call_operand.vmem [shape: f32[1,128], index: 2, kind: input, shape index: {}]
  %s3 = inlined_call_operand.hbm [shape: f32[2,8,8,128], index: 3, kind: output, shape index: {}]
  %s4 = sld [smem:[#allocation0]]
  $region30: #{tpu_custom_call.1} parent=0
    _
  %s6 = ssub.s32 1, %s4
  %s7 = scalar_select 0, %s6, %s4
  $region1: #{tpu_custom_call.1} parent=0
    #allocation3 [shape = 'u8[65536]{0}', space=vmem, size = 0x10000, scoped, tag = 'input window, operand 0, single buffered']
    #allocation4 [shape = 's32[1]{0}', space=sflag, size = 0x4, scoped, tag = 'scoped memory for tpu_custom_call.1']
    #allocation5 [shape = 's32[1]{0}', space=sflag, size = 0x4, scoped, tag = 'scoped memory for tpu_custom_call.1']
    #allocation6 [shape = 'u8[200704]{0}', space=vmem, size = 0x31000, scoped, tag = 'input window, operand 1, single buffered']
    #allocation7 [shape = 's32[1]{0}', space=sflag, size = 0x4, scoped, tag = 'scoped memory for tpu_custom_call.1']
    #allocation8 [shape = 'u8[65536]{0}', space=vmem, size = 0x10000, scoped, tag = 'output window, operand 0, single buffered']
    %8 = vsyncpa [#allocation4], 0
    %9 = vsyncpa [#allocation7], 0
    %10 = vsyncpa [#allocation5], 0
    // Predicated region
    $region2: #{tpu_custom_call.1} parent=1 // pred_check
      _
    $region3: #{tpu_custom_call.1} parent=1 // pred_check_branch
      %12 = sbr.rel (0) target = $region5
    $region4: #{tpu_custom_call.1} parent=1 // pred_region
      %s14 = ssub.s32 2048, 2048
      %15 = vsyncadd [#allocation4], %s14
      %s16 = sshll.u32 [#allocation3], 4
      %s17 = int_to_ptr.vmem [resolvable:$true] %s16
      %22 = dma.hbm_to_vmem [thread:$0]  %s0, 2048, %s17, [#allocation4], 128, 128, 8
    $region5: #{tpu_custom_call.1} parent=1 // pred_fallthru
      _
    // Predicated region
    $region6: #{tpu_custom_call.1} parent=1 // pred_check
      _
    $region7: #{tpu_custom_call.1} parent=1 // pred_check_branch
      %24 = sbr.rel (0) target = $region9
    $region8: #{tpu_custom_call.1} parent=1 // pred_region
      %s26 = ssub.s32 6272, 6272
      %27 = vsyncadd [#allocation7], %s26
      %s28 = sshll.u32 [#allocation6], 4
      %s29 = int_to_ptr.vmem [resolvable:$true] %s28
      %34 = dma.hbm_to_vmem [thread:$0]  %s1, 6272, %s29, [#allocation7], 128, 128, 8
    $region9: #{tpu_custom_call.1} parent=1 // pred_fallthru
      _
    // Predicated region
    $region10: #{tpu_custom_call.1} parent=1 // pred_check
      _
    $region11: #{tpu_custom_call.1} parent=1 // pred_check_branch
      %36 = sbr.rel (0) target = $region13
    $region12: #{tpu_custom_call.1} parent=1 // pred_region
      _
    $region13: #{tpu_custom_call.1} parent=1 // pred_fallthru
      _
    // Predicated region
    $region14: #{tpu_custom_call.1} parent=1 // pred_check
      _
    $region15: #{tpu_custom_call.1} parent=1 // pred_check_branch
      %38 = sbr.rel (0) target = $region17
    $region16: #{tpu_custom_call.1} parent=1 // pred_region
      %39 = dma.done [#allocation4], 2048
    $region17: #{tpu_custom_call.1} parent=1 // pred_fallthru
      _
    // Predicated region
    $region18: #{tpu_custom_call.1} parent=1 // pred_check
      _
    $region19: #{tpu_custom_call.1} parent=1 // pred_check_branch
      %41 = sbr.rel (0) target = $region21
    $region20: #{tpu_custom_call.1} parent=1 // pred_region
      %42 = dma.done [#allocation7], 6272
    $region21: #{tpu_custom_call.1} parent=1 // pred_fallthru
      _
    %43 = vst [vmem:[#allocation2] sm:$0xff] 0.0
    %44 = vst [vmem:[#allocation2 + $0x8] sm:$0xff] 0.0
    %45 = vst [vmem:[#allocation2 + $0x10] sm:$0xff] 0.0
    %46 = vst [vmem:[#allocation2 + $0x18] sm:$0xff] 0.0
    %47 = vst [vmem:[#allocation2 + $0x20] sm:$0xff] 0.0
    %48 = vst [vmem:[#allocation2 + $0x28] sm:$0xff] 0.0
    %49 = vst [vmem:[#allocation2 + $0x30] sm:$0xff] 0.0
    %50 = vst [vmem:[#allocation2 + $0x38] sm:$0xff] 0.0
    %51 = vst [vmem:[#allocation2 + $0x40] sm:$0xff] 0.0
    %s52 = scalar_lea.vmem [#allocation2], 264
    %53 = vst [vmem:[%s52] sm:$0xff] 0.0
    %54 = vst [vmem:[%s52 + $0x8] sm:$0xff] 0.0
    %55 = vst [vmem:[%s52 + $0x10] sm:$0xff] 0.0
    %56 = vst [vmem:[%s52 + $0x18] sm:$0xff] 0.0
    %57 = vst [vmem:[%s52 + $0x20] sm:$0xff] 0.0
    %58 = vst [vmem:[%s52 + $0x28] sm:$0xff] 0.0
    %59 = vst [vmem:[%s52 + $0x30] sm:$0xff] 0.0
    %60 = vst [vmem:[%s52 + $0x38] sm:$0xff] 0.0
    %61 = vst [vmem:[%s52 + $0x40] sm:$0xff] 0.0
    %s62 = scalar_lea.vmem [#allocation2], 72
    %63 = vst [vmem:[%s62] sm:$0xff] 0.0
    %64 = vst [vmem:[%s62 + $0x18] sm:$0xff] 0.0
    %65 = vst [vmem:[%s62 + $0x30] sm:$0xff] 0.0
    %66 = vst [vmem:[%s62 + $0x48] sm:$0xff] 0.0
    %67 = vst [vmem:[%s62 + $0x60] sm:$0xff] 0.0
    %68 = vst [vmem:[%s62 + $0x78] sm:$0xff] 0.0
    %69 = vst [vmem:[%s62 + $0x90] sm:$0xff] 0.0
    %70 = vst [vmem:[%s62 + $0xa8] sm:$0xff] 0.0
    %71 = vst [vmem:[%s62 + $0x10] sm:$0xff] 0.0
    %72 = vst [vmem:[%s62 + $0x28] sm:$0xff] 0.0
    %73 = vst [vmem:[%s62 + $0x40] sm:$0xff] 0.0
    %74 = vst [vmem:[%s62 + $0x58] sm:$0xff] 0.0
    %75 = vst [vmem:[%s62 + $0x70] sm:$0xff] 0.0
    %76 = vst [vmem:[%s62 + $0x88] sm:$0xff] 0.0
    %77 = vst [vmem:[%s62 + $0xa0] sm:$0xff] 0.0
    %78 = vst [vmem:[%s62 + $0xb8] sm:$0xff] 0.0
    %v79 = vld [vmem:[%s2] sm:$0x1]
    %v81 = vlaneseq
    %v82 = vshrl.u32 %v81, 7
    %v83 = vsub.s32 0, %v82
    %v84 = vrot.slane %v79, %v83
    %v86 = vld [vmem:[#allocation3] sm:$0xff]
    %v87 = vld [vmem:[#allocation3 + $0x8] sm:$0xff]
    %v88 = vld [vmem:[#allocation3 + $0x10] sm:$0xff]
    %v89 = vld [vmem:[#allocation3 + $0x18] sm:$0xff]
    %v90 = vld [vmem:[#allocation3 + $0x20] sm:$0xff]
    %v91 = vld [vmem:[#allocation3 + $0x28] sm:$0xff]
    %v92 = vld [vmem:[#allocation3 + $0x30] sm:$0xff]
    %v93 = vld [vmem:[#allocation3 + $0x38] sm:$0xff]
    %94 = vst [vmem:[%s62 + $0x8] sm:$0xff] %v86
    %95 = vst [vmem:[%s62 + $0x20] sm:$0xff] %v87
    %96 = vst [vmem:[%s62 + $0x38] sm:$0xff] %v88
    %97 = vst [vmem:[%s62 + $0x50] sm:$0xff] %v89
    %98 = vst [vmem:[%s62 + $0x68] sm:$0xff] %v90
    %99 = vst [vmem:[%s62 + $0x80] sm:$0xff] %v91
    %100 = vst [vmem:[%s62 + $0x98] sm:$0xff] %v92
    %101 = vst [vmem:[%s62 + $0xb0] sm:$0xff] %v93
    %v102 = vld [vmem:[#allocation2 + $0x5] sm:$0xff]
    %v103 = vld [vmem:[#allocation2 + $0x1d] sm:$0xff]
    %v104 = vld [vmem:[#allocation2 + $0x35] sm:$0xff]
    %v105 = vld [vmem:[#allocation2 + $0x4d] sm:$0xff]
    %v106 = vld [vmem:[#allocation2 + $0x65] sm:$0xff]
    %v107 = vld [vmem:[#allocation2 + $0x7d] sm:$0xff]
    %v108 = vld [vmem:[#allocation2 + $0x95] sm:$0xff]
    %v109 = vld [vmem:[#allocation2 + $0xad] sm:$0xff]
    %v110 = vld [vmem:[#allocation2 + $0xc5] sm:$0xff]
    %v111 = vld [vmem:[#allocation2 + $0xdd] sm:$0xff]
    %v112 = vld [vmem:[#allocation2 + $0xf5] sm:$0xff]
    %v113 = vld [vmem:[#allocation2 + $0x10d] sm:$0xff]
    %v114 = vld [vmem:[#allocation2 + $0x125] sm:$0xff]
    %v115 = vld [vmem:[#allocation2 + $0x13d] sm:$0xff]
    %v116 = vld [vmem:[#allocation6] sm:$0xff]
    %v117 = vmul.f32 %v102, %v116
    %v118 = vmul.f32 %v103, %v116
    %v119 = vmul.f32 %v104, %v116
    %v120 = vmul.f32 %v105, %v116
    %v121 = vmul.f32 %v106, %v116
    %v122 = vmul.f32 %v107, %v116
    %v123 = vmul.f32 %v108, %v116
    %v124 = vmul.f32 %v109, %v116
    %v125 = vadd.f32 %v84, %v117
    %v126 = vadd.f32 %v84, %v118
    %v127 = vadd.f32 %v84, %v119
    %v128 = vadd.f32 %v84, %v120
    %v129 = vadd.f32 %v84, %v121
    %v130 = vadd.f32 %v84, %v122
    %v131 = vadd.f32 %v84, %v123
    %v132 = vadd.f32 %v84, %v124
    %s133 = scalar_lea.vmem [#allocation6], 56
    %v134 = vld [vmem:[%s133] sm:$0xff]
    %v135 = vmul.f32 %v103, %v134
    %v136 = vmul.f32 %v104, %v134
    %v137 = vmul.f32 %v105, %v134
    %v138 = vmul.f32 %v106, %v134
    %v139 = vmul.f32 %v107, %v134
    %v140 = vmul.f32 %v108, %v134
    %v141 = vmul.f32 %v109, %v134
    %v142 = vmul.f32 %v110, %v134
    %v143 = vadd.f32 %v125, %v135
    %v144 = vadd.f32 %v126, %v136
    %v145 = vadd.f32 %v127, %v137
    %v146 = vadd.f32 %v128, %v138
    %v147 = vadd.f32 %v129, %v139
    %v148 = vadd.f32 %v130, %v140
    %v149 = vadd.f32 %v131, %v141
    %v150 = vadd.f32 %v132, %v142
    %s151 = scalar_lea.vmem [#allocation6], 112
    %v152 = vld [vmem:[%s151] sm:$0xff]
    %v153 = vmul.f32 %v104, %v152
    %v154 = vmul.f32 %v105, %v152
    %v155 = vmul.f32 %v106, %v152
    %v156 = vmul.f32 %v107, %v152
    %v157 = vmul.f32 %v108, %v152
    %v158 = vmul.f32 %v109, %v152
    %v159 = vmul.f32 %v110, %v152
    %v160 = vmul.f32 %v111, %v152
    %v161 = vadd.f32 %v143, %v153
    %v162 = vadd.f32 %v144, %v154
    %v163 = vadd.f32 %v145, %v155
    %v164 = vadd.f32 %v146, %v156
    %v165 = vadd.f32 %v147, %v157
    %v166 = vadd.f32 %v148, %v158
    %v167 = vadd.f32 %v149, %v159
    %v168 = vadd.f32 %v150, %v160
    %s169 = scalar_lea.vmem [#allocation6], 168
    %v170 = vld [vmem:[%s169] sm:$0xff]
    %v171 = vmul.f32 %v105, %v170
    %v172 = vmul.f32 %v106, %v170
    %v173 = vmul.f32 %v107, %v170
    %v174 = vmul.f32 %v108, %v170
    %v175 = vmul.f32 %v109, %v170
    %v176 = vmul.f32 %v110, %v170
    %v177 = vmul.f32 %v111, %v170
    %v178 = vmul.f32 %v112, %v170
    %v179 = vadd.f32 %v161, %v171
    %v180 = vadd.f32 %v162, %v172
    %v181 = vadd.f32 %v163, %v173
    %v182 = vadd.f32 %v164, %v174
    %v183 = vadd.f32 %v165, %v175
    %v184 = vadd.f32 %v166, %v176
    %v185 = vadd.f32 %v167, %v177
    %v186 = vadd.f32 %v168, %v178
    %s187 = scalar_lea.vmem [#allocation6], 224
    %v188 = vld [vmem:[%s187] sm:$0xff]
    %v189 = vmul.f32 %v106, %v188
    %v190 = vmul.f32 %v107, %v188
    %v191 = vmul.f32 %v108, %v188
    %v192 = vmul.f32 %v109, %v188
    %v193 = vmul.f32 %v110, %v188
    %v194 = vmul.f32 %v111, %v188
    %v195 = vmul.f32 %v112, %v188
    %v196 = vmul.f32 %v113, %v188
    %v197 = vadd.f32 %v179, %v189
    %v198 = vadd.f32 %v180, %v190
    %v199 = vadd.f32 %v181, %v191
    %v200 = vadd.f32 %v182, %v192
    %v201 = vadd.f32 %v183, %v193
    %v202 = vadd.f32 %v184, %v194
    %v203 = vadd.f32 %v185, %v195
    %v204 = vadd.f32 %v186, %v196
    %s205 = scalar_lea.vmem [#allocation6], 280
    %v206 = vld [vmem:[%s205] sm:$0xff]
    %v207 = vmul.f32 %v107, %v206
    %v208 = vmul.f32 %v108, %v206
    %v209 = vmul.f32 %v109, %v206
    %v210 = vmul.f32 %v110, %v206
    %v211 = vmul.f32 %v111, %v206
    %v212 = vmul.f32 %v112, %v206
    %v213 = vmul.f32 %v113, %v206
    %v214 = vmul.f32 %v114, %v206
    %v215 = vadd.f32 %v197, %v207
    %v216 = vadd.f32 %v198, %v208
    %v217 = vadd.f32 %v199, %v209
    %v218 = vadd.f32 %v200, %v210
    %v219 = vadd.f32 %v201, %v211
    %v220 = vadd.f32 %v202, %v212
    %v221 = vadd.f32 %v203, %v213
    %v222 = vadd.f32 %v204, %v214
    %s223 = scalar_lea.vmem [#allocation6], 336
    %v224 = vld [vmem:[%s223] sm:$0xff]
    %v225 = vmul.f32 %v108, %v224
    %v226 = vmul.f32 %v109, %v224
    %v227 = vmul.f32 %v110, %v224
    %v228 = vmul.f32 %v111, %v224
    %v229 = vmul.f32 %v112, %v224
    %v230 = vmul.f32 %v113, %v224
    %v231 = vmul.f32 %v114, %v224
    %v232 = vmul.f32 %v115, %v224
    %v233 = vadd.f32 %v215, %v225
    %v234 = vadd.f32 %v216, %v226
    %v235 = vadd.f32 %v217, %v227
    %v236 = vadd.f32 %v218, %v228
    %v237 = vadd.f32 %v219, %v229
    %v238 = vadd.f32 %v220, %v230
    %v239 = vadd.f32 %v221, %v231
    %v240 = vadd.f32 %v222, %v232
    %v241 = vld [vmem:[#allocation2 + $0x6] sm:$0xff]
    %v242 = vld [vmem:[#allocation2 + $0x1e] sm:$0xff]
    %v243 = vld [vmem:[#allocation2 + $0x36] sm:$0xff]
    %v244 = vld [vmem:[#allocation2 + $0x4e] sm:$0xff]
    %v245 = vld [vmem:[#allocation2 + $0x66] sm:$0xff]
    %v246 = vld [vmem:[#allocation2 + $0x7e] sm:$0xff]
    %v247 = vld [vmem:[#allocation2 + $0x96] sm:$0xff]
    %v248 = vld [vmem:[#allocation2 + $0xae] sm:$0xff]
    %v249 = vld [vmem:[#allocation2 + $0xc6] sm:$0xff]
    %v250 = vld [vmem:[#allocation2 + $0xde] sm:$0xff]
    %v251 = vld [vmem:[#allocation2 + $0xf6] sm:$0xff]
    %v252 = vld [vmem:[#allocation2 + $0x10e] sm:$0xff]
    %v253 = vld [vmem:[#allocation2 + $0x126] sm:$0xff]
    %v254 = vld [vmem:[#allocation2 + $0x13e] sm:$0xff]
    %s255 = scalar_lea.vmem [#allocation6], 8
    %v256 = vld [vmem:[%s255] sm:$0xff]
    %v257 = vmul.f32 %v241, %v256
    %v258 = vmul.f32 %v242, %v256
    %v259 = vmul.f32 %v243, %v256
    %v260 = vmul.f32 %v244, %v256
    %v261 = vmul.f32 %v245, %v256
    %v262 = vmul.f32 %v246, %v256
    %v263 = vmul.f32 %v247, %v256
    %v264 = vmul.f32 %v248, %v256
    %v265 = vadd.f32 %v233, %v257
    %v266 = vadd.f32 %v234, %v258
    %v267 = vadd.f32 %v235, %v259
    %v268 = vadd.f32 %v236, %v260
    %v269 = vadd.f32 %v237, %v261
    %v270 = vadd.f32 %v238, %v262
    %v271 = vadd.f32 %v239, %v263
    %v272 = vadd.f32 %v240, %v264
    %s273 = scalar_lea.vmem [#allocation6], 64
    %v274 = vld [vmem:[%s273] sm:$0xff]
    %v275 = vmul.f32 %v242, %v274
    %v276 = vmul.f32 %v243, %v274
    %v277 = vmul.f32 %v244, %v274
    %v278 = vmul.f32 %v245, %v274
    %v279 = vmul.f32 %v246, %v274
    %v280 = vmul.f32 %v247, %v274
    %v281 = vmul.f32 %v248, %v274
    %v282 = vmul.f32 %v249, %v274
    %v283 = vadd.f32 %v265, %v275
    %v284 = vadd.f32 %v266, %v276
    %v285 = vadd.f32 %v267, %v277
    %v286 = vadd.f32 %v268, %v278
    %v287 = vadd.f32 %v269, %v279
    %v288 = vadd.f32 %v270, %v280
    %v289 = vadd.f32 %v271, %v281
    %v290 = vadd.f32 %v272, %v282
    %s291 = scalar_lea.vmem [#allocation6], 120
    %v292 = vld [vmem:[%s291] sm:$0xff]
    %v293 = vmul.f32 %v243, %v292
    %v294 = vmul.f32 %v244, %v292
    %v295 = vmul.f32 %v245, %v292
    %v296 = vmul.f32 %v246, %v292
    %v297 = vmul.f32 %v247, %v292
    %v298 = vmul.f32 %v248, %v292
    %v299 = vmul.f32 %v249, %v292
    %v300 = vmul.f32 %v250, %v292
    %v301 = vadd.f32 %v283, %v293
    %v302 = vadd.f32 %v284, %v294
    %v303 = vadd.f32 %v285, %v295
    %v304 = vadd.f32 %v286, %v296
    %v305 = vadd.f32 %v287, %v297
    %v306 = vadd.f32 %v288, %v298
    %v307 = vadd.f32 %v289, %v299
    %v308 = vadd.f32 %v290, %v300
    %s309 = scalar_lea.vmem [#allocation6], 176
    %v310 = vld [vmem:[%s309] sm:$0xff]
    %v311 = vmul.f32 %v244, %v310
    %v312 = vmul.f32 %v245, %v310
    %v313 = vmul.f32 %v246, %v310
    %v314 = vmul.f32 %v247, %v310
    %v315 = vmul.f32 %v248, %v310
    %v316 = vmul.f32 %v249, %v310
    %v317 = vmul.f32 %v250, %v310
    %v318 = vmul.f32 %v251, %v310
    %v319 = vadd.f32 %v301, %v311
    %v320 = vadd.f32 %v302, %v312
    %v321 = vadd.f32 %v303, %v313
    %v322 = vadd.f32 %v304, %v314
    %v323 = vadd.f32 %v305, %v315
    %v324 = vadd.f32 %v306, %v316
    %v325 = vadd.f32 %v307, %v317
    %v326 = vadd.f32 %v308, %v318
    %s327 = scalar_lea.vmem [#allocation6], 232
    %v328 = vld [vmem:[%s327] sm:$0xff]
    %v329 = vmul.f32 %v245, %v328
    %v330 = vmul.f32 %v246, %v328
    %v331 = vmul.f32 %v247, %v328
    %v332 = vmul.f32 %v248, %v328
    %v333 = vmul.f32 %v249, %v328
    %v334 = vmul.f32 %v250, %v328
    %v335 = vmul.f32 %v251, %v328
    %v336 = vmul.f32 %v252, %v328
    %v337 = vadd.f32 %v319, %v329
    %v338 = vadd.f32 %v320, %v330
    %v339 = vadd.f32 %v321, %v331
    %v340 = vadd.f32 %v322, %v332
    %v341 = vadd.f32 %v323, %v333
    %v342 = vadd.f32 %v324, %v334
    %v343 = vadd.f32 %v325, %v335
    %v344 = vadd.f32 %v326, %v336
    %s345 = scalar_lea.vmem [#allocation6], 288
    %v346 = vld [vmem:[%s345] sm:$0xff]
    %v347 = vmul.f32 %v246, %v346
    %v348 = vmul.f32 %v247, %v346
    %v349 = vmul.f32 %v248, %v346
    %v350 = vmul.f32 %v249, %v346
    %v351 = vmul.f32 %v250, %v346
    %v352 = vmul.f32 %v251, %v346
    %v353 = vmul.f32 %v252, %v346
    %v354 = vmul.f32 %v253, %v346
    %v355 = vadd.f32 %v337, %v347
    %v356 = vadd.f32 %v338, %v348
    %v357 = vadd.f32 %v339, %v349
    %v358 = vadd.f32 %v340, %v350
    %v359 = vadd.f32 %v341, %v351
    %v360 = vadd.f32 %v342, %v352
    %v361 = vadd.f32 %v343, %v353
    %v362 = vadd.f32 %v344, %v354
    %s363 = scalar_lea.vmem [#allocation6], 344
    %v364 = vld [vmem:[%s363] sm:$0xff]
    %v365 = vmul.f32 %v247, %v364
    %v366 = vmul.f32 %v248, %v364
    %v367 = vmul.f32 %v249, %v364
    %v368 = vmul.f32 %v250, %v364
    %v369 = vmul.f32 %v251, %v364
    %v370 = vmul.f32 %v252, %v364
    %v371 = vmul.f32 %v253, %v364
    %v372 = vmul.f32 %v254, %v364
    %v373 = vadd.f32 %v355, %v365
    %v374 = vadd.f32 %v356, %v366
    %v375 = vadd.f32 %v357, %v367
    %v376 = vadd.f32 %v358, %v368
    %v377 = vadd.f32 %v359, %v369
    %v378 = vadd.f32 %v360, %v370
    %v379 = vadd.f32 %v361, %v371
    %v380 = vadd.f32 %v362, %v372
    %v381 = vld [vmem:[#allocation2 + $0x7] sm:$0xff]
    %v382 = vld [vmem:[#allocation2 + $0x1f] sm:$0xff]
    %v383 = vld [vmem:[#allocation2 + $0x37] sm:$0xff]
    %v384 = vld [vmem:[#allocation2 + $0x4f] sm:$0xff]
    %v385 = vld [vmem:[#allocation2 + $0x67] sm:$0xff]
    %v386 = vld [vmem:[#allocation2 + $0x7f] sm:$0xff]
    %v387 = vld [vmem:[#allocation2 + $0x97] sm:$0xff]
    %v388 = vld [vmem:[#allocation2 + $0xaf] sm:$0xff]
    %v389 = vld [vmem:[#allocation2 + $0xc7] sm:$0xff]
    %v390 = vld [vmem:[#allocation2 + $0xdf] sm:$0xff]
    %v391 = vld [vmem:[#allocation2 + $0xf7] sm:$0xff]
    %v392 = vld [vmem:[#allocation2 + $0x10f] sm:$0xff]
    %v393 = vld [vmem:[#allocation2 + $0x127] sm:$0xff]
    %v394 = vld [vmem:[#allocation2 + $0x13f] sm:$0xff]
    %s395 = scalar_lea.vmem [#allocation6], 16
    %v396 = vld [vmem:[%s395] sm:$0xff]
    %v397 = vmul.f32 %v381, %v396
    %v398 = vmul.f32 %v382, %v396
    %v399 = vmul.f32 %v383, %v396
    %v400 = vmul.f32 %v384, %v396
    %v401 = vmul.f32 %v385, %v396
    %v402 = vmul.f32 %v386, %v396
    %v403 = vmul.f32 %v387, %v396
    %v404 = vmul.f32 %v388, %v396
    %v405 = vadd.f32 %v373, %v397
    %v406 = vadd.f32 %v374, %v398
    %v407 = vadd.f32 %v375, %v399
    %v408 = vadd.f32 %v376, %v400
    %v409 = vadd.f32 %v377, %v401
    %v410 = vadd.f32 %v378, %v402
    %v411 = vadd.f32 %v379, %v403
    %v412 = vadd.f32 %v380, %v404
    %s413 = scalar_lea.vmem [#allocation6], 72
    %v414 = vld [vmem:[%s413] sm:$0xff]
    %v415 = vmul.f32 %v382, %v414
    %v416 = vmul.f32 %v383, %v414
    %v417 = vmul.f32 %v384, %v414
    %v418 = vmul.f32 %v385, %v414
    %v419 = vmul.f32 %v386, %v414
    %v420 = vmul.f32 %v387, %v414
    %v421 = vmul.f32 %v388, %v414
    %v422 = vmul.f32 %v389, %v414
    %v423 = vadd.f32 %v405, %v415
    %v424 = vadd.f32 %v406, %v416
    %v425 = vadd.f32 %v407, %v417
    %v426 = vadd.f32 %v408, %v418
    %v427 = vadd.f32 %v409, %v419
    %v428 = vadd.f32 %v410, %v420
    %v429 = vadd.f32 %v411, %v421
    %v430 = vadd.f32 %v412, %v422
    %s431 = scalar_lea.vmem [#allocation6], 128
    %v432 = vld [vmem:[%s431] sm:$0xff]
    %v433 = vmul.f32 %v383, %v432
    %v434 = vmul.f32 %v384, %v432
    %v435 = vmul.f32 %v385, %v432
    %v436 = vmul.f32 %v386, %v432
    %v437 = vmul.f32 %v387, %v432
    %v438 = vmul.f32 %v388, %v432
    %v439 = vmul.f32 %v389, %v432
    %v440 = vmul.f32 %v390, %v432
    %v441 = vadd.f32 %v423, %v433
    %v442 = vadd.f32 %v424, %v434
    %v443 = vadd.f32 %v425, %v435
    %v444 = vadd.f32 %v426, %v436
    %v445 = vadd.f32 %v427, %v437
    %v446 = vadd.f32 %v428, %v438
    %v447 = vadd.f32 %v429, %v439
    %v448 = vadd.f32 %v430, %v440
    %s449 = scalar_lea.vmem [#allocation6], 184
    %v450 = vld [vmem:[%s449] sm:$0xff]
    %v451 = vmul.f32 %v384, %v450
    %v452 = vmul.f32 %v385, %v450
    %v453 = vmul.f32 %v386, %v450
    %v454 = vmul.f32 %v387, %v450
    %v455 = vmul.f32 %v388, %v450
    %v456 = vmul.f32 %v389, %v450
    %v457 = vmul.f32 %v390, %v450
    %v458 = vmul.f32 %v391, %v450
    %v459 = vadd.f32 %v441, %v451
    %v460 = vadd.f32 %v442, %v452
    %v461 = vadd.f32 %v443, %v453
    %v462 = vadd.f32 %v444, %v454
    %v463 = vadd.f32 %v445, %v455
    %v464 = vadd.f32 %v446, %v456
    %v465 = vadd.f32 %v447, %v457
    %v466 = vadd.f32 %v448, %v458
    %s467 = scalar_lea.vmem [#allocation6], 240
    %v468 = vld [vmem:[%s467] sm:$0xff]
    %v469 = vmul.f32 %v385, %v468
    %v470 = vmul.f32 %v386, %v468
    %v471 = vmul.f32 %v387, %v468
    %v472 = vmul.f32 %v388, %v468
    %v473 = vmul.f32 %v389, %v468
    %v474 = vmul.f32 %v390, %v468
    %v475 = vmul.f32 %v391, %v468
    %v476 = vmul.f32 %v392, %v468
    %v477 = vadd.f32 %v459, %v469
    %v478 = vadd.f32 %v460, %v470
    %v479 = vadd.f32 %v461, %v471
    %v480 = vadd.f32 %v462, %v472
    %v481 = vadd.f32 %v463, %v473
    %v482 = vadd.f32 %v464, %v474
    %v483 = vadd.f32 %v465, %v475
    %v484 = vadd.f32 %v466, %v476
    %s485 = scalar_lea.vmem [#allocation6], 296
    %v486 = vld [vmem:[%s485] sm:$0xff]
    %v487 = vmul.f32 %v386, %v486
    %v488 = vmul.f32 %v387, %v486
    %v489 = vmul.f32 %v388, %v486
    %v490 = vmul.f32 %v389, %v486
    %v491 = vmul.f32 %v390, %v486
    %v492 = vmul.f32 %v391, %v486
    %v493 = vmul.f32 %v392, %v486
    %v494 = vmul.f32 %v393, %v486
    %v495 = vadd.f32 %v477, %v487
    %v496 = vadd.f32 %v478, %v488
    %v497 = vadd.f32 %v479, %v489
    %v498 = vadd.f32 %v480, %v490
    %v499 = vadd.f32 %v481, %v491
    %v500 = vadd.f32 %v482, %v492
    %v501 = vadd.f32 %v483, %v493
    %v502 = vadd.f32 %v484, %v494
    %s503 = scalar_lea.vmem [#allocation6], 352
    %v504 = vld [vmem:[%s503] sm:$0xff]
    %v505 = vmul.f32 %v387, %v504
    %v506 = vmul.f32 %v388, %v504
    %v507 = vmul.f32 %v389, %v504
    %v508 = vmul.f32 %v390, %v504
    %v509 = vmul.f32 %v391, %v504
    %v510 = vmul.f32 %v392, %v504
    %v511 = vmul.f32 %v393, %v504
    %v512 = vmul.f32 %v394, %v504
    %v513 = vadd.f32 %v495, %v505
    %v514 = vadd.f32 %v496, %v506
    %v515 = vadd.f32 %v497, %v507
    %v516 = vadd.f32 %v498, %v508
    %v517 = vadd.f32 %v499, %v509
    %v518 = vadd.f32 %v500, %v510
    %v519 = vadd.f32 %v501, %v511
    %v520 = vadd.f32 %v502, %v512
    %v521 = vld [vmem:[#allocation2 + $0x8] sm:$0xff]
    %v522 = vld [vmem:[#allocation2 + $0x20] sm:$0xff]
    %v523 = vld [vmem:[#allocation2 + $0x38] sm:$0xff]
    %v524 = vld [vmem:[#allocation2 + $0x50] sm:$0xff]
    %v525 = vld [vmem:[#allocation2 + $0x68] sm:$0xff]
    %v526 = vld [vmem:[#allocation2 + $0x80] sm:$0xff]
    %v527 = vld [vmem:[#allocation2 + $0x98] sm:$0xff]
    %v528 = vld [vmem:[#allocation2 + $0xb0] sm:$0xff]
    %v529 = vld [vmem:[#allocation2 + $0xc8] sm:$0xff]
    %v530 = vld [vmem:[#allocation2 + $0xe0] sm:$0xff]
    %v531 = vld [vmem:[#allocation2 + $0xf8] sm:$0xff]
    %v532 = vld [vmem:[#allocation2 + $0x110] sm:$0xff]
    %v533 = vld [vmem:[#allocation2 + $0x128] sm:$0xff]
    %v534 = vld [vmem:[#allocation2 + $0x140] sm:$0xff]
    %s535 = scalar_lea.vmem [#allocation6], 24
    %v536 = vld [vmem:[%s535] sm:$0xff]
    %v537 = vmul.f32 %v521, %v536
    %v538 = vmul.f32 %v522, %v536
    %v539 = vmul.f32 %v523, %v536
    %v540 = vmul.f32 %v524, %v536
    %v541 = vmul.f32 %v525, %v536
    %v542 = vmul.f32 %v526, %v536
    %v543 = vmul.f32 %v527, %v536
    %v544 = vmul.f32 %v528, %v536
    %v545 = vadd.f32 %v513, %v537
    %v546 = vadd.f32 %v514, %v538
    %v547 = vadd.f32 %v515, %v539
    %v548 = vadd.f32 %v516, %v540
    %v549 = vadd.f32 %v517, %v541
    %v550 = vadd.f32 %v518, %v542
    %v551 = vadd.f32 %v519, %v543
    %v552 = vadd.f32 %v520, %v544
    %s553 = scalar_lea.vmem [#allocation6], 80
    %v554 = vld [vmem:[%s553] sm:$0xff]
    %v555 = vmul.f32 %v522, %v554
    %v556 = vmul.f32 %v523, %v554
    %v557 = vmul.f32 %v524, %v554
    %v558 = vmul.f32 %v525, %v554
    %v559 = vmul.f32 %v526, %v554
    %v560 = vmul.f32 %v527, %v554
    %v561 = vmul.f32 %v528, %v554
    %v562 = vmul.f32 %v529, %v554
    %v563 = vadd.f32 %v545, %v555
    %v564 = vadd.f32 %v546, %v556
    %v565 = vadd.f32 %v547, %v557
    %v566 = vadd.f32 %v548, %v558
    %v567 = vadd.f32 %v549, %v559
    %v568 = vadd.f32 %v550, %v560
    %v569 = vadd.f32 %v551, %v561
    %v570 = vadd.f32 %v552, %v562
    %s571 = scalar_lea.vmem [#allocation6], 136
    %v572 = vld [vmem:[%s571] sm:$0xff]
    %v573 = vmul.f32 %v523, %v572
    %v574 = vmul.f32 %v524, %v572
    %v575 = vmul.f32 %v525, %v572
    %v576 = vmul.f32 %v526, %v572
    %v577 = vmul.f32 %v527, %v572
    %v578 = vmul.f32 %v528, %v572
    %v579 = vmul.f32 %v529, %v572
    %v580 = vmul.f32 %v530, %v572
    %v581 = vadd.f32 %v563, %v573
    %v582 = vadd.f32 %v564, %v574
    %v583 = vadd.f32 %v565, %v575
    %v584 = vadd.f32 %v566, %v576
    %v585 = vadd.f32 %v567, %v577
    %v586 = vadd.f32 %v568, %v578
    %v587 = vadd.f32 %v569, %v579
    %v588 = vadd.f32 %v570, %v580
    %s589 = scalar_lea.vmem [#allocation6], 192
    %v590 = vld [vmem:[%s589] sm:$0xff]
    %v591 = vmul.f32 %v524, %v590
    %v592 = vmul.f32 %v525, %v590
    %v593 = vmul.f32 %v526, %v590
    %v594 = vmul.f32 %v527, %v590
    %v595 = vmul.f32 %v528, %v590
    %v596 = vmul.f32 %v529, %v590
    %v597 = vmul.f32 %v530, %v590
    %v598 = vmul.f32 %v531, %v590
    %v599 = vadd.f32 %v581, %v591
    %v600 = vadd.f32 %v582, %v592
    %v601 = vadd.f32 %v583, %v593
    %v602 = vadd.f32 %v584, %v594
    %v603 = vadd.f32 %v585, %v595
    %v604 = vadd.f32 %v586, %v596
    %v605 = vadd.f32 %v587, %v597
    %v606 = vadd.f32 %v588, %v598
    %s607 = scalar_lea.vmem [#allocation6], 248
    %v608 = vld [vmem:[%s607] sm:$0xff]
    %v609 = vmul.f32 %v525, %v608
    %v610 = vmul.f32 %v526, %v608
    %v611 = vmul.f32 %v527, %v608
    %v612 = vmul.f32 %v528, %v608
    %v613 = vmul.f32 %v529, %v608
    %v614 = vmul.f32 %v530, %v608
    %v615 = vmul.f32 %v531, %v608
    %v616 = vmul.f32 %v532, %v608
    %v617 = vadd.f32 %v599, %v609
    %v618 = vadd.f32 %v600, %v610
    %v619 = vadd.f32 %v601, %v611
    %v620 = vadd.f32 %v602, %v612
    %v621 = vadd.f32 %v603, %v613
    %v622 = vadd.f32 %v604, %v614
    %v623 = vadd.f32 %v605, %v615
    %v624 = vadd.f32 %v606, %v616
    %s625 = scalar_lea.vmem [#allocation6], 304
    %v626 = vld [vmem:[%s625] sm:$0xff]
    %v627 = vmul.f32 %v526, %v626
    %v628 = vmul.f32 %v527, %v626
    %v629 = vmul.f32 %v528, %v626
    %v630 = vmul.f32 %v529, %v626
    %v631 = vmul.f32 %v530, %v626
    %v632 = vmul.f32 %v531, %v626
    %v633 = vmul.f32 %v532, %v626
    %v634 = vmul.f32 %v533, %v626
    %v635 = vadd.f32 %v617, %v627
    %v636 = vadd.f32 %v618, %v628
    %v637 = vadd.f32 %v619, %v629
    %v638 = vadd.f32 %v620, %v630
    %v639 = vadd.f32 %v621, %v631
    %v640 = vadd.f32 %v622, %v632
    %v641 = vadd.f32 %v623, %v633
    %v642 = vadd.f32 %v624, %v634
    %s643 = scalar_lea.vmem [#allocation6], 360
    %v644 = vld [vmem:[%s643] sm:$0xff]
    %v645 = vmul.f32 %v527, %v644
    %v646 = vmul.f32 %v528, %v644
    %v647 = vmul.f32 %v529, %v644
    %v648 = vmul.f32 %v530, %v644
    %v649 = vmul.f32 %v531, %v644
    %v650 = vmul.f32 %v532, %v644
    %v651 = vmul.f32 %v533, %v644
    %v652 = vmul.f32 %v534, %v644
    %v653 = vadd.f32 %v635, %v645
    %v654 = vadd.f32 %v636, %v646
    %v655 = vadd.f32 %v637, %v647
    %v656 = vadd.f32 %v638, %v648
    %v657 = vadd.f32 %v639, %v649
    %v658 = vadd.f32 %v640, %v650
    %v659 = vadd.f32 %v641, %v651
    %v660 = vadd.f32 %v642, %v652
    %v661 = vld [vmem:[#allocation2 + $0x9] sm:$0xff]
    %v662 = vld [vmem:[#allocation2 + $0x21] sm:$0xff]
    %v663 = vld [vmem:[#allocation2 + $0x39] sm:$0xff]
    %v664 = vld [vmem:[#allocation2 + $0x51] sm:$0xff]
    %v665 = vld [vmem:[#allocation2 + $0x69] sm:$0xff]
    %v666 = vld [vmem:[#allocation2 + $0x81] sm:$0xff]
    %v667 = vld [vmem:[#allocation2 + $0x99] sm:$0xff]
    %v668 = vld [vmem:[#allocation2 + $0xb1] sm:$0xff]
    %v669 = vld [vmem:[#allocation2 + $0xc9] sm:$0xff]
    %v670 = vld [vmem:[#allocation2 + $0xe1] sm:$0xff]
    %v671 = vld [vmem:[#allocation2 + $0xf9] sm:$0xff]
    %v672 = vld [vmem:[#allocation2 + $0x111] sm:$0xff]
    %v673 = vld [vmem:[#allocation2 + $0x129] sm:$0xff]
    %v674 = vld [vmem:[#allocation2 + $0x141] sm:$0xff]
    %s675 = scalar_lea.vmem [#allocation6], 32
    %v676 = vld [vmem:[%s675] sm:$0xff]
    %v677 = vmul.f32 %v661, %v676
    %v678 = vmul.f32 %v662, %v676
    %v679 = vmul.f32 %v663, %v676
    %v680 = vmul.f32 %v664, %v676
    %v681 = vmul.f32 %v665, %v676
    %v682 = vmul.f32 %v666, %v676
    %v683 = vmul.f32 %v667, %v676
    %v684 = vmul.f32 %v668, %v676
    %v685 = vadd.f32 %v653, %v677
    %v686 = vadd.f32 %v654, %v678
    %v687 = vadd.f32 %v655, %v679
    %v688 = vadd.f32 %v656, %v680
    %v689 = vadd.f32 %v657, %v681
    %v690 = vadd.f32 %v658, %v682
    %v691 = vadd.f32 %v659, %v683
    %v692 = vadd.f32 %v660, %v684
    %s693 = scalar_lea.vmem [#allocation6], 88
    %v694 = vld [vmem:[%s693] sm:$0xff]
    %v695 = vmul.f32 %v662, %v694
    %v696 = vmul.f32 %v663, %v694
    %v697 = vmul.f32 %v664, %v694
    %v698 = vmul.f32 %v665, %v694
    %v699 = vmul.f32 %v666, %v694
    %v700 = vmul.f32 %v667, %v694
    %v701 = vmul.f32 %v668, %v694
    %v702 = vmul.f32 %v669, %v694
    %v703 = vadd.f32 %v685, %v695
    %v704 = vadd.f32 %v686, %v696
    %v705 = vadd.f32 %v687, %v697
    %v706 = vadd.f32 %v688, %v698
    %v707 = vadd.f32 %v689, %v699
    %v708 = vadd.f32 %v690, %v700
    %v709 = vadd.f32 %v691, %v701
    %v710 = vadd.f32 %v692, %v702
    %s711 = scalar_lea.vmem [#allocation6], 144
    %v712 = vld [vmem:[%s711] sm:$0xff]
    %v713 = vmul.f32 %v663, %v712
    %v714 = vmul.f32 %v664, %v712
    %v715 = vmul.f32 %v665, %v712
    %v716 = vmul.f32 %v666, %v712
    %v717 = vmul.f32 %v667, %v712
    %v718 = vmul.f32 %v668, %v712
    %v719 = vmul.f32 %v669, %v712
    %v720 = vmul.f32 %v670, %v712
    %v721 = vadd.f32 %v703, %v713
    %v722 = vadd.f32 %v704, %v714
    %v723 = vadd.f32 %v705, %v715
    %v724 = vadd.f32 %v706, %v716
    %v725 = vadd.f32 %v707, %v717
    %v726 = vadd.f32 %v708, %v718
    %v727 = vadd.f32 %v709, %v719
    %v728 = vadd.f32 %v710, %v720
    %s729 = scalar_lea.vmem [#allocation6], 200
    %v730 = vld [vmem:[%s729] sm:$0xff]
    %v731 = vmul.f32 %v664, %v730
    %v732 = vmul.f32 %v665, %v730
    %v733 = vmul.f32 %v666, %v730
    %v734 = vmul.f32 %v667, %v730
    %v735 = vmul.f32 %v668, %v730
    %v736 = vmul.f32 %v669, %v730
    %v737 = vmul.f32 %v670, %v730
    %v738 = vmul.f32 %v671, %v730
    %v739 = vadd.f32 %v721, %v731
    %v740 = vadd.f32 %v722, %v732
    %v741 = vadd.f32 %v723, %v733
    %v742 = vadd.f32 %v724, %v734
    %v743 = vadd.f32 %v725, %v735
    %v744 = vadd.f32 %v726, %v736
    %v745 = vadd.f32 %v727, %v737
    %v746 = vadd.f32 %v728, %v738
    %s747 = scalar_lea.vmem [#allocation6], 256
    %v748 = vld [vmem:[%s747] sm:$0xff]
    %v749 = vmul.f32 %v665, %v748
    %v750 = vmul.f32 %v666, %v748
    %v751 = vmul.f32 %v667, %v748
    %v752 = vmul.f32 %v668, %v748
    %v753 = vmul.f32 %v669, %v748
    %v754 = vmul.f32 %v670, %v748
    %v755 = vmul.f32 %v671, %v748
    %v756 = vmul.f32 %v672, %v748
    %v757 = vadd.f32 %v739, %v749
    %v758 = vadd.f32 %v740, %v750
    %v759 = vadd.f32 %v741, %v751
    %v760 = vadd.f32 %v742, %v752
    %v761 = vadd.f32 %v743, %v753
    %v762 = vadd.f32 %v744, %v754
    %v763 = vadd.f32 %v745, %v755
    %v764 = vadd.f32 %v746, %v756
    %s765 = scalar_lea.vmem [#allocation6], 312
    %v766 = vld [vmem:[%s765] sm:$0xff]
    %v767 = vmul.f32 %v666, %v766
    %v768 = vmul.f32 %v667, %v766
    %v769 = vmul.f32 %v668, %v766
    %v770 = vmul.f32 %v669, %v766
    %v771 = vmul.f32 %v670, %v766
    %v772 = vmul.f32 %v671, %v766
    %v773 = vmul.f32 %v672, %v766
    %v774 = vmul.f32 %v673, %v766
    %v775 = vadd.f32 %v757, %v767
    %v776 = vadd.f32 %v758, %v768
    %v777 = vadd.f32 %v759, %v769
    %v778 = vadd.f32 %v760, %v770
    %v779 = vadd.f32 %v761, %v771
    %v780 = vadd.f32 %v762, %v772
    %v781 = vadd.f32 %v763, %v773
    %v782 = vadd.f32 %v764, %v774
    %s783 = scalar_lea.vmem [#allocation6], 368
    %v784 = vld [vmem:[%s783] sm:$0xff]
    %v785 = vmul.f32 %v667, %v784
    %v786 = vmul.f32 %v668, %v784
    %v787 = vmul.f32 %v669, %v784
    %v788 = vmul.f32 %v670, %v784
    %v789 = vmul.f32 %v671, %v784
    %v790 = vmul.f32 %v672, %v784
    %v791 = vmul.f32 %v673, %v784
    %v792 = vmul.f32 %v674, %v784
    %v793 = vadd.f32 %v775, %v785
    %v794 = vadd.f32 %v776, %v786
    %v795 = vadd.f32 %v777, %v787
    %v796 = vadd.f32 %v778, %v788
    %v797 = vadd.f32 %v779, %v789
    %v798 = vadd.f32 %v780, %v790
    %v799 = vadd.f32 %v781, %v791
    %v800 = vadd.f32 %v782, %v792
    %v801 = vld [vmem:[#allocation2 + $0xa] sm:$0xff]
    %v802 = vld [vmem:[#allocation2 + $0x22] sm:$0xff]
    %v803 = vld [vmem:[#allocation2 + $0x3a] sm:$0xff]
    %v804 = vld [vmem:[#allocation2 + $0x52] sm:$0xff]
    %v805 = vld [vmem:[#allocation2 + $0x6a] sm:$0xff]
    %v806 = vld [vmem:[#allocation2 + $0x82] sm:$0xff]
    %v807 = vld [vmem:[#allocation2 + $0x9a] sm:$0xff]
    %v808 = vld [vmem:[#allocation2 + $0xb2] sm:$0xff]
    %v809 = vld [vmem:[#allocation2 + $0xca] sm:$0xff]
    %v810 = vld [vmem:[#allocation2 + $0xe2] sm:$0xff]
    %v811 = vld [vmem:[#allocation2 + $0xfa] sm:$0xff]
    %v812 = vld [vmem:[#allocation2 + $0x112] sm:$0xff]
    %v813 = vld [vmem:[#allocation2 + $0x12a] sm:$0xff]
    %v814 = vld [vmem:[#allocation2 + $0x142] sm:$0xff]
    %s815 = scalar_lea.vmem [#allocation6], 40
    %v816 = vld [vmem:[%s815] sm:$0xff]
    %v817 = vmul.f32 %v801, %v816
    %v818 = vmul.f32 %v802, %v816
    %v819 = vmul.f32 %v803, %v816
    %v820 = vmul.f32 %v804, %v816
    %v821 = vmul.f32 %v805, %v816
    %v822 = vmul.f32 %v806, %v816
    %v823 = vmul.f32 %v807, %v816
    %v824 = vmul.f32 %v808, %v816
    %v825 = vadd.f32 %v793, %v817
    %v826 = vadd.f32 %v794, %v818
    %v827 = vadd.f32 %v795, %v819
    %v828 = vadd.f32 %v796, %v820
    %v829 = vadd.f32 %v797, %v821
    %v830 = vadd.f32 %v798, %v822
    %v831 = vadd.f32 %v799, %v823
    %v832 = vadd.f32 %v800, %v824
    %s833 = scalar_lea.vmem [#allocation6], 96
    %v834 = vld [vmem:[%s833] sm:$0xff]
    %v835 = vmul.f32 %v802, %v834
    %v836 = vmul.f32 %v803, %v834
    %v837 = vmul.f32 %v804, %v834
    %v838 = vmul.f32 %v805, %v834
    %v839 = vmul.f32 %v806, %v834
    %v840 = vmul.f32 %v807, %v834
    %v841 = vmul.f32 %v808, %v834
    %v842 = vmul.f32 %v809, %v834
    %v843 = vadd.f32 %v825, %v835
    %v844 = vadd.f32 %v826, %v836
    %v845 = vadd.f32 %v827, %v837
    %v846 = vadd.f32 %v828, %v838
    %v847 = vadd.f32 %v829, %v839
    %v848 = vadd.f32 %v830, %v840
    %v849 = vadd.f32 %v831, %v841
    %v850 = vadd.f32 %v832, %v842
    %s851 = scalar_lea.vmem [#allocation6], 152
    %v852 = vld [vmem:[%s851] sm:$0xff]
    %v853 = vmul.f32 %v803, %v852
    %v854 = vmul.f32 %v804, %v852
    %v855 = vmul.f32 %v805, %v852
    %v856 = vmul.f32 %v806, %v852
    %v857 = vmul.f32 %v807, %v852
    %v858 = vmul.f32 %v808, %v852
    %v859 = vmul.f32 %v809, %v852
    %v860 = vmul.f32 %v810, %v852
    %v861 = vadd.f32 %v843, %v853
    %v862 = vadd.f32 %v844, %v854
    %v863 = vadd.f32 %v845, %v855
    %v864 = vadd.f32 %v846, %v856
    %v865 = vadd.f32 %v847, %v857
    %v866 = vadd.f32 %v848, %v858
    %v867 = vadd.f32 %v849, %v859
    %v868 = vadd.f32 %v850, %v860
    %s869 = scalar_lea.vmem [#allocation6], 208
    %v870 = vld [vmem:[%s869] sm:$0xff]
    %v871 = vmul.f32 %v804, %v870
    %v872 = vmul.f32 %v805, %v870
    %v873 = vmul.f32 %v806, %v870
    %v874 = vmul.f32 %v807, %v870
    %v875 = vmul.f32 %v808, %v870
    %v876 = vmul.f32 %v809, %v870
    %v877 = vmul.f32 %v810, %v870
    %v878 = vmul.f32 %v811, %v870
    %v879 = vadd.f32 %v861, %v871
    %v880 = vadd.f32 %v862, %v872
    %v881 = vadd.f32 %v863, %v873
    %v882 = vadd.f32 %v864, %v874
    %v883 = vadd.f32 %v865, %v875
    %v884 = vadd.f32 %v866, %v876
    %v885 = vadd.f32 %v867, %v877
    %v886 = vadd.f32 %v868, %v878
    %s887 = scalar_lea.vmem [#allocation6], 264
    %v888 = vld [vmem:[%s887] sm:$0xff]
    %v889 = vmul.f32 %v805, %v888
    %v890 = vmul.f32 %v806, %v888
    %v891 = vmul.f32 %v807, %v888
    %v892 = vmul.f32 %v808, %v888
    %v893 = vmul.f32 %v809, %v888
    %v894 = vmul.f32 %v810, %v888
    %v895 = vmul.f32 %v811, %v888
    %v896 = vmul.f32 %v812, %v888
    %v897 = vadd.f32 %v879, %v889
    %v898 = vadd.f32 %v880, %v890
    %v899 = vadd.f32 %v881, %v891
    %v900 = vadd.f32 %v882, %v892
    %v901 = vadd.f32 %v883, %v893
    %v902 = vadd.f32 %v884, %v894
    %v903 = vadd.f32 %v885, %v895
    %v904 = vadd.f32 %v886, %v896
    %s905 = scalar_lea.vmem [#allocation6], 320
    %v906 = vld [vmem:[%s905] sm:$0xff]
    %v907 = vmul.f32 %v806, %v906
    %v908 = vmul.f32 %v807, %v906
    %v909 = vmul.f32 %v808, %v906
    %v910 = vmul.f32 %v809, %v906
    %v911 = vmul.f32 %v810, %v906
    %v912 = vmul.f32 %v811, %v906
    %v913 = vmul.f32 %v812, %v906
    %v914 = vmul.f32 %v813, %v906
    %v915 = vadd.f32 %v897, %v907
    %v916 = vadd.f32 %v898, %v908
    %v917 = vadd.f32 %v899, %v909
    %v918 = vadd.f32 %v900, %v910
    %v919 = vadd.f32 %v901, %v911
    %v920 = vadd.f32 %v902, %v912
    %v921 = vadd.f32 %v903, %v913
    %v922 = vadd.f32 %v904, %v914
    %s923 = scalar_lea.vmem [#allocation6], 376
    %v924 = vld [vmem:[%s923] sm:$0xff]
    %v925 = vmul.f32 %v807, %v924
    %v926 = vmul.f32 %v808, %v924
    %v927 = vmul.f32 %v809, %v924
    %v928 = vmul.f32 %v810, %v924
    %v929 = vmul.f32 %v811, %v924
    %v930 = vmul.f32 %v812, %v924
    %v931 = vmul.f32 %v813, %v924
    %v932 = vmul.f32 %v814, %v924
    %v933 = vadd.f32 %v915, %v925
    %v934 = vadd.f32 %v916, %v926
    %v935 = vadd.f32 %v917, %v927
    %v936 = vadd.f32 %v918, %v928
    %v937 = vadd.f32 %v919, %v929
    %v938 = vadd.f32 %v920, %v930
    %v939 = vadd.f32 %v921, %v931
    %v940 = vadd.f32 %v922, %v932
    %v941 = vld [vmem:[#allocation2 + $0xb] sm:$0xff]
    %v942 = vld [vmem:[#allocation2 + $0x23] sm:$0xff]
    %v943 = vld [vmem:[#allocation2 + $0x3b] sm:$0xff]
    %v944 = vld [vmem:[#allocation2 + $0x53] sm:$0xff]
    %v945 = vld [vmem:[#allocation2 + $0x6b] sm:$0xff]
    %v946 = vld [vmem:[#allocation2 + $0x83] sm:$0xff]
    %v947 = vld [vmem:[#allocation2 + $0x9b] sm:$0xff]
    %v948 = vld [vmem:[#allocation2 + $0xb3] sm:$0xff]
    %v949 = vld [vmem:[#allocation2 + $0xcb] sm:$0xff]
    %v950 = vld [vmem:[#allocation2 + $0xe3] sm:$0xff]
    %v951 = vld [vmem:[#allocation2 + $0xfb] sm:$0xff]
    %v952 = vld [vmem:[#allocation2 + $0x113] sm:$0xff]
    %v953 = vld [vmem:[#allocation2 + $0x12b] sm:$0xff]
    %v954 = vld [vmem:[#allocation2 + $0x143] sm:$0xff]
    %s955 = scalar_lea.vmem [#allocation6], 48
    %v956 = vld [vmem:[%s955] sm:$0xff]
    %v957 = vmul.f32 %v941, %v956
    %v958 = vmul.f32 %v942, %v956
    %v959 = vmul.f32 %v943, %v956
    %v960 = vmul.f32 %v944, %v956
    %v961 = vmul.f32 %v945, %v956
    %v962 = vmul.f32 %v946, %v956
    %v963 = vmul.f32 %v947, %v956
    %v964 = vmul.f32 %v948, %v956
    %v965 = vadd.f32 %v933, %v957
    %v966 = vadd.f32 %v934, %v958
    %v967 = vadd.f32 %v935, %v959
    %v968 = vadd.f32 %v936, %v960
    %v969 = vadd.f32 %v937, %v961
    %v970 = vadd.f32 %v938, %v962
    %v971 = vadd.f32 %v939, %v963
    %v972 = vadd.f32 %v940, %v964
    %s973 = scalar_lea.vmem [#allocation6], 104
    %v974 = vld [vmem:[%s973] sm:$0xff]
    %v975 = vmul.f32 %v942, %v974
    %v976 = vmul.f32 %v943, %v974
    %v977 = vmul.f32 %v944, %v974
    %v978 = vmul.f32 %v945, %v974
    %v979 = vmul.f32 %v946, %v974
    %v980 = vmul.f32 %v947, %v974
    %v981 = vmul.f32 %v948, %v974
    %v982 = vmul.f32 %v949, %v974
    %v983 = vadd.f32 %v965, %v975
    %v984 = vadd.f32 %v966, %v976
    %v985 = vadd.f32 %v967, %v977
    %v986 = vadd.f32 %v968, %v978
    %v987 = vadd.f32 %v969, %v979
    %v988 = vadd.f32 %v970, %v980
    %v989 = vadd.f32 %v971, %v981
    %v990 = vadd.f32 %v972, %v982
    %s991 = scalar_lea.vmem [#allocation6], 160
    %v992 = vld [vmem:[%s991] sm:$0xff]
    %v993 = vmul.f32 %v943, %v992
    %v994 = vmul.f32 %v944, %v992
    %v995 = vmul.f32 %v945, %v992
    %v996 = vmul.f32 %v946, %v992
    %v997 = vmul.f32 %v947, %v992
    %v998 = vmul.f32 %v948, %v992
    %v999 = vmul.f32 %v949, %v992
    %v1000 = vmul.f32 %v950, %v992
    %v1001 = vadd.f32 %v983, %v993
    %v1002 = vadd.f32 %v984, %v994
    %v1003 = vadd.f32 %v985, %v995
    %v1004 = vadd.f32 %v986, %v996
    %v1005 = vadd.f32 %v987, %v997
    %v1006 = vadd.f32 %v988, %v998
    %v1007 = vadd.f32 %v989, %v999
    %v1008 = vadd.f32 %v990, %v1000
    %s1009 = scalar_lea.vmem [#allocation6], 216
    %v1010 = vld [vmem:[%s1009] sm:$0xff]
    %v1011 = vmul.f32 %v944, %v1010
    %v1012 = vmul.f32 %v945, %v1010
    %v1013 = vmul.f32 %v946, %v1010
    %v1014 = vmul.f32 %v947, %v1010
    %v1015 = vmul.f32 %v948, %v1010
    %v1016 = vmul.f32 %v949, %v1010
    %v1017 = vmul.f32 %v950, %v1010
    %v1018 = vmul.f32 %v951, %v1010
    %v1019 = vadd.f32 %v1001, %v1011
    %v1020 = vadd.f32 %v1002, %v1012
    %v1021 = vadd.f32 %v1003, %v1013
    %v1022 = vadd.f32 %v1004, %v1014
    %v1023 = vadd.f32 %v1005, %v1015
    %v1024 = vadd.f32 %v1006, %v1016
    %v1025 = vadd.f32 %v1007, %v1017
    %v1026 = vadd.f32 %v1008, %v1018
    %s1027 = scalar_lea.vmem [#allocation6], 272
    %v1028 = vld [vmem:[%s1027] sm:$0xff]
    %v1029 = vmul.f32 %v945, %v1028
    %v1030 = vmul.f32 %v946, %v1028
    %v1031 = vmul.f32 %v947, %v1028
    %v1032 = vmul.f32 %v948, %v1028
    %v1033 = vmul.f32 %v949, %v1028
    %v1034 = vmul.f32 %v950, %v1028
    %v1035 = vmul.f32 %v951, %v1028
    %v1036 = vmul.f32 %v952, %v1028
    %v1037 = vadd.f32 %v1019, %v1029
    %v1038 = vadd.f32 %v1020, %v1030
    %v1039 = vadd.f32 %v1021, %v1031
    %v1040 = vadd.f32 %v1022, %v1032
    %v1041 = vadd.f32 %v1023, %v1033
    %v1042 = vadd.f32 %v1024, %v1034
    %v1043 = vadd.f32 %v1025, %v1035
    %v1044 = vadd.f32 %v1026, %v1036
    %s1045 = scalar_lea.vmem [#allocation6], 328
    %v1046 = vld [vmem:[%s1045] sm:$0xff]
    %v1047 = vmul.f32 %v946, %v1046
    %v1048 = vmul.f32 %v947, %v1046
    %v1049 = vmul.f32 %v948, %v1046
    %v1050 = vmul.f32 %v949, %v1046
    %v1051 = vmul.f32 %v950, %v1046
    %v1052 = vmul.f32 %v951, %v1046
    %v1053 = vmul.f32 %v952, %v1046
    %v1054 = vmul.f32 %v953, %v1046
    %v1055 = vadd.f32 %v1037, %v1047
    %v1056 = vadd.f32 %v1038, %v1048
    %v1057 = vadd.f32 %v1039, %v1049
    %v1058 = vadd.f32 %v1040, %v1050
    %v1059 = vadd.f32 %v1041, %v1051
    %v1060 = vadd.f32 %v1042, %v1052
    %v1061 = vadd.f32 %v1043, %v1053
    %v1062 = vadd.f32 %v1044, %v1054
    %s1063 = scalar_lea.vmem [#allocation6], 384
    %v1064 = vld [vmem:[%s1063] sm:$0xff]
    %v1065 = vmul.f32 %v947, %v1064
    %v1066 = vmul.f32 %v948, %v1064
    %v1067 = vmul.f32 %v949, %v1064
    %v1068 = vmul.f32 %v950, %v1064
    %v1069 = vmul.f32 %v951, %v1064
    %v1070 = vmul.f32 %v952, %v1064
    %v1071 = vmul.f32 %v953, %v1064
    %v1072 = vmul.f32 %v954, %v1064
    %v1073 = vadd.f32 %v1055, %v1065
    %v1074 = vadd.f32 %v1056, %v1066
    %v1075 = vadd.f32 %v1057, %v1067
    %v1076 = vadd.f32 %v1058, %v1068
    %v1077 = vadd.f32 %v1059, %v1069
    %v1078 = vadd.f32 %v1060, %v1070
    %v1079 = vadd.f32 %v1061, %v1071
    %v1080 = vadd.f32 %v1062, %v1072
    %1081 = vst [vmem:[#allocation8] sm:$0xff] %v1073
    %1082 = vst [vmem:[#allocation8 + $0x8] sm:$0xff] %v1074
    %1083 = vst [vmem:[#allocation8 + $0x10] sm:$0xff] %v1075
    %1084 = vst [vmem:[#allocation8 + $0x18] sm:$0xff] %v1076
    %1085 = vst [vmem:[#allocation8 + $0x20] sm:$0xff] %v1077
    %1086 = vst [vmem:[#allocation8 + $0x28] sm:$0xff] %v1078
    %1087 = vst [vmem:[#allocation8 + $0x30] sm:$0xff] %v1079
    %1088 = vst [vmem:[#allocation8 + $0x38] sm:$0xff] %v1080
    %s1089 = scalar_lea.vmem [#allocation3], 64
    %v1090 = vld [vmem:[%s1089] sm:$0xff]
    %v1091 = vld [vmem:[%s1089 + $0x8] sm:$0xff]
    %v1092 = vld [vmem:[%s1089 + $0x10] sm:$0xff]
    %v1093 = vld [vmem:[%s1089 + $0x18] sm:$0xff]
    %v1094 = vld [vmem:[%s1089 + $0x20] sm:$0xff]
    %v1095 = vld [vmem:[%s1089 + $0x28] sm:$0xff]
    %v1096 = vld [vmem:[%s1089 + $0x30] sm:$0xff]
    %v1097 = vld [vmem:[%s1089 + $0x38] sm:$0xff]
    %1098 = vst [vmem:[%s62 + $0x8] sm:$0xff] %v1090
    %1099 = vst [vmem:[%s62 + $0x20] sm:$0xff] %v1091
    %1100 = vst [vmem:[%s62 + $0x38] sm:$0xff] %v1092
    %1101 = vst [vmem:[%s62 + $0x50] sm:$0xff] %v1093
    %1102 = vst [vmem:[%s62 + $0x68] sm:$0xff] %v1094
    %1103 = vst [vmem:[%s62 + $0x80] sm:$0xff] %v1095
    %1104 = vst [vmem:[%s62 + $0x98] sm:$0xff] %v1096
    %1105 = vst [vmem:[%s62 + $0xb0] sm:$0xff] %v1097
    %v1106 = vld [vmem:[#allocation2 + $0x5] sm:$0xff]
    %v1107 = vld [vmem:[#allocation2 + $0x1d] sm:$0xff]
    %v1108 = vld [vmem:[#allocation2 + $0x35] sm:$0xff]
    %v1109 = vld [vmem:[#allocation2 + $0x4d] sm:$0xff]
    %v1110 = vld [vmem:[#allocation2 + $0x65] sm:$0xff]
    %v1111 = vld [vmem:[#allocation2 + $0x7d] sm:$0xff]
    %v1112 = vld [vmem:[#allocation2 + $0x95] sm:$0xff]
    %v1113 = vld [vmem:[#allocation2 + $0xad] sm:$0xff]
    %v1114 = vld [vmem:[#allocation2 + $0xc5] sm:$0xff]
    %v1115 = vld [vmem:[#allocation2 + $0xdd] sm:$0xff]
    %v1116 = vld [vmem:[#allocation2 + $0xf5] sm:$0xff]
    %v1117 = vld [vmem:[#allocation2 + $0x10d] sm:$0xff]
    %v1118 = vld [vmem:[#allocation2 + $0x125] sm:$0xff]
    %v1119 = vld [vmem:[#allocation2 + $0x13d] sm:$0xff]
    %v1120 = vld [vmem:[#allocation6] sm:$0xff]
    %v1121 = vmul.f32 %v1106, %v1120
    %v1122 = vmul.f32 %v1107, %v1120
    %v1123 = vmul.f32 %v1108, %v1120
    %v1124 = vmul.f32 %v1109, %v1120
    %v1125 = vmul.f32 %v1110, %v1120
    %v1126 = vmul.f32 %v1111, %v1120
    %v1127 = vmul.f32 %v1112, %v1120
    %v1128 = vmul.f32 %v1113, %v1120
    %v1129 = vadd.f32 %v84, %v1121
    %v1130 = vadd.f32 %v84, %v1122
    %v1131 = vadd.f32 %v84, %v1123
    %v1132 = vadd.f32 %v84, %v1124
    %v1133 = vadd.f32 %v84, %v1125
    %v1134 = vadd.f32 %v84, %v1126
    %v1135 = vadd.f32 %v84, %v1127
    %v1136 = vadd.f32 %v84, %v1128
    %v1137 = vld [vmem:[%s133] sm:$0xff]
    %v1138 = vmul.f32 %v1107, %v1137
    %v1139 = vmul.f32 %v1108, %v1137
    %v1140 = vmul.f32 %v1109, %v1137
    %v1141 = vmul.f32 %v1110, %v1137
    %v1142 = vmul.f32 %v1111, %v1137
    %v1143 = vmul.f32 %v1112, %v1137
    %v1144 = vmul.f32 %v1113, %v1137
    %v1145 = vmul.f32 %v1114, %v1137
    %v1146 = vadd.f32 %v1129, %v1138
    %v1147 = vadd.f32 %v1130, %v1139
    %v1148 = vadd.f32 %v1131, %v1140
    %v1149 = vadd.f32 %v1132, %v1141
    %v1150 = vadd.f32 %v1133, %v1142
    %v1151 = vadd.f32 %v1134, %v1143
    %v1152 = vadd.f32 %v1135, %v1144
    %v1153 = vadd.f32 %v1136, %v1145
    %v1154 = vld [vmem:[%s151] sm:$0xff]
    %v1155 = vmul.f32 %v1108, %v1154
    %v1156 = vmul.f32 %v1109, %v1154
    %v1157 = vmul.f32 %v1110, %v1154
    %v1158 = vmul.f32 %v1111, %v1154
    %v1159 = vmul.f32 %v1112, %v1154
    %v1160 = vmul.f32 %v1113, %v1154
    %v1161 = vmul.f32 %v1114, %v1154
    %v1162 = vmul.f32 %v1115, %v1154
    %v1163 = vadd.f32 %v1146, %v1155
    %v1164 = vadd.f32 %v1147, %v1156
    %v1165 = vadd.f32 %v1148, %v1157
    %v1166 = vadd.f32 %v1149, %v1158
    %v1167 = vadd.f32 %v1150, %v1159
    %v1168 = vadd.f32 %v1151, %v1160
    %v1169 = vadd.f32 %v1152, %v1161
    %v1170 = vadd.f32 %v1153, %v1162
    %v1171 = vld [vmem:[%s169] sm:$0xff]
    %v1172 = vmul.f32 %v1109, %v1171
    %v1173 = vmul.f32 %v1110, %v1171
    %v1174 = vmul.f32 %v1111, %v1171
    %v1175 = vmul.f32 %v1112, %v1171
    %v1176 = vmul.f32 %v1113, %v1171
    %v1177 = vmul.f32 %v1114, %v1171
    %v1178 = vmul.f32 %v1115, %v1171
    %v1179 = vmul.f32 %v1116, %v1171
    %v1180 = vadd.f32 %v1163, %v1172
    %v1181 = vadd.f32 %v1164, %v1173
    %v1182 = vadd.f32 %v1165, %v1174
    %v1183 = vadd.f32 %v1166, %v1175
    %v1184 = vadd.f32 %v1167, %v1176
    %v1185 = vadd.f32 %v1168, %v1177
    %v1186 = vadd.f32 %v1169, %v1178
    %v1187 = vadd.f32 %v1170, %v1179
    %v1188 = vld [vmem:[%s187] sm:$0xff]
    %v1189 = vmul.f32 %v1110, %v1188
    %v1190 = vmul.f32 %v1111, %v1188
    %v1191 = vmul.f32 %v1112, %v1188
    %v1192 = vmul.f32 %v1113, %v1188
    %v1193 = vmul.f32 %v1114, %v1188
    %v1194 = vmul.f32 %v1115, %v1188
    %v1195 = vmul.f32 %v1116, %v1188
    %v1196 = vmul.f32 %v1117, %v1188
    %v1197 = vadd.f32 %v1180, %v1189
    %v1198 = vadd.f32 %v1181, %v1190
    %v1199 = vadd.f32 %v1182, %v1191
    %v1200 = vadd.f32 %v1183, %v1192
    %v1201 = vadd.f32 %v1184, %v1193
    %v1202 = vadd.f32 %v1185, %v1194
    %v1203 = vadd.f32 %v1186, %v1195
    %v1204 = vadd.f32 %v1187, %v1196
    %v1205 = vld [vmem:[%s205] sm:$0xff]
    %v1206 = vmul.f32 %v1111, %v1205
    %v1207 = vmul.f32 %v1112, %v1205
    %v1208 = vmul.f32 %v1113, %v1205
    %v1209 = vmul.f32 %v1114, %v1205
    %v1210 = vmul.f32 %v1115, %v1205
    %v1211 = vmul.f32 %v1116, %v1205
    %v1212 = vmul.f32 %v1117, %v1205
    %v1213 = vmul.f32 %v1118, %v1205
    %v1214 = vadd.f32 %v1197, %v1206
    %v1215 = vadd.f32 %v1198, %v1207
    %v1216 = vadd.f32 %v1199, %v1208
    %v1217 = vadd.f32 %v1200, %v1209
    %v1218 = vadd.f32 %v1201, %v1210
    %v1219 = vadd.f32 %v1202, %v1211
    %v1220 = vadd.f32 %v1203, %v1212
    %v1221 = vadd.f32 %v1204, %v1213
    %v1222 = vld [vmem:[%s223] sm:$0xff]
    %v1223 = vmul.f32 %v1112, %v1222
    %v1224 = vmul.f32 %v1113, %v1222
    %v1225 = vmul.f32 %v1114, %v1222
    %v1226 = vmul.f32 %v1115, %v1222
    %v1227 = vmul.f32 %v1116, %v1222
    %v1228 = vmul.f32 %v1117, %v1222
    %v1229 = vmul.f32 %v1118, %v1222
    %v1230 = vmul.f32 %v1119, %v1222
    %v1231 = vadd.f32 %v1214, %v1223
    %v1232 = vadd.f32 %v1215, %v1224
    %v1233 = vadd.f32 %v1216, %v1225
    %v1234 = vadd.f32 %v1217, %v1226
    %v1235 = vadd.f32 %v1218, %v1227
    %v1236 = vadd.f32 %v1219, %v1228
    %v1237 = vadd.f32 %v1220, %v1229
    %v1238 = vadd.f32 %v1221, %v1230
    %v1239 = vld [vmem:[#allocation2 + $0x6] sm:$0xff]
    %v1240 = vld [vmem:[#allocation2 + $0x1e] sm:$0xff]
    %v1241 = vld [vmem:[#allocation2 + $0x36] sm:$0xff]
    %v1242 = vld [vmem:[#allocation2 + $0x4e] sm:$0xff]
    %v1243 = vld [vmem:[#allocation2 + $0x66] sm:$0xff]
    %v1244 = vld [vmem:[#allocation2 + $0x7e] sm:$0xff]
    %v1245 = vld [vmem:[#allocation2 + $0x96] sm:$0xff]
    %v1246 = vld [vmem:[#allocation2 + $0xae] sm:$0xff]
    %v1247 = vld [vmem:[#allocation2 + $0xc6] sm:$0xff]
    %v1248 = vld [vmem:[#allocation2 + $0xde] sm:$0xff]
    %v1249 = vld [vmem:[#allocation2 + $0xf6] sm:$0xff]
    %v1250 = vld [vmem:[#allocation2 + $0x10e] sm:$0xff]
    %v1251 = vld [vmem:[#allocation2 + $0x126] sm:$0xff]
    %v1252 = vld [vmem:[#allocation2 + $0x13e] sm:$0xff]
    %v1253 = vld [vmem:[%s255] sm:$0xff]
    %v1254 = vmul.f32 %v1239, %v1253
    %v1255 = vmul.f32 %v1240, %v1253
    %v1256 = vmul.f32 %v1241, %v1253
    %v1257 = vmul.f32 %v1242, %v1253
    %v1258 = vmul.f32 %v1243, %v1253
    %v1259 = vmul.f32 %v1244, %v1253
    %v1260 = vmul.f32 %v1245, %v1253
    %v1261 = vmul.f32 %v1246, %v1253
    %v1262 = vadd.f32 %v1231, %v1254
    %v1263 = vadd.f32 %v1232, %v1255
    %v1264 = vadd.f32 %v1233, %v1256
    %v1265 = vadd.f32 %v1234, %v1257
    %v1266 = vadd.f32 %v1235, %v1258
    %v1267 = vadd.f32 %v1236, %v1259
    %v1268 = vadd.f32 %v1237, %v1260
    %v1269 = vadd.f32 %v1238, %v1261
    %v1270 = vld [vmem:[%s273] sm:$0xff]
    %v1271 = vmul.f32 %v1240, %v1270
    %v1272 = vmul.f32 %v1241, %v1270
    %v1273 = vmul.f32 %v1242, %v1270
    %v1274 = vmul.f32 %v1243, %v1270
    %v1275 = vmul.f32 %v1244, %v1270
    %v1276 = vmul.f32 %v1245, %v1270
    %v1277 = vmul.f32 %v1246, %v1270
    %v1278 = vmul.f32 %v1247, %v1270
    %v1279 = vadd.f32 %v1262, %v1271
    %v1280 = vadd.f32 %v1263, %v1272
    %v1281 = vadd.f32 %v1264, %v1273
    %v1282 = vadd.f32 %v1265, %v1274
    %v1283 = vadd.f32 %v1266, %v1275
    %v1284 = vadd.f32 %v1267, %v1276
    %v1285 = vadd.f32 %v1268, %v1277
    %v1286 = vadd.f32 %v1269, %v1278
    %v1287 = vld [vmem:[%s291] sm:$0xff]
    %v1288 = vmul.f32 %v1241, %v1287
    %v1289 = vmul.f32 %v1242, %v1287
    %v1290 = vmul.f32 %v1243, %v1287
    %v1291 = vmul.f32 %v1244, %v1287
    %v1292 = vmul.f32 %v1245, %v1287
    %v1293 = vmul.f32 %v1246, %v1287
    %v1294 = vmul.f32 %v1247, %v1287
    %v1295 = vmul.f32 %v1248, %v1287
    %v1296 = vadd.f32 %v1279, %v1288
    %v1297 = vadd.f32 %v1280, %v1289
    %v1298 = vadd.f32 %v1281, %v1290
    %v1299 = vadd.f32 %v1282, %v1291
    %v1300 = vadd.f32 %v1283, %v1292
    %v1301 = vadd.f32 %v1284, %v1293
    %v1302 = vadd.f32 %v1285, %v1294
    %v1303 = vadd.f32 %v1286, %v1295
    %v1304 = vld [vmem:[%s309] sm:$0xff]
    %v1305 = vmul.f32 %v1242, %v1304
    %v1306 = vmul.f32 %v1243, %v1304
    %v1307 = vmul.f32 %v1244, %v1304
    %v1308 = vmul.f32 %v1245, %v1304
    %v1309 = vmul.f32 %v1246, %v1304
    %v1310 = vmul.f32 %v1247, %v1304
    %v1311 = vmul.f32 %v1248, %v1304
    %v1312 = vmul.f32 %v1249, %v1304
    %v1313 = vadd.f32 %v1296, %v1305
    %v1314 = vadd.f32 %v1297, %v1306
    %v1315 = vadd.f32 %v1298, %v1307
    %v1316 = vadd.f32 %v1299, %v1308
    %v1317 = vadd.f32 %v1300, %v1309
    %v1318 = vadd.f32 %v1301, %v1310
    %v1319 = vadd.f32 %v1302, %v1311
    %v1320 = vadd.f32 %v1303, %v1312
    %v1321 = vld [vmem:[%s327] sm:$0xff]
    %v1322 = vmul.f32 %v1243, %v1321
    %v1323 = vmul.f32 %v1244, %v1321
    %v1324 = vmul.f32 %v1245, %v1321
    %v1325 = vmul.f32 %v1246, %v1321
    %v1326 = vmul.f32 %v1247, %v1321
    %v1327 = vmul.f32 %v1248, %v1321
    %v1328 = vmul.f32 %v1249, %v1321
    %v1329 = vmul.f32 %v1250, %v1321
    %v1330 = vadd.f32 %v1313, %v1322
    %v1331 = vadd.f32 %v1314, %v1323
    %v1332 = vadd.f32 %v1315, %v1324
    %v1333 = vadd.f32 %v1316, %v1325
    %v1334 = vadd.f32 %v1317, %v1326
    %v1335 = vadd.f32 %v1318, %v1327
    %v1336 = vadd.f32 %v1319, %v1328
    %v1337 = vadd.f32 %v1320, %v1329
    %v1338 = vld [vmem:[%s345] sm:$0xff]
    %v1339 = vmul.f32 %v1244, %v1338
    %v1340 = vmul.f32 %v1245, %v1338
    %v1341 = vmul.f32 %v1246, %v1338
    %v1342 = vmul.f32 %v1247, %v1338
    %v1343 = vmul.f32 %v1248, %v1338
    %v1344 = vmul.f32 %v1249, %v1338
    %v1345 = vmul.f32 %v1250, %v1338
    %v1346 = vmul.f32 %v1251, %v1338
    %v1347 = vadd.f32 %v1330, %v1339
    %v1348 = vadd.f32 %v1331, %v1340
    %v1349 = vadd.f32 %v1332, %v1341
    %v1350 = vadd.f32 %v1333, %v1342
    %v1351 = vadd.f32 %v1334, %v1343
    %v1352 = vadd.f32 %v1335, %v1344
    %v1353 = vadd.f32 %v1336, %v1345
    %v1354 = vadd.f32 %v1337, %v1346
    %v1355 = vld [vmem:[%s363] sm:$0xff]
    %v1356 = vmul.f32 %v1245, %v1355
    %v1357 = vmul.f32 %v1246, %v1355
    %v1358 = vmul.f32 %v1247, %v1355
    %v1359 = vmul.f32 %v1248, %v1355
    %v1360 = vmul.f32 %v1249, %v1355
    %v1361 = vmul.f32 %v1250, %v1355
    %v1362 = vmul.f32 %v1251, %v1355
    %v1363 = vmul.f32 %v1252, %v1355
    %v1364 = vadd.f32 %v1347, %v1356
    %v1365 = vadd.f32 %v1348, %v1357
    %v1366 = vadd.f32 %v1349, %v1358
    %v1367 = vadd.f32 %v1350, %v1359
    %v1368 = vadd.f32 %v1351, %v1360
    %v1369 = vadd.f32 %v1352, %v1361
    %v1370 = vadd.f32 %v1353, %v1362
    %v1371 = vadd.f32 %v1354, %v1363
    %v1372 = vld [vmem:[#allocation2 + $0x7] sm:$0xff]
    %v1373 = vld [vmem:[#allocation2 + $0x1f] sm:$0xff]
    %v1374 = vld [vmem:[#allocation2 + $0x37] sm:$0xff]
    %v1375 = vld [vmem:[#allocation2 + $0x4f] sm:$0xff]
    %v1376 = vld [vmem:[#allocation2 + $0x67] sm:$0xff]
    %v1377 = vld [vmem:[#allocation2 + $0x7f] sm:$0xff]
    %v1378 = vld [vmem:[#allocation2 + $0x97] sm:$0xff]
    %v1379 = vld [vmem:[#allocation2 + $0xaf] sm:$0xff]
    %v1380 = vld [vmem:[#allocation2 + $0xc7] sm:$0xff]
    %v1381 = vld [vmem:[#allocation2 + $0xdf] sm:$0xff]
    %v1382 = vld [vmem:[#allocation2 + $0xf7] sm:$0xff]
    %v1383 = vld [vmem:[#allocation2 + $0x10f] sm:$0xff]
    %v1384 = vld [vmem:[#allocation2 + $0x127] sm:$0xff]
    %v1385 = vld [vmem:[#allocation2 + $0x13f] sm:$0xff]
    %v1386 = vld [vmem:[%s395] sm:$0xff]
    %v1387 = vmul.f32 %v1372, %v1386
    %v1388 = vmul.f32 %v1373, %v1386
    %v1389 = vmul.f32 %v1374, %v1386
    %v1390 = vmul.f32 %v1375, %v1386
    %v1391 = vmul.f32 %v1376, %v1386
    %v1392 = vmul.f32 %v1377, %v1386
    %v1393 = vmul.f32 %v1378, %v1386
    %v1394 = vmul.f32 %v1379, %v1386
    %v1395 = vadd.f32 %v1364, %v1387
    %v1396 = vadd.f32 %v1365, %v1388
    %v1397 = vadd.f32 %v1366, %v1389
    %v1398 = vadd.f32 %v1367, %v1390
    %v1399 = vadd.f32 %v1368, %v1391
    %v1400 = vadd.f32 %v1369, %v1392
    %v1401 = vadd.f32 %v1370, %v1393
    %v1402 = vadd.f32 %v1371, %v1394
    %v1403 = vld [vmem:[%s413] sm:$0xff]
    %v1404 = vmul.f32 %v1373, %v1403
    %v1405 = vmul.f32 %v1374, %v1403
    %v1406 = vmul.f32 %v1375, %v1403
    %v1407 = vmul.f32 %v1376, %v1403
    %v1408 = vmul.f32 %v1377, %v1403
    %v1409 = vmul.f32 %v1378, %v1403
    %v1410 = vmul.f32 %v1379, %v1403
    %v1411 = vmul.f32 %v1380, %v1403
    %v1412 = vadd.f32 %v1395, %v1404
    %v1413 = vadd.f32 %v1396, %v1405
    %v1414 = vadd.f32 %v1397, %v1406
    %v1415 = vadd.f32 %v1398, %v1407
    %v1416 = vadd.f32 %v1399, %v1408
    %v1417 = vadd.f32 %v1400, %v1409
    %v1418 = vadd.f32 %v1401, %v1410
    %v1419 = vadd.f32 %v1402, %v1411
    %v1420 = vld [vmem:[%s431] sm:$0xff]
    %v1421 = vmul.f32 %v1374, %v1420
    %v1422 = vmul.f32 %v1375, %v1420
    %v1423 = vmul.f32 %v1376, %v1420
    %v1424 = vmul.f32 %v1377, %v1420
    %v1425 = vmul.f32 %v1378, %v1420
    %v1426 = vmul.f32 %v1379, %v1420
    %v1427 = vmul.f32 %v1380, %v1420
    %v1428 = vmul.f32 %v1381, %v1420
    %v1429 = vadd.f32 %v1412, %v1421
    %v1430 = vadd.f32 %v1413, %v1422
    %v1431 = vadd.f32 %v1414, %v1423
    %v1432 = vadd.f32 %v1415, %v1424
    %v1433 = vadd.f32 %v1416, %v1425
    %v1434 = vadd.f32 %v1417, %v1426
    %v1435 = vadd.f32 %v1418, %v1427
    %v1436 = vadd.f32 %v1419, %v1428
    %v1437 = vld [vmem:[%s449] sm:$0xff]
    %v1438 = vmul.f32 %v1375, %v1437
    %v1439 = vmul.f32 %v1376, %v1437
    %v1440 = vmul.f32 %v1377, %v1437
    %v1441 = vmul.f32 %v1378, %v1437
    %v1442 = vmul.f32 %v1379, %v1437
    %v1443 = vmul.f32 %v1380, %v1437
    %v1444 = vmul.f32 %v1381, %v1437
    %v1445 = vmul.f32 %v1382, %v1437
    %v1446 = vadd.f32 %v1429, %v1438
    %v1447 = vadd.f32 %v1430, %v1439
    %v1448 = vadd.f32 %v1431, %v1440
    %v1449 = vadd.f32 %v1432, %v1441
    %v1450 = vadd.f32 %v1433, %v1442
    %v1451 = vadd.f32 %v1434, %v1443
    %v1452 = vadd.f32 %v1435, %v1444
    %v1453 = vadd.f32 %v1436, %v1445
    %v1454 = vld [vmem:[%s467] sm:$0xff]
    %v1455 = vmul.f32 %v1376, %v1454
    %v1456 = vmul.f32 %v1377, %v1454
    %v1457 = vmul.f32 %v1378, %v1454
    %v1458 = vmul.f32 %v1379, %v1454
    %v1459 = vmul.f32 %v1380, %v1454
    %v1460 = vmul.f32 %v1381, %v1454
    %v1461 = vmul.f32 %v1382, %v1454
    %v1462 = vmul.f32 %v1383, %v1454
    %v1463 = vadd.f32 %v1446, %v1455
    %v1464 = vadd.f32 %v1447, %v1456
    %v1465 = vadd.f32 %v1448, %v1457
    %v1466 = vadd.f32 %v1449, %v1458
    %v1467 = vadd.f32 %v1450, %v1459
    %v1468 = vadd.f32 %v1451, %v1460
    %v1469 = vadd.f32 %v1452, %v1461
    %v1470 = vadd.f32 %v1453, %v1462
    %v1471 = vld [vmem:[%s485] sm:$0xff]
    %v1472 = vmul.f32 %v1377, %v1471
    %v1473 = vmul.f32 %v1378, %v1471
    %v1474 = vmul.f32 %v1379, %v1471
    %v1475 = vmul.f32 %v1380, %v1471
    %v1476 = vmul.f32 %v1381, %v1471
    %v1477 = vmul.f32 %v1382, %v1471
    %v1478 = vmul.f32 %v1383, %v1471
    %v1479 = vmul.f32 %v1384, %v1471
    %v1480 = vadd.f32 %v1463, %v1472
    %v1481 = vadd.f32 %v1464, %v1473
    %v1482 = vadd.f32 %v1465, %v1474
    %v1483 = vadd.f32 %v1466, %v1475
    %v1484 = vadd.f32 %v1467, %v1476
    %v1485 = vadd.f32 %v1468, %v1477
    %v1486 = vadd.f32 %v1469, %v1478
    %v1487 = vadd.f32 %v1470, %v1479
    %v1488 = vld [vmem:[%s503] sm:$0xff]
    %v1489 = vmul.f32 %v1378, %v1488
    %v1490 = vmul.f32 %v1379, %v1488
    %v1491 = vmul.f32 %v1380, %v1488
    %v1492 = vmul.f32 %v1381, %v1488
    %v1493 = vmul.f32 %v1382, %v1488
    %v1494 = vmul.f32 %v1383, %v1488
    %v1495 = vmul.f32 %v1384, %v1488
    %v1496 = vmul.f32 %v1385, %v1488
    %v1497 = vadd.f32 %v1480, %v1489
    %v1498 = vadd.f32 %v1481, %v1490
    %v1499 = vadd.f32 %v1482, %v1491
    %v1500 = vadd.f32 %v1483, %v1492
    %v1501 = vadd.f32 %v1484, %v1493
    %v1502 = vadd.f32 %v1485, %v1494
    %v1503 = vadd.f32 %v1486, %v1495
    %v1504 = vadd.f32 %v1487, %v1496
    %v1505 = vld [vmem:[#allocation2 + $0x8] sm:$0xff]
    %v1506 = vld [vmem:[#allocation2 + $0x20] sm:$0xff]
    %v1507 = vld [vmem:[#allocation2 + $0x38] sm:$0xff]
    %v1508 = vld [vmem:[#allocation2 + $0x50] sm:$0xff]
    %v1509 = vld [vmem:[#allocation2 + $0x68] sm:$0xff]
    %v1510 = vld [vmem:[#allocation2 + $0x80] sm:$0xff]
    %v1511 = vld [vmem:[#allocation2 + $0x98] sm:$0xff]
    %v1512 = vld [vmem:[#allocation2 + $0xb0] sm:$0xff]
    %v1513 = vld [vmem:[#allocation2 + $0xc8] sm:$0xff]
    %v1514 = vld [vmem:[#allocation2 + $0xe0] sm:$0xff]
    %v1515 = vld [vmem:[#allocation2 + $0xf8] sm:$0xff]
    %v1516 = vld [vmem:[#allocation2 + $0x110] sm:$0xff]
    %v1517 = vld [vmem:[#allocation2 + $0x128] sm:$0xff]
    %v1518 = vld [vmem:[#allocation2 + $0x140] sm:$0xff]
    %v1519 = vld [vmem:[%s535] sm:$0xff]
    %v1520 = vmul.f32 %v1505, %v1519
    %v1521 = vmul.f32 %v1506, %v1519
    %v1522 = vmul.f32 %v1507, %v1519
    %v1523 = vmul.f32 %v1508, %v1519
    %v1524 = vmul.f32 %v1509, %v1519
    %v1525 = vmul.f32 %v1510, %v1519
    %v1526 = vmul.f32 %v1511, %v1519
    %v1527 = vmul.f32 %v1512, %v1519
    %v1528 = vadd.f32 %v1497, %v1520
    %v1529 = vadd.f32 %v1498, %v1521
    %v1530 = vadd.f32 %v1499, %v1522
    %v1531 = vadd.f32 %v1500, %v1523
    %v1532 = vadd.f32 %v1501, %v1524
    %v1533 = vadd.f32 %v1502, %v1525
    %v1534 = vadd.f32 %v1503, %v1526
    %v1535 = vadd.f32 %v1504, %v1527
    %v1536 = vld [vmem:[%s553] sm:$0xff]
    %v1537 = vmul.f32 %v1506, %v1536
    %v1538 = vmul.f32 %v1507, %v1536
    %v1539 = vmul.f32 %v1508, %v1536
    %v1540 = vmul.f32 %v1509, %v1536
    %v1541 = vmul.f32 %v1510, %v1536
    %v1542 = vmul.f32 %v1511, %v1536
    %v1543 = vmul.f32 %v1512, %v1536
    %v1544 = vmul.f32 %v1513, %v1536
    %v1545 = vadd.f32 %v1528, %v1537
    %v1546 = vadd.f32 %v1529, %v1538
    %v1547 = vadd.f32 %v1530, %v1539
    %v1548 = vadd.f32 %v1531, %v1540
    %v1549 = vadd.f32 %v1532, %v1541
    %v1550 = vadd.f32 %v1533, %v1542
    %v1551 = vadd.f32 %v1534, %v1543
    %v1552 = vadd.f32 %v1535, %v1544
    %v1553 = vld [vmem:[%s571] sm:$0xff]
    %v1554 = vmul.f32 %v1507, %v1553
    %v1555 = vmul.f32 %v1508, %v1553
    %v1556 = vmul.f32 %v1509, %v1553
    %v1557 = vmul.f32 %v1510, %v1553
    %v1558 = vmul.f32 %v1511, %v1553
    %v1559 = vmul.f32 %v1512, %v1553
    %v1560 = vmul.f32 %v1513, %v1553
    %v1561 = vmul.f32 %v1514, %v1553
    %v1562 = vadd.f32 %v1545, %v1554
    %v1563 = vadd.f32 %v1546, %v1555
    %v1564 = vadd.f32 %v1547, %v1556
    %v1565 = vadd.f32 %v1548, %v1557
    %v1566 = vadd.f32 %v1549, %v1558
    %v1567 = vadd.f32 %v1550, %v1559
    %v1568 = vadd.f32 %v1551, %v1560
    %v1569 = vadd.f32 %v1552, %v1561
    %v1570 = vld [vmem:[%s589] sm:$0xff]
    %v1571 = vmul.f32 %v1508, %v1570
    %v1572 = vmul.f32 %v1509, %v1570
    %v1573 = vmul.f32 %v1510, %v1570
    %v1574 = vmul.f32 %v1511, %v1570
    %v1575 = vmul.f32 %v1512, %v1570
    %v1576 = vmul.f32 %v1513, %v1570
    %v1577 = vmul.f32 %v1514, %v1570
    %v1578 = vmul.f32 %v1515, %v1570
    %v1579 = vadd.f32 %v1562, %v1571
    %v1580 = vadd.f32 %v1563, %v1572
    %v1581 = vadd.f32 %v1564, %v1573
    %v1582 = vadd.f32 %v1565, %v1574
    %v1583 = vadd.f32 %v1566, %v1575
    %v1584 = vadd.f32 %v1567, %v1576
    %v1585 = vadd.f32 %v1568, %v1577
    %v1586 = vadd.f32 %v1569, %v1578
    %v1587 = vld [vmem:[%s607] sm:$0xff]
    %v1588 = vmul.f32 %v1509, %v1587
    %v1589 = vmul.f32 %v1510, %v1587
    %v1590 = vmul.f32 %v1511, %v1587
    %v1591 = vmul.f32 %v1512, %v1587
    %v1592 = vmul.f32 %v1513, %v1587
    %v1593 = vmul.f32 %v1514, %v1587
    %v1594 = vmul.f32 %v1515, %v1587
    %v1595 = vmul.f32 %v1516, %v1587
    %v1596 = vadd.f32 %v1579, %v1588
    %v1597 = vadd.f32 %v1580, %v1589
    %v1598 = vadd.f32 %v1581, %v1590
    %v1599 = vadd.f32 %v1582, %v1591
    %v1600 = vadd.f32 %v1583, %v1592
    %v1601 = vadd.f32 %v1584, %v1593
    %v1602 = vadd.f32 %v1585, %v1594
    %v1603 = vadd.f32 %v1586, %v1595
    %v1604 = vld [vmem:[%s625] sm:$0xff]
    %v1605 = vmul.f32 %v1510, %v1604
    %v1606 = vmul.f32 %v1511, %v1604
    %v1607 = vmul.f32 %v1512, %v1604
    %v1608 = vmul.f32 %v1513, %v1604
    %v1609 = vmul.f32 %v1514, %v1604
    %v1610 = vmul.f32 %v1515, %v1604
    %v1611 = vmul.f32 %v1516, %v1604
    %v1612 = vmul.f32 %v1517, %v1604
    %v1613 = vadd.f32 %v1596, %v1605
    %v1614 = vadd.f32 %v1597, %v1606
    %v1615 = vadd.f32 %v1598, %v1607
    %v1616 = vadd.f32 %v1599, %v1608
    %v1617 = vadd.f32 %v1600, %v1609
    %v1618 = vadd.f32 %v1601, %v1610
    %v1619 = vadd.f32 %v1602, %v1611
    %v1620 = vadd.f32 %v1603, %v1612
    %v1621 = vld [vmem:[%s643] sm:$0xff]
    %v1622 = vmul.f32 %v1511, %v1621
    %v1623 = vmul.f32 %v1512, %v1621
    %v1624 = vmul.f32 %v1513, %v1621
    %v1625 = vmul.f32 %v1514, %v1621
    %v1626 = vmul.f32 %v1515, %v1621
    %v1627 = vmul.f32 %v1516, %v1621
    %v1628 = vmul.f32 %v1517, %v1621
    %v1629 = vmul.f32 %v1518, %v1621
    %v1630 = vadd.f32 %v1613, %v1622
    %v1631 = vadd.f32 %v1614, %v1623
    %v1632 = vadd.f32 %v1615, %v1624
    %v1633 = vadd.f32 %v1616, %v1625
    %v1634 = vadd.f32 %v1617, %v1626
    %v1635 = vadd.f32 %v1618, %v1627
    %v1636 = vadd.f32 %v1619, %v1628
    %v1637 = vadd.f32 %v1620, %v1629
    %v1638 = vld [vmem:[#allocation2 + $0x9] sm:$0xff]
    %v1639 = vld [vmem:[#allocation2 + $0x21] sm:$0xff]
    %v1640 = vld [vmem:[#allocation2 + $0x39] sm:$0xff]
    %v1641 = vld [vmem:[#allocation2 + $0x51] sm:$0xff]
    %v1642 = vld [vmem:[#allocation2 + $0x69] sm:$0xff]
    %v1643 = vld [vmem:[#allocation2 + $0x81] sm:$0xff]
    %v1644 = vld [vmem:[#allocation2 + $0x99] sm:$0xff]
    %v1645 = vld [vmem:[#allocation2 + $0xb1] sm:$0xff]
    %v1646 = vld [vmem:[#allocation2 + $0xc9] sm:$0xff]
    %v1647 = vld [vmem:[#allocation2 + $0xe1] sm:$0xff]
    %v1648 = vld [vmem:[#allocation2 + $0xf9] sm:$0xff]
    %v1649 = vld [vmem:[#allocation2 + $0x111] sm:$0xff]
    %v1650 = vld [vmem:[#allocation2 + $0x129] sm:$0xff]
    %v1651 = vld [vmem:[#allocation2 + $0x141] sm:$0xff]
    %v1652 = vld [vmem:[%s675] sm:$0xff]
    %v1653 = vmul.f32 %v1638, %v1652
    %v1654 = vmul.f32 %v1639, %v1652
    %v1655 = vmul.f32 %v1640, %v1652
    %v1656 = vmul.f32 %v1641, %v1652
    %v1657 = vmul.f32 %v1642, %v1652
    %v1658 = vmul.f32 %v1643, %v1652
    %v1659 = vmul.f32 %v1644, %v1652
    %v1660 = vmul.f32 %v1645, %v1652
    %v1661 = vadd.f32 %v1630, %v1653
    %v1662 = vadd.f32 %v1631, %v1654
    %v1663 = vadd.f32 %v1632, %v1655
    %v1664 = vadd.f32 %v1633, %v1656
    %v1665 = vadd.f32 %v1634, %v1657
    %v1666 = vadd.f32 %v1635, %v1658
    %v1667 = vadd.f32 %v1636, %v1659
    %v1668 = vadd.f32 %v1637, %v1660
    %v1669 = vld [vmem:[%s693] sm:$0xff]
    %v1670 = vmul.f32 %v1639, %v1669
    %v1671 = vmul.f32 %v1640, %v1669
    %v1672 = vmul.f32 %v1641, %v1669
    %v1673 = vmul.f32 %v1642, %v1669
    %v1674 = vmul.f32 %v1643, %v1669
    %v1675 = vmul.f32 %v1644, %v1669
    %v1676 = vmul.f32 %v1645, %v1669
    %v1677 = vmul.f32 %v1646, %v1669
    %v1678 = vadd.f32 %v1661, %v1670
    %v1679 = vadd.f32 %v1662, %v1671
    %v1680 = vadd.f32 %v1663, %v1672
    %v1681 = vadd.f32 %v1664, %v1673
    %v1682 = vadd.f32 %v1665, %v1674
    %v1683 = vadd.f32 %v1666, %v1675
    %v1684 = vadd.f32 %v1667, %v1676
    %v1685 = vadd.f32 %v1668, %v1677
    %v1686 = vld [vmem:[%s711] sm:$0xff]
    %v1687 = vmul.f32 %v1640, %v1686
    %v1688 = vmul.f32 %v1641, %v1686
    %v1689 = vmul.f32 %v1642, %v1686
    %v1690 = vmul.f32 %v1643, %v1686
    %v1691 = vmul.f32 %v1644, %v1686
    %v1692 = vmul.f32 %v1645, %v1686
    %v1693 = vmul.f32 %v1646, %v1686
    %v1694 = vmul.f32 %v1647, %v1686
    %v1695 = vadd.f32 %v1678, %v1687
    %v1696 = vadd.f32 %v1679, %v1688
    %v1697 = vadd.f32 %v1680, %v1689
    %v1698 = vadd.f32 %v1681, %v1690
    %v1699 = vadd.f32 %v1682, %v1691
    %v1700 = vadd.f32 %v1683, %v1692
    %v1701 = vadd.f32 %v1684, %v1693
    %v1702 = vadd.f32 %v1685, %v1694
    %v1703 = vld [vmem:[%s729] sm:$0xff]
    %v1704 = vmul.f32 %v1641, %v1703
    %v1705 = vmul.f32 %v1642, %v1703
    %v1706 = vmul.f32 %v1643, %v1703
    %v1707 = vmul.f32 %v1644, %v1703
    %v1708 = vmul.f32 %v1645, %v1703
    %v1709 = vmul.f32 %v1646, %v1703
    %v1710 = vmul.f32 %v1647, %v1703
    %v1711 = vmul.f32 %v1648, %v1703
    %v1712 = vadd.f32 %v1695, %v1704
    %v1713 = vadd.f32 %v1696, %v1705
    %v1714 = vadd.f32 %v1697, %v1706
    %v1715 = vadd.f32 %v1698, %v1707
    %v1716 = vadd.f32 %v1699, %v1708
    %v1717 = vadd.f32 %v1700, %v1709
    %v1718 = vadd.f32 %v1701, %v1710
    %v1719 = vadd.f32 %v1702, %v1711
    %v1720 = vld [vmem:[%s747] sm:$0xff]
    %v1721 = vmul.f32 %v1642, %v1720
    %v1722 = vmul.f32 %v1643, %v1720
    %v1723 = vmul.f32 %v1644, %v1720
    %v1724 = vmul.f32 %v1645, %v1720
    %v1725 = vmul.f32 %v1646, %v1720
    %v1726 = vmul.f32 %v1647, %v1720
    %v1727 = vmul.f32 %v1648, %v1720
    %v1728 = vmul.f32 %v1649, %v1720
    %v1729 = vadd.f32 %v1712, %v1721
    %v1730 = vadd.f32 %v1713, %v1722
    %v1731 = vadd.f32 %v1714, %v1723
    %v1732 = vadd.f32 %v1715, %v1724
    %v1733 = vadd.f32 %v1716, %v1725
    %v1734 = vadd.f32 %v1717, %v1726
    %v1735 = vadd.f32 %v1718, %v1727
    %v1736 = vadd.f32 %v1719, %v1728
    %v1737 = vld [vmem:[%s765] sm:$0xff]
    %v1738 = vmul.f32 %v1643, %v1737
    %v1739 = vmul.f32 %v1644, %v1737
    %v1740 = vmul.f32 %v1645, %v1737
    %v1741 = vmul.f32 %v1646, %v1737
    %v1742 = vmul.f32 %v1647, %v1737
    %v1743 = vmul.f32 %v1648, %v1737
    %v1744 = vmul.f32 %v1649, %v1737
    %v1745 = vmul.f32 %v1650, %v1737
    %v1746 = vadd.f32 %v1729, %v1738
    %v1747 = vadd.f32 %v1730, %v1739
    %v1748 = vadd.f32 %v1731, %v1740
    %v1749 = vadd.f32 %v1732, %v1741
    %v1750 = vadd.f32 %v1733, %v1742
    %v1751 = vadd.f32 %v1734, %v1743
    %v1752 = vadd.f32 %v1735, %v1744
    %v1753 = vadd.f32 %v1736, %v1745
    %v1754 = vld [vmem:[%s783] sm:$0xff]
    %v1755 = vmul.f32 %v1644, %v1754
    %v1756 = vmul.f32 %v1645, %v1754
    %v1757 = vmul.f32 %v1646, %v1754
    %v1758 = vmul.f32 %v1647, %v1754
    %v1759 = vmul.f32 %v1648, %v1754
    %v1760 = vmul.f32 %v1649, %v1754
    %v1761 = vmul.f32 %v1650, %v1754
    %v1762 = vmul.f32 %v1651, %v1754
    %v1763 = vadd.f32 %v1746, %v1755
    %v1764 = vadd.f32 %v1747, %v1756
    %v1765 = vadd.f32 %v1748, %v1757
    %v1766 = vadd.f32 %v1749, %v1758
    %v1767 = vadd.f32 %v1750, %v1759
    %v1768 = vadd.f32 %v1751, %v1760
    %v1769 = vadd.f32 %v1752, %v1761
    %v1770 = vadd.f32 %v1753, %v1762
    %v1771 = vld [vmem:[#allocation2 + $0xa] sm:$0xff]
    %v1772 = vld [vmem:[#allocation2 + $0x22] sm:$0xff]
    %v1773 = vld [vmem:[#allocation2 + $0x3a] sm:$0xff]
    %v1774 = vld [vmem:[#allocation2 + $0x52] sm:$0xff]
    %v1775 = vld [vmem:[#allocation2 + $0x6a] sm:$0xff]
    %v1776 = vld [vmem:[#allocation2 + $0x82] sm:$0xff]
    %v1777 = vld [vmem:[#allocation2 + $0x9a] sm:$0xff]
    %v1778 = vld [vmem:[#allocation2 + $0xb2] sm:$0xff]
    %v1779 = vld [vmem:[#allocation2 + $0xca] sm:$0xff]
    %v1780 = vld [vmem:[#allocation2 + $0xe2] sm:$0xff]
    %v1781 = vld [vmem:[#allocation2 + $0xfa] sm:$0xff]
    %v1782 = vld [vmem:[#allocation2 + $0x112] sm:$0xff]
    %v1783 = vld [vmem:[#allocation2 + $0x12a] sm:$0xff]
    %v1784 = vld [vmem:[#allocation2 + $0x142] sm:$0xff]
    %v1785 = vld [vmem:[%s815] sm:$0xff]
    %v1786 = vmul.f32 %v1771, %v1785
    %v1787 = vmul.f32 %v1772, %v1785
    %v1788 = vmul.f32 %v1773, %v1785
    %v1789 = vmul.f32 %v1774, %v1785
    %v1790 = vmul.f32 %v1775, %v1785
    %v1791 = vmul.f32 %v1776, %v1785
    %v1792 = vmul.f32 %v1777, %v1785
    %v1793 = vmul.f32 %v1778, %v1785
    %v1794 = vadd.f32 %v1763, %v1786
    %v1795 = vadd.f32 %v1764, %v1787
    %v1796 = vadd.f32 %v1765, %v1788
    %v1797 = vadd.f32 %v1766, %v1789
    %v1798 = vadd.f32 %v1767, %v1790
    %v1799 = vadd.f32 %v1768, %v1791
    %v1800 = vadd.f32 %v1769, %v1792
    %v1801 = vadd.f32 %v1770, %v1793
    %v1802 = vld [vmem:[%s833] sm:$0xff]
    %v1803 = vmul.f32 %v1772, %v1802
    %v1804 = vmul.f32 %v1773, %v1802
    %v1805 = vmul.f32 %v1774, %v1802
    %v1806 = vmul.f32 %v1775, %v1802
    %v1807 = vmul.f32 %v1776, %v1802
    %v1808 = vmul.f32 %v1777, %v1802
    %v1809 = vmul.f32 %v1778, %v1802
    %v1810 = vmul.f32 %v1779, %v1802
    %v1811 = vadd.f32 %v1794, %v1803
    %v1812 = vadd.f32 %v1795, %v1804
    %v1813 = vadd.f32 %v1796, %v1805
    %v1814 = vadd.f32 %v1797, %v1806
    %v1815 = vadd.f32 %v1798, %v1807
    %v1816 = vadd.f32 %v1799, %v1808
    %v1817 = vadd.f32 %v1800, %v1809
    %v1818 = vadd.f32 %v1801, %v1810
    %v1819 = vld [vmem:[%s851] sm:$0xff]
    %v1820 = vmul.f32 %v1773, %v1819
    %v1821 = vmul.f32 %v1774, %v1819
    %v1822 = vmul.f32 %v1775, %v1819
    %v1823 = vmul.f32 %v1776, %v1819
    %v1824 = vmul.f32 %v1777, %v1819
    %v1825 = vmul.f32 %v1778, %v1819
    %v1826 = vmul.f32 %v1779, %v1819
    %v1827 = vmul.f32 %v1780, %v1819
    %v1828 = vadd.f32 %v1811, %v1820
    %v1829 = vadd.f32 %v1812, %v1821
    %v1830 = vadd.f32 %v1813, %v1822
    %v1831 = vadd.f32 %v1814, %v1823
    %v1832 = vadd.f32 %v1815, %v1824
    %v1833 = vadd.f32 %v1816, %v1825
    %v1834 = vadd.f32 %v1817, %v1826
    %v1835 = vadd.f32 %v1818, %v1827
    %v1836 = vld [vmem:[%s869] sm:$0xff]
    %v1837 = vmul.f32 %v1774, %v1836
    %v1838 = vmul.f32 %v1775, %v1836
    %v1839 = vmul.f32 %v1776, %v1836
    %v1840 = vmul.f32 %v1777, %v1836
    %v1841 = vmul.f32 %v1778, %v1836
    %v1842 = vmul.f32 %v1779, %v1836
    %v1843 = vmul.f32 %v1780, %v1836
    %v1844 = vmul.f32 %v1781, %v1836
    %v1845 = vadd.f32 %v1828, %v1837
    %v1846 = vadd.f32 %v1829, %v1838
    %v1847 = vadd.f32 %v1830, %v1839
    %v1848 = vadd.f32 %v1831, %v1840
    %v1849 = vadd.f32 %v1832, %v1841
    %v1850 = vadd.f32 %v1833, %v1842
    %v1851 = vadd.f32 %v1834, %v1843
    %v1852 = vadd.f32 %v1835, %v1844
    %v1853 = vld [vmem:[%s887] sm:$0xff]
    %v1854 = vmul.f32 %v1775, %v1853
    %v1855 = vmul.f32 %v1776, %v1853
    %v1856 = vmul.f32 %v1777, %v1853
    %v1857 = vmul.f32 %v1778, %v1853
    %v1858 = vmul.f32 %v1779, %v1853
    %v1859 = vmul.f32 %v1780, %v1853
    %v1860 = vmul.f32 %v1781, %v1853
    %v1861 = vmul.f32 %v1782, %v1853
    %v1862 = vadd.f32 %v1845, %v1854
    %v1863 = vadd.f32 %v1846, %v1855
    %v1864 = vadd.f32 %v1847, %v1856
    %v1865 = vadd.f32 %v1848, %v1857
    %v1866 = vadd.f32 %v1849, %v1858
    %v1867 = vadd.f32 %v1850, %v1859
    %v1868 = vadd.f32 %v1851, %v1860
    %v1869 = vadd.f32 %v1852, %v1861
    %v1870 = vld [vmem:[%s905] sm:$0xff]
    %v1871 = vmul.f32 %v1776, %v1870
    %v1872 = vmul.f32 %v1777, %v1870
    %v1873 = vmul.f32 %v1778, %v1870
    %v1874 = vmul.f32 %v1779, %v1870
    %v1875 = vmul.f32 %v1780, %v1870
    %v1876 = vmul.f32 %v1781, %v1870
    %v1877 = vmul.f32 %v1782, %v1870
    %v1878 = vmul.f32 %v1783, %v1870
    %v1879 = vadd.f32 %v1862, %v1871
    %v1880 = vadd.f32 %v1863, %v1872
    %v1881 = vadd.f32 %v1864, %v1873
    %v1882 = vadd.f32 %v1865, %v1874
    %v1883 = vadd.f32 %v1866, %v1875
    %v1884 = vadd.f32 %v1867, %v1876
    %v1885 = vadd.f32 %v1868, %v1877
    %v1886 = vadd.f32 %v1869, %v1878
    %v1887 = vld [vmem:[%s923] sm:$0xff]
    %v1888 = vmul.f32 %v1777, %v1887
    %v1889 = vmul.f32 %v1778, %v1887
    %v1890 = vmul.f32 %v1779, %v1887
    %v1891 = vmul.f32 %v1780, %v1887
    %v1892 = vmul.f32 %v1781, %v1887
    %v1893 = vmul.f32 %v1782, %v1887
    %v1894 = vmul.f32 %v1783, %v1887
    %v1895 = vmul.f32 %v1784, %v1887
    %v1896 = vadd.f32 %v1879, %v1888
    %v1897 = vadd.f32 %v1880, %v1889
    %v1898 = vadd.f32 %v1881, %v1890
    %v1899 = vadd.f32 %v1882, %v1891
    %v1900 = vadd.f32 %v1883, %v1892
    %v1901 = vadd.f32 %v1884, %v1893
    %v1902 = vadd.f32 %v1885, %v1894
    %v1903 = vadd.f32 %v1886, %v1895
    %v1904 = vld [vmem:[#allocation2 + $0xb] sm:$0xff]
    %v1905 = vld [vmem:[#allocation2 + $0x23] sm:$0xff]
    %v1906 = vld [vmem:[#allocation2 + $0x3b] sm:$0xff]
    %v1907 = vld [vmem:[#allocation2 + $0x53] sm:$0xff]
    %v1908 = vld [vmem:[#allocation2 + $0x6b] sm:$0xff]
    %v1909 = vld [vmem:[#allocation2 + $0x83] sm:$0xff]
    %v1910 = vld [vmem:[#allocation2 + $0x9b] sm:$0xff]
    %v1911 = vld [vmem:[#allocation2 + $0xb3] sm:$0xff]
    %v1912 = vld [vmem:[#allocation2 + $0xcb] sm:$0xff]
    %v1913 = vld [vmem:[#allocation2 + $0xe3] sm:$0xff]
    %v1914 = vld [vmem:[#allocation2 + $0xfb] sm:$0xff]
    %v1915 = vld [vmem:[#allocation2 + $0x113] sm:$0xff]
    %v1916 = vld [vmem:[#allocation2 + $0x12b] sm:$0xff]
    %v1917 = vld [vmem:[#allocation2 + $0x143] sm:$0xff]
    %v1918 = vld [vmem:[%s955] sm:$0xff]
    %v1919 = vmul.f32 %v1904, %v1918
    %v1920 = vmul.f32 %v1905, %v1918
    %v1921 = vmul.f32 %v1906, %v1918
    %v1922 = vmul.f32 %v1907, %v1918
    %v1923 = vmul.f32 %v1908, %v1918
    %v1924 = vmul.f32 %v1909, %v1918
    %v1925 = vmul.f32 %v1910, %v1918
    %v1926 = vmul.f32 %v1911, %v1918
    %v1927 = vadd.f32 %v1896, %v1919
    %v1928 = vadd.f32 %v1897, %v1920
    %v1929 = vadd.f32 %v1898, %v1921
    %v1930 = vadd.f32 %v1899, %v1922
    %v1931 = vadd.f32 %v1900, %v1923
    %v1932 = vadd.f32 %v1901, %v1924
    %v1933 = vadd.f32 %v1902, %v1925
    %v1934 = vadd.f32 %v1903, %v1926
    %v1935 = vld [vmem:[%s973] sm:$0xff]
    %v1936 = vmul.f32 %v1905, %v1935
    %v1937 = vmul.f32 %v1906, %v1935
    %v1938 = vmul.f32 %v1907, %v1935
    %v1939 = vmul.f32 %v1908, %v1935
    %v1940 = vmul.f32 %v1909, %v1935
    %v1941 = vmul.f32 %v1910, %v1935
    %v1942 = vmul.f32 %v1911, %v1935
    %v1943 = vmul.f32 %v1912, %v1935
    %v1944 = vadd.f32 %v1927, %v1936
    %v1945 = vadd.f32 %v1928, %v1937
    %v1946 = vadd.f32 %v1929, %v1938
    %v1947 = vadd.f32 %v1930, %v1939
    %v1948 = vadd.f32 %v1931, %v1940
    %v1949 = vadd.f32 %v1932, %v1941
    %v1950 = vadd.f32 %v1933, %v1942
    %v1951 = vadd.f32 %v1934, %v1943
    %v1952 = vld [vmem:[%s991] sm:$0xff]
    %v1953 = vmul.f32 %v1906, %v1952
    %v1954 = vmul.f32 %v1907, %v1952
    %v1955 = vmul.f32 %v1908, %v1952
    %v1956 = vmul.f32 %v1909, %v1952
    %v1957 = vmul.f32 %v1910, %v1952
    %v1958 = vmul.f32 %v1911, %v1952
    %v1959 = vmul.f32 %v1912, %v1952
    %v1960 = vmul.f32 %v1913, %v1952
    %v1961 = vadd.f32 %v1944, %v1953
    %v1962 = vadd.f32 %v1945, %v1954
    %v1963 = vadd.f32 %v1946, %v1955
    %v1964 = vadd.f32 %v1947, %v1956
    %v1965 = vadd.f32 %v1948, %v1957
    %v1966 = vadd.f32 %v1949, %v1958
    %v1967 = vadd.f32 %v1950, %v1959
    %v1968 = vadd.f32 %v1951, %v1960
    %v1969 = vld [vmem:[%s1009] sm:$0xff]
    %v1970 = vmul.f32 %v1907, %v1969
    %v1971 = vmul.f32 %v1908, %v1969
    %v1972 = vmul.f32 %v1909, %v1969
    %v1973 = vmul.f32 %v1910, %v1969
    %v1974 = vmul.f32 %v1911, %v1969
    %v1975 = vmul.f32 %v1912, %v1969
    %v1976 = vmul.f32 %v1913, %v1969
    %v1977 = vmul.f32 %v1914, %v1969
    %v1978 = vadd.f32 %v1961, %v1970
    %v1979 = vadd.f32 %v1962, %v1971
    %v1980 = vadd.f32 %v1963, %v1972
    %v1981 = vadd.f32 %v1964, %v1973
    %v1982 = vadd.f32 %v1965, %v1974
    %v1983 = vadd.f32 %v1966, %v1975
    %v1984 = vadd.f32 %v1967, %v1976
    %v1985 = vadd.f32 %v1968, %v1977
    %v1986 = vld [vmem:[%s1027] sm:$0xff]
    %v1987 = vmul.f32 %v1908, %v1986
    %v1988 = vmul.f32 %v1909, %v1986
    %v1989 = vmul.f32 %v1910, %v1986
    %v1990 = vmul.f32 %v1911, %v1986
    %v1991 = vmul.f32 %v1912, %v1986
    %v1992 = vmul.f32 %v1913, %v1986
    %v1993 = vmul.f32 %v1914, %v1986
    %v1994 = vmul.f32 %v1915, %v1986
    %v1995 = vadd.f32 %v1978, %v1987
    %v1996 = vadd.f32 %v1979, %v1988
    %v1997 = vadd.f32 %v1980, %v1989
    %v1998 = vadd.f32 %v1981, %v1990
    %v1999 = vadd.f32 %v1982, %v1991
    %v2000 = vadd.f32 %v1983, %v1992
    %v2001 = vadd.f32 %v1984, %v1993
    %v2002 = vadd.f32 %v1985, %v1994
    %v2003 = vld [vmem:[%s1045] sm:$0xff]
    %v2004 = vmul.f32 %v1909, %v2003
    %v2005 = vmul.f32 %v1910, %v2003
    %v2006 = vmul.f32 %v1911, %v2003
    %v2007 = vmul.f32 %v1912, %v2003
    %v2008 = vmul.f32 %v1913, %v2003
    %v2009 = vmul.f32 %v1914, %v2003
    %v2010 = vmul.f32 %v1915, %v2003
    %v2011 = vmul.f32 %v1916, %v2003
    %v2012 = vadd.f32 %v1995, %v2004
    %v2013 = vadd.f32 %v1996, %v2005
    %v2014 = vadd.f32 %v1997, %v2006
    %v2015 = vadd.f32 %v1998, %v2007
    %v2016 = vadd.f32 %v1999, %v2008
    %v2017 = vadd.f32 %v2000, %v2009
    %v2018 = vadd.f32 %v2001, %v2010
    %v2019 = vadd.f32 %v2002, %v2011
    %v2020 = vld [vmem:[%s1063] sm:$0xff]
    %v2021 = vmul.f32 %v1910, %v2020
    %v2022 = vmul.f32 %v1911, %v2020
    %v2023 = vmul.f32 %v1912, %v2020
    %v2024 = vmul.f32 %v1913, %v2020
    %v2025 = vmul.f32 %v1914, %v2020
    %v2026 = vmul.f32 %v1915, %v2020
    %v2027 = vmul.f32 %v1916, %v2020
    %v2028 = vmul.f32 %v1917, %v2020
    %v2029 = vadd.f32 %v2012, %v2021
    %v2030 = vadd.f32 %v2013, %v2022
    %v2031 = vadd.f32 %v2014, %v2023
    %v2032 = vadd.f32 %v2015, %v2024
    %v2033 = vadd.f32 %v2016, %v2025
    %v2034 = vadd.f32 %v2017, %v2026
    %v2035 = vadd.f32 %v2018, %v2027
    %v2036 = vadd.f32 %v2019, %v2028
    %s2037 = scalar_lea.vmem [#allocation8], 64
    %2038 = vst [vmem:[%s2037] sm:$0xff] %v2029
    %2039 = vst [vmem:[%s2037 + $0x8] sm:$0xff] %v2030
    %2040 = vst [vmem:[%s2037 + $0x10] sm:$0xff] %v2031
    %2041 = vst [vmem:[%s2037 + $0x18] sm:$0xff] %v2032
    %2042 = vst [vmem:[%s2037 + $0x20] sm:$0xff] %v2033
    %2043 = vst [vmem:[%s2037 + $0x28] sm:$0xff] %v2034
    %2044 = vst [vmem:[%s2037 + $0x30] sm:$0xff] %v2035
    %2045 = vst [vmem:[%s2037 + $0x38] sm:$0xff] %v2036
    // Predicated region
    $region22: #{tpu_custom_call.1} parent=1 // pred_check
      _
    $region23: #{tpu_custom_call.1} parent=1 // pred_check_branch
      %2047 = sbr.rel (0) target = $region25
    $region24: #{tpu_custom_call.1} parent=1 // pred_region
      %s2049 = ssub.s32 2048, 2048
      %2050 = vsyncadd [#allocation5], %s2049
      %s2051 = sshll.u32 [#allocation8], 4
      %s2052 = int_to_ptr.vmem [resolvable:$true] %s2051
      %2057 = dma.vmem_to_hbm [thread:$0]  %s2052, 2048, %s3, [#allocation5], 128, 128, 8
    $region25: #{tpu_custom_call.1} parent=1 // pred_fallthru
      _
    // Predicated region
    $region26: #{tpu_custom_call.1} parent=1 // pred_check
      _
    $region27: #{tpu_custom_call.1} parent=1 // pred_check_branch
      %2059 = sbr.rel (0) target = $region29
    $region28: #{tpu_custom_call.1} parent=1 // pred_region
      %2060 = dma.done [#allocation5], 2048
    $region29: #{tpu_custom_call.1} parent=1 // pred_fallthru
      _
    %2061 = vsyncpa [#allocation4], 1
    %2062 = vsyncpa [#allocation7], 1
    %2063 = vsyncpa [#allocation5], 1

</llo_original>
